<compile_context>
chip_gen: v7x
topology: tpu7x:2x2x1
jax: 0.10.0
libtpu: 0.0.40
codegen_flags: <defaults>
</compile_context>

<pallas_src>
import functools

import jax
import jax.numpy as jnp
from jax import lax
from jax.experimental import pallas as pl
from jax.experimental.pallas import tpu as pltpu

# Module hyper-parameters (input_size = len('CCO') = 3 as in the PyTorch script).
INPUT_SIZE = 3
HIDDEN_SIZE = 128
OUTPUT_SIZE = INPUT_SIZE

_SUBLANE = 8  # f32 sublane tile


def _fused_lstm_kernel(x_ref, h0_ref, c0_ref, wih_ref, whh_ref, b_ref,
                       wout_ref, bout_ref,
                       y_ref, hT_ref, cT_ref,
                       xg_scr, hs_scr,
                       *, seq_len, batch_pad):
    """Fused SMILESGenerator forward: input proj -> LSTM recurrence -> Linear.

    x_ref   : (T*Bp, Ip)   padded, seq-major flattened input
    h0_ref  : (Bp, H)      initial hidden state (padded batch)
    c0_ref  : (Bp, H)      initial cell state
    wih_ref : (Ip, 4H)     W_ih^T (rows zero-padded to Ip)
    whh_ref : (H, 4H)      W_hh^T
    b_ref   : (1, 4H)      b_ih + b_hh
    wout_ref: (H, O)       W_out^T
    bout_ref: (1, O)       b_out
    y_ref   : (T*Bp, O)    fc output (padded batch; sliced in wrapper)
    hT_ref  : (Bp, H)      final hidden state
    cT_ref  : (Bp, H)      final cell state
    xg_scr  : (T*Bp, 4H)   VMEM scratch: precomputed input gates
    hs_scr  : (T*Bp, H)    VMEM scratch: per-step hidden states
    """
    T = seq_len
    Bp = batch_pad
    H = h0_ref.shape[-1]

    # ---- Prologue (off the serial critical path): one MXU matmul for the
    # whole sequence's input projection, kept resident in VMEM scratch.
    xg_scr[...] = (
        jnp.dot(x_ref[...], wih_ref[...], preferred_element_type=jnp.float32)
        + b_ref[...]
    )

    def _sigmoid(z):
        # sigmoid(z) == 0.5 * (tanh(z/2) + 1): one EUP push instead of two.
        return 0.5 * jnp.tanh(0.5 * z) + 0.5

    def step(t, carry):
        h, c = carry
        row = pl.multiple_of(t * Bp, Bp)
        # Gates laid out as [i | f | g | o] along the last dim (PyTorch order).
        # W_hh is re-read from VMEM each step (cheap) instead of being carried
        # across the unrolled loop (would pin 64 vregs and force spills).
        # TODO(synk): a weight-stationary MXU pattern (matmul_push_rhs /
        # matmul_acc_lhs / matmul_pop, one RHS tile per MXU) would shorten the
        # per-step matmul further; omitted for portability across v5e/v6e/v7x.
        gates = xg_scr[pl.ds(row, Bp), :] + jnp.dot(
            h, whh_ref[...], preferred_element_type=jnp.float32)
        i_g = _sigmoid(gates[:, 0 * H:1 * H])
        f_g = _sigmoid(gates[:, 1 * H:2 * H])
        g_g = jnp.tanh(gates[:, 2 * H:3 * H])
        o_g = _sigmoid(gates[:, 3 * H:4 * H])
        c_new = f_g * c + i_g * g_g
        h_new = o_g * jnp.tanh(c_new)
        hs_scr[pl.ds(row, Bp), :] = h_new  # full (8, 128) lane-dense store
        return h_new, c_new

    # Serial dependence means full unroll adds no ILP beyond a small window.
    unroll = True if T <= 16 else 8
    h_fin, c_fin = lax.fori_loop(0, T, step,
                                 (h0_ref[...], c0_ref[...]),
                                 unroll=unroll)
    hT_ref[...] = h_fin
    cT_ref[...] = c_fin

    # ---- Epilogue: output nn.Linear over all timesteps at once (O = 3:
    # a single tiny masked-lane store, accepted per review).
    y_ref[...] = (
        jnp.dot(hs_scr[...], wout_ref[...], preferred_element_type=jnp.float32)
        + bout_ref[...]
    )


def smiles_generator_forward(x, h0, c0, params):
    """x: (T, B, I); h0/c0: (1, B, H). Returns (y, (hT, cT)) like PyTorch."""
    T, B, I = x.shape
    H = params["w_hh"].shape[1]
    O = params["w_out"].shape[0]

    Bp = ((B + _SUBLANE - 1) // _SUBLANE) * _SUBLANE      # pad batch to 8
    Ip = ((I + _SUBLANE - 1) // _SUBLANE) * _SUBLANE      # pad K of prologue matmul

    # Pre-transpose weights so all matmuls are plain (M, K) @ (K, N).
    wih_t = jnp.zeros((Ip, 4 * H), jnp.float32).at[:I, :].set(params["w_ih"].T)
    whh_t = params["w_hh"].T                               # (H, 4H)
    b = (params["b_ih"] + params["b_hh"]).reshape(1, 4 * H)
    wout_t = params["w_out"].T                             # (H, O)
    bout = params["b_out"].reshape(1, O)

    # Pad batch (and input feature dim) with zeros; flatten seq-major.
    x_p = jnp.zeros((T, Bp, Ip), jnp.float32).at[:, :B, :I].set(x)
    x_flat = x_p.reshape(T * Bp, Ip)
    h0_p = jnp.zeros((Bp, H), jnp.float32).at[:B, :].set(h0.reshape(B, H))
    c0_p = jnp.zeros((Bp, H), jnp.float32).at[:B, :].set(c0.reshape(B, H))

    # Whole sequence resident in VMEM: check it fits (add T-blocking to scale).
    vmem_bytes = 4 * (
        T * Bp * Ip + 2 * Bp * H + Ip * 4 * H + H * 4 * H + 4 * H + H * O + O  # in
        + T * Bp * O + 2 * Bp * H                                              # out
        + T * Bp * 4 * H + T * Bp * H                                          # scratch
    )
    assert vmem_bytes < 40 * 1024 * 1024, (
        f"whole-sequence VMEM footprint {vmem_bytes} B too large; add T-blocking")

    vmem = pl.BlockSpec(memory_space=pltpu.MemorySpace.VMEM)

    y_pad, hT_pad, cT_pad = pl.pallas_call(
        functools.partial(_fused_lstm_kernel, seq_len=T, batch_pad=Bp),
        out_shape=(
            jax.ShapeDtypeStruct((T * Bp, O), jnp.float32),   # y (padded batch)
            jax.ShapeDtypeStruct((Bp, H), jnp.float32),       # hT
            jax.ShapeDtypeStruct((Bp, H), jnp.float32),       # cT
        ),
        in_specs=[vmem] * 8,
        out_specs=(vmem, vmem, vmem),
        scratch_shapes=[
            pltpu.VMEM((T * Bp, 4 * H), jnp.float32),          # xg
            pltpu.VMEM((T * Bp, H), jnp.float32),              # hs
        ],
        compiler_params=pltpu.CompilerParams(
            vmem_limit_bytes=64 * 1024 * 1024),
    )(x_flat, h0_p, c0_p, wih_t, whh_t, b, wout_t, bout)

    y = y_pad.reshape(T, Bp, O)[:, :B, :]
    hT = hT_pad[:B, :].reshape(1, B, H)
    cT = cT_pad[:B, :].reshape(1, B, H)
    return y, (hT, cT)


def init_params(key, input_size, hidden_size, output_size):
    """Deterministic init mirroring PyTorch's U(-1/sqrt(H), 1/sqrt(H))."""
    ks = jax.random.split(key, 6)
    bound = 1.0 / jnp.sqrt(hidden_size)
    u = lambda k, shape: jax.random.uniform(k, shape, jnp.float32, -bound, bound)
    return {
        "w_ih": u(ks[0], (4 * hidden_size, input_size)),
        "w_hh": u(ks[1], (4 * hidden_size, hidden_size)),
        "b_ih": u(ks[2], (4 * hidden_size,)),
        "b_hh": u(ks[3], (4 * hidden_size,)),
        "w_out": u(ks[4], (output_size, hidden_size)),
        "b_out": u(ks[5], (output_size,)),
    }


def reference_forward(x, h0, c0, params):
    """Pure-JAX reference (lax.scan) for correctness checking."""
    H = params["w_hh"].shape[1]
    wih_t, whh_t = params["w_ih"].T, params["w_hh"].T
    b = params["b_ih"] + params["b_hh"]

    def step(carry, x_t):
        h, c = carry
        gates = x_t @ wih_t + h @ whh_t + b
        i = jax.nn.sigmoid(gates[:, 0 * H:1 * H])
        f = jax.nn.sigmoid(gates[:, 1 * H:2 * H])
        g = jnp.tanh(gates[:, 2 * H:3 * H])
        o = jax.nn.sigmoid(gates[:, 3 * H:4 * H])
        c = f * c + i * g
        h = o * jnp.tanh(c)
        return (h, c), h

    (hT, cT), hs = lax.scan(step, (h0[0], c0[0]), x)
    y = hs @ params["w_out"].T + params["b_out"]
    return y, (hT[None], cT[None])


if __name__ == "__main__":
    T, B = 8, 2  # seq_len, batch (small example shapes)
    key = jax.random.PRNGKey(0)
    k_x, k_p = jax.random.split(key)

    params = init_params(k_p, INPUT_SIZE, HIDDEN_SIZE, OUTPUT_SIZE)
    x = jax.random.normal(k_x, (T, B, INPUT_SIZE), jnp.float32)
    # init_hidden(batch_size): zeros of shape (1, B, H)
    h0 = jnp.zeros((1, B, HIDDEN_SIZE), jnp.float32)
    c0 = jnp.zeros((1, B, HIDDEN_SIZE), jnp.float32)

    y, (hT, cT) = jax.block_until_ready(
        jax.jit(smiles_generator_forward)(x, h0, c0, params))

    y_ref, (hT_ref, cT_ref) = reference_forward(x, h0, c0, params)
    assert jnp.allclose(y, y_ref, rtol=1e-4, atol=1e-4)
    assert jnp.allclose(hT, hT_ref, rtol=1e-4, atol=1e-4)
    assert jnp.allclose(cT, cT_ref, rtol=1e-4, atol=1e-4)

    print("KERNEL_OK")
</pallas_src>

<mosaic_0001>
module attributes {stable_mosaic.version = 11 : i64} {
  func.func @_fused_lstm_kernel(%arg0: memref<64x8xf32, #tpu.memory_space<vmem>>, %arg1: memref<8x128xf32, #tpu.memory_space<vmem>>, %arg2: memref<8x128xf32, #tpu.memory_space<vmem>>, %arg3: memref<8x512xf32, #tpu.memory_space<vmem>>, %arg4: memref<128x512xf32, #tpu.memory_space<vmem>>, %arg5: memref<1x512xf32, #tpu.memory_space<vmem>>, %arg6: memref<128x3xf32, #tpu.memory_space<vmem>>, %arg7: memref<1x3xf32, #tpu.memory_space<vmem>>, %arg8: memref<64x3xf32, #tpu.memory_space<vmem>>, %arg9: memref<8x128xf32, #tpu.memory_space<vmem>>, %arg10: memref<8x128xf32, #tpu.memory_space<vmem>>, %arg11: memref<64x512xf32, #tpu.memory_space<vmem>>, %arg12: memref<64x128xf32, #tpu.memory_space<vmem>>) attributes {dimension_semantics = [], scalar_prefetch = 0 : i64, scratch_operands = 2 : i64, tpu.core_type = #tpu.core_type<tc>} {
    %c0 = arith.constant 0 : index
    %c0_0 = arith.constant 0 : index
    %0 = vector.load %arg0[%c0, %c0_0] : memref<64x8xf32, #tpu.memory_space<vmem>>, vector<64x8xf32>
    %c0_1 = arith.constant 0 : index
    %c0_2 = arith.constant 0 : index
    %1 = vector.load %arg3[%c0_1, %c0_2] : memref<8x512xf32, #tpu.memory_space<vmem>>, vector<8x512xf32>
    %cst = arith.constant dense<0.000000e+00> : vector<64x512xf32>
    %2 = tpu.matmul %0, %1, %cst {dimension_numbers = #tpu.dot_dimension_numbers<[1], [0], [0], [1], [0, 0, 1, 1], [], []>} : vector<64x8xf32>, vector<8x512xf32>, vector<64x512xf32> -> vector<64x512xf32>
    %c0_3 = arith.constant 0 : index
    %c0_4 = arith.constant 0 : index
    %3 = vector.load %arg5[%c0_3, %c0_4] : memref<1x512xf32, #tpu.memory_space<vmem>>, vector<1x512xf32>
    %4 = vector.broadcast %3 : vector<1x512xf32> to vector<64x512xf32>
    %5 = arith.addf %2, %4 : vector<64x512xf32>
    %c0_5 = arith.constant 0 : index
    %c0_6 = arith.constant 0 : index
    %6 = vector.load %arg11[%c0_5, %c0_6] : memref<64x512xf32, #tpu.memory_space<vmem>>, vector<64x512xf32>
    tpu.vector_store %arg11[%c0_5, %c0_6], %5 {strides = array<i32>} : memref<64x512xf32, #tpu.memory_space<vmem>>, vector<64x512xf32>,
    %c0_7 = arith.constant 0 : index
    %c0_8 = arith.constant 0 : index
    %7 = vector.load %arg1[%c0_7, %c0_8] : memref<8x128xf32, #tpu.memory_space<vmem>>, vector<8x128xf32>
    %c0_9 = arith.constant 0 : index
    %c0_10 = arith.constant 0 : index
    %8 = vector.load %arg2[%c0_9, %c0_10] : memref<8x128xf32, #tpu.memory_space<vmem>>, vector<8x128xf32>
    %c0_i32 = arith.constant 0 : i32
    %c8_i32 = arith.constant 8 : i32
    %9 = arith.muli %c0_i32, %c8_i32 : i32
    %10 = tpu.assume_multiple %9, 8 : i32
    %11 = arith.index_cast %10 : i32 to index
    %c0_11 = arith.constant 0 : index
    %12 = vector.load %arg11[%11, %c0_11] : memref<64x512xf32, #tpu.memory_space<vmem>>, vector<8x512xf32>
    %c0_12 = arith.constant 0 : index
    %c0_13 = arith.constant 0 : index
    %13 = vector.load %arg4[%c0_12, %c0_13] : memref<128x512xf32, #tpu.memory_space<vmem>>, vector<128x512xf32>
    %cst_14 = arith.constant dense<0.000000e+00> : vector<8x512xf32>
    %14 = tpu.matmul %7, %13, %cst_14 {dimension_numbers = #tpu.dot_dimension_numbers<[1], [0], [0], [1], [0, 0, 1, 1], [], []>} : vector<8x128xf32>, vector<128x512xf32>, vector<8x512xf32> -> vector<8x512xf32>
    %15 = arith.addf %12, %14 : vector<8x512xf32>
    %16 = vector.extract_strided_slice %15 {offsets = [0, 0], sizes = [8, 128], strides = [1, 1]} : vector<8x512xf32> to vector<8x128xf32>
    %cst_15 = arith.constant 5.000000e-01 : f32
    %17 = vector.broadcast %cst_15 : f32 to vector<8x128xf32>
    %18 = arith.mulf %17, %16 : vector<8x128xf32>
    %19 = math.tanh %18 : vector<8x128xf32>
    %cst_16 = arith.constant 5.000000e-01 : f32
    %20 = vector.broadcast %cst_16 : f32 to vector<8x128xf32>
    %21 = arith.mulf %20, %19 : vector<8x128xf32>
    %cst_17 = arith.constant 5.000000e-01 : f32
    %22 = vector.broadcast %cst_17 : f32 to vector<8x128xf32>
    %23 = arith.addf %21, %22 : vector<8x128xf32>
    %24 = vector.extract_strided_slice %15 {offsets = [0, 128], sizes = [8, 128], strides = [1, 1]} : vector<8x512xf32> to vector<8x128xf32>
    %cst_18 = arith.constant 5.000000e-01 : f32
    %25 = vector.broadcast %cst_18 : f32 to vector<8x128xf32>
    %26 = arith.mulf %25, %24 : vector<8x128xf32>
    %27 = math.tanh %26 : vector<8x128xf32>
    %cst_19 = arith.constant 5.000000e-01 : f32
    %28 = vector.broadcast %cst_19 : f32 to vector<8x128xf32>
    %29 = arith.mulf %28, %27 : vector<8x128xf32>
    %cst_20 = arith.constant 5.000000e-01 : f32
    %30 = vector.broadcast %cst_20 : f32 to vector<8x128xf32>
    %31 = arith.addf %29, %30 : vector<8x128xf32>
    %32 = vector.extract_strided_slice %15 {offsets = [0, 256], sizes = [8, 128], strides = [1, 1]} : vector<8x512xf32> to vector<8x128xf32>
    %33 = math.tanh %32 : vector<8x128xf32>
    %34 = vector.extract_strided_slice %15 {offsets = [0, 384], sizes = [8, 128], strides = [1, 1]} : vector<8x512xf32> to vector<8x128xf32>
    %cst_21 = arith.constant 5.000000e-01 : f32
    %35 = vector.broadcast %cst_21 : f32 to vector<8x128xf32>
    %36 = arith.mulf %35, %34 : vector<8x128xf32>
    %37 = math.tanh %36 : vector<8x128xf32>
    %cst_22 = arith.constant 5.000000e-01 : f32
    %38 = vector.broadcast %cst_22 : f32 to vector<8x128xf32>
    %39 = arith.mulf %38, %37 : vector<8x128xf32>
    %cst_23 = arith.constant 5.000000e-01 : f32
    %40 = vector.broadcast %cst_23 : f32 to vector<8x128xf32>
    %41 = arith.addf %39, %40 : vector<8x128xf32>
    %42 = arith.mulf %31, %8 : vector<8x128xf32>
    %43 = arith.mulf %23, %33 : vector<8x128xf32>
    %44 = arith.addf %42, %43 : vector<8x128xf32>
    %45 = math.tanh %44 : vector<8x128xf32>
    %46 = arith.mulf %41, %45 : vector<8x128xf32>
    %47 = arith.index_cast %10 : i32 to index
    %c0_24 = arith.constant 0 : index
    %48 = vector.load %arg12[%47, %c0_24] : memref<64x128xf32, #tpu.memory_space<vmem>>, vector<8x128xf32>
    tpu.vector_store %arg12[%47, %c0_24], %46 {strides = array<i32>} : memref<64x128xf32, #tpu.memory_space<vmem>>, vector<8x128xf32>,
    %c1_i32 = arith.constant 1 : i32
    %c8_i32_25 = arith.constant 8 : i32
    %49 = arith.muli %c1_i32, %c8_i32_25 : i32
    %50 = tpu.assume_multiple %49, 8 : i32
    %51 = arith.index_cast %50 : i32 to index
    %c0_26 = arith.constant 0 : index
    %52 = vector.load %arg11[%51, %c0_26] : memref<64x512xf32, #tpu.memory_space<vmem>>, vector<8x512xf32>
    %c0_27 = arith.constant 0 : index
    %c0_28 = arith.constant 0 : index
    %53 = vector.load %arg4[%c0_27, %c0_28] : memref<128x512xf32, #tpu.memory_space<vmem>>, vector<128x512xf32>
    %cst_29 = arith.constant dense<0.000000e+00> : vector<8x512xf32>
    %54 = tpu.matmul %46, %53, %cst_29 {dimension_numbers = #tpu.dot_dimension_numbers<[1], [0], [0], [1], [0, 0, 1, 1], [], []>} : vector<8x128xf32>, vector<128x512xf32>, vector<8x512xf32> -> vector<8x512xf32>
    %55 = arith.addf %52, %54 : vector<8x512xf32>
    %56 = vector.extract_strided_slice %55 {offsets = [0, 0], sizes = [8, 128], strides = [1, 1]} : vector<8x512xf32> to vector<8x128xf32>
    %cst_30 = arith.constant 5.000000e-01 : f32
    %57 = vector.broadcast %cst_30 : f32 to vector<8x128xf32>
    %58 = arith.mulf %57, %56 : vector<8x128xf32>
    %59 = math.tanh %58 : vector<8x128xf32>
    %cst_31 = arith.constant 5.000000e-01 : f32
    %60 = vector.broadcast %cst_31 : f32 to vector<8x128xf32>
    %61 = arith.mulf %60, %59 : vector<8x128xf32>
    %cst_32 = arith.constant 5.000000e-01 : f32
    %62 = vector.broadcast %cst_32 : f32 to vector<8x128xf32>
    %63 = arith.addf %61, %62 : vector<8x128xf32>
    %64 = vector.extract_strided_slice %55 {offsets = [0, 128], sizes = [8, 128], strides = [1, 1]} : vector<8x512xf32> to vector<8x128xf32>
    %cst_33 = arith.constant 5.000000e-01 : f32
    %65 = vector.broadcast %cst_33 : f32 to vector<8x128xf32>
    %66 = arith.mulf %65, %64 : vector<8x128xf32>
    %67 = math.tanh %66 : vector<8x128xf32>
    %cst_34 = arith.constant 5.000000e-01 : f32
    %68 = vector.broadcast %cst_34 : f32 to vector<8x128xf32>
    %69 = arith.mulf %68, %67 : vector<8x128xf32>
    %cst_35 = arith.constant 5.000000e-01 : f32
    %70 = vector.broadcast %cst_35 : f32 to vector<8x128xf32>
    %71 = arith.addf %69, %70 : vector<8x128xf32>
    %72 = vector.extract_strided_slice %55 {offsets = [0, 256], sizes = [8, 128], strides = [1, 1]} : vector<8x512xf32> to vector<8x128xf32>
    %73 = math.tanh %72 : vector<8x128xf32>
    %74 = vector.extract_strided_slice %55 {offsets = [0, 384], sizes = [8, 128], strides = [1, 1]} : vector<8x512xf32> to vector<8x128xf32>
    %cst_36 = arith.constant 5.000000e-01 : f32
    %75 = vector.broadcast %cst_36 : f32 to vector<8x128xf32>
    %76 = arith.mulf %75, %74 : vector<8x128xf32>
    %77 = math.tanh %76 : vector<8x128xf32>
    %cst_37 = arith.constant 5.000000e-01 : f32
    %78 = vector.broadcast %cst_37 : f32 to vector<8x128xf32>
    %79 = arith.mulf %78, %77 : vector<8x128xf32>
    %cst_38 = arith.constant 5.000000e-01 : f32
    %80 = vector.broadcast %cst_38 : f32 to vector<8x128xf32>
    %81 = arith.addf %79, %80 : vector<8x128xf32>
    %82 = arith.mulf %71, %44 : vector<8x128xf32>
    %83 = arith.mulf %63, %73 : vector<8x128xf32>
    %84 = arith.addf %82, %83 : vector<8x128xf32>
    %85 = math.tanh %84 : vector<8x128xf32>
    %86 = arith.mulf %81, %85 : vector<8x128xf32>
    %87 = arith.index_cast %50 : i32 to index
    %c0_39 = arith.constant 0 : index
    %88 = vector.load %arg12[%87, %c0_39] : memref<64x128xf32, #tpu.memory_space<vmem>>, vector<8x128xf32>
    tpu.vector_store %arg12[%87, %c0_39], %86 {strides = array<i32>} : memref<64x128xf32, #tpu.memory_space<vmem>>, vector<8x128xf32>,
    %c2_i32 = arith.constant 2 : i32
    %c8_i32_40 = arith.constant 8 : i32
    %89 = arith.muli %c2_i32, %c8_i32_40 : i32
    %90 = tpu.assume_multiple %89, 8 : i32
    %91 = arith.index_cast %90 : i32 to index
    %c0_41 = arith.constant 0 : index
    %92 = vector.load %arg11[%91, %c0_41] : memref<64x512xf32, #tpu.memory_space<vmem>>, vector<8x512xf32>
    %c0_42 = arith.constant 0 : index
    %c0_43 = arith.constant 0 : index
    %93 = vector.load %arg4[%c0_42, %c0_43] : memref<128x512xf32, #tpu.memory_space<vmem>>, vector<128x512xf32>
    %cst_44 = arith.constant dense<0.000000e+00> : vector<8x512xf32>
    %94 = tpu.matmul %86, %93, %cst_44 {dimension_numbers = #tpu.dot_dimension_numbers<[1], [0], [0], [1], [0, 0, 1, 1], [], []>} : vector<8x128xf32>, vector<128x512xf32>, vector<8x512xf32> -> vector<8x512xf32>
    %95 = arith.addf %92, %94 : vector<8x512xf32>
    %96 = vector.extract_strided_slice %95 {offsets = [0, 0], sizes = [8, 128], strides = [1, 1]} : vector<8x512xf32> to vector<8x128xf32>
    %cst_45 = arith.constant 5.000000e-01 : f32
    %97 = vector.broadcast %cst_45 : f32 to vector<8x128xf32>
    %98 = arith.mulf %97, %96 : vector<8x128xf32>
    %99 = math.tanh %98 : vector<8x128xf32>
    %cst_46 = arith.constant 5.000000e-01 : f32
    %100 = vector.broadcast %cst_46 : f32 to vector<8x128xf32>
    %101 = arith.mulf %100, %99 : vector<8x128xf32>
    %cst_47 = arith.constant 5.000000e-01 : f32
    %102 = vector.broadcast %cst_47 : f32 to vector<8x128xf32>
    %103 = arith.addf %101, %102 : vector<8x128xf32>
    %104 = vector.extract_strided_slice %95 {offsets = [0, 128], sizes = [8, 128], strides = [1, 1]} : vector<8x512xf32> to vector<8x128xf32>
    %cst_48 = arith.constant 5.000000e-01 : f32
    %105 = vector.broadcast %cst_48 : f32 to vector<8x128xf32>
    %106 = arith.mulf %105, %104 : vector<8x128xf32>
    %107 = math.tanh %106 : vector<8x128xf32>
    %cst_49 = arith.constant 5.000000e-01 : f32
    %108 = vector.broadcast %cst_49 : f32 to vector<8x128xf32>
    %109 = arith.mulf %108, %107 : vector<8x128xf32>
    %cst_50 = arith.constant 5.000000e-01 : f32
    %110 = vector.broadcast %cst_50 : f32 to vector<8x128xf32>
    %111 = arith.addf %109, %110 : vector<8x128xf32>
    %112 = vector.extract_strided_slice %95 {offsets = [0, 256], sizes = [8, 128], strides = [1, 1]} : vector<8x512xf32> to vector<8x128xf32>
    %113 = math.tanh %112 : vector<8x128xf32>
    %114 = vector.extract_strided_slice %95 {offsets = [0, 384], sizes = [8, 128], strides = [1, 1]} : vector<8x512xf32> to vector<8x128xf32>
    %cst_51 = arith.constant 5.000000e-01 : f32
    %115 = vector.broadcast %cst_51 : f32 to vector<8x128xf32>
    %116 = arith.mulf %115, %114 : vector<8x128xf32>
    %117 = math.tanh %116 : vector<8x128xf32>
    %cst_52 = arith.constant 5.000000e-01 : f32
    %118 = vector.broadcast %cst_52 : f32 to vector<8x128xf32>
    %119 = arith.mulf %118, %117 : vector<8x128xf32>
    %cst_53 = arith.constant 5.000000e-01 : f32
    %120 = vector.broadcast %cst_53 : f32 to vector<8x128xf32>
    %121 = arith.addf %119, %120 : vector<8x128xf32>
    %122 = arith.mulf %111, %84 : vector<8x128xf32>
    %123 = arith.mulf %103, %113 : vector<8x128xf32>
    %124 = arith.addf %122, %123 : vector<8x128xf32>
    %125 = math.tanh %124 : vector<8x128xf32>
    %126 = arith.mulf %121, %125 : vector<8x128xf32>
    %127 = arith.index_cast %90 : i32 to index
    %c0_54 = arith.constant 0 : index
    %128 = vector.load %arg12[%127, %c0_54] : memref<64x128xf32, #tpu.memory_space<vmem>>, vector<8x128xf32>
    tpu.vector_store %arg12[%127, %c0_54], %126 {strides = array<i32>} : memref<64x128xf32, #tpu.memory_space<vmem>>, vector<8x128xf32>,
    %c3_i32 = arith.constant 3 : i32
    %c8_i32_55 = arith.constant 8 : i32
    %129 = arith.muli %c3_i32, %c8_i32_55 : i32
    %130 = tpu.assume_multiple %129, 8 : i32
    %131 = arith.index_cast %130 : i32 to index
    %c0_56 = arith.constant 0 : index
    %132 = vector.load %arg11[%131, %c0_56] : memref<64x512xf32, #tpu.memory_space<vmem>>, vector<8x512xf32>
    %c0_57 = arith.constant 0 : index
    %c0_58 = arith.constant 0 : index
    %133 = vector.load %arg4[%c0_57, %c0_58] : memref<128x512xf32, #tpu.memory_space<vmem>>, vector<128x512xf32>
    %cst_59 = arith.constant dense<0.000000e+00> : vector<8x512xf32>
    %134 = tpu.matmul %126, %133, %cst_59 {dimension_numbers = #tpu.dot_dimension_numbers<[1], [0], [0], [1], [0, 0, 1, 1], [], []>} : vector<8x128xf32>, vector<128x512xf32>, vector<8x512xf32> -> vector<8x512xf32>
    %135 = arith.addf %132, %134 : vector<8x512xf32>
    %136 = vector.extract_strided_slice %135 {offsets = [0, 0], sizes = [8, 128], strides = [1, 1]} : vector<8x512xf32> to vector<8x128xf32>
    %cst_60 = arith.constant 5.000000e-01 : f32
    %137 = vector.broadcast %cst_60 : f32 to vector<8x128xf32>
    %138 = arith.mulf %137, %136 : vector<8x128xf32>
    %139 = math.tanh %138 : vector<8x128xf32>
    %cst_61 = arith.constant 5.000000e-01 : f32
    %140 = vector.broadcast %cst_61 : f32 to vector<8x128xf32>
    %141 = arith.mulf %140, %139 : vector<8x128xf32>
    %cst_62 = arith.constant 5.000000e-01 : f32
    %142 = vector.broadcast %cst_62 : f32 to vector<8x128xf32>
    %143 = arith.addf %141, %142 : vector<8x128xf32>
    %144 = vector.extract_strided_slice %135 {offsets = [0, 128], sizes = [8, 128], strides = [1, 1]} : vector<8x512xf32> to vector<8x128xf32>
    %cst_63 = arith.constant 5.000000e-01 : f32
    %145 = vector.broadcast %cst_63 : f32 to vector<8x128xf32>
    %146 = arith.mulf %145, %144 : vector<8x128xf32>
    %147 = math.tanh %146 : vector<8x128xf32>
    %cst_64 = arith.constant 5.000000e-01 : f32
    %148 = vector.broadcast %cst_64 : f32 to vector<8x128xf32>
    %149 = arith.mulf %148, %147 : vector<8x128xf32>
    %cst_65 = arith.constant 5.000000e-01 : f32
    %150 = vector.broadcast %cst_65 : f32 to vector<8x128xf32>
    %151 = arith.addf %149, %150 : vector<8x128xf32>
    %152 = vector.extract_strided_slice %135 {offsets = [0, 256], sizes = [8, 128], strides = [1, 1]} : vector<8x512xf32> to vector<8x128xf32>
    %153 = math.tanh %152 : vector<8x128xf32>
    %154 = vector.extract_strided_slice %135 {offsets = [0, 384], sizes = [8, 128], strides = [1, 1]} : vector<8x512xf32> to vector<8x128xf32>
    %cst_66 = arith.constant 5.000000e-01 : f32
    %155 = vector.broadcast %cst_66 : f32 to vector<8x128xf32>
    %156 = arith.mulf %155, %154 : vector<8x128xf32>
    %157 = math.tanh %156 : vector<8x128xf32>
    %cst_67 = arith.constant 5.000000e-01 : f32
    %158 = vector.broadcast %cst_67 : f32 to vector<8x128xf32>
    %159 = arith.mulf %158, %157 : vector<8x128xf32>
    %cst_68 = arith.constant 5.000000e-01 : f32
    %160 = vector.broadcast %cst_68 : f32 to vector<8x128xf32>
    %161 = arith.addf %159, %160 : vector<8x128xf32>
    %162 = arith.mulf %151, %124 : vector<8x128xf32>
    %163 = arith.mulf %143, %153 : vector<8x128xf32>
    %164 = arith.addf %162, %163 : vector<8x128xf32>
    %165 = math.tanh %164 : vector<8x128xf32>
    %166 = arith.mulf %161, %165 : vector<8x128xf32>
    %167 = arith.index_cast %130 : i32 to index
    %c0_69 = arith.constant 0 : index
    %168 = vector.load %arg12[%167, %c0_69] : memref<64x128xf32, #tpu.memory_space<vmem>>, vector<8x128xf32>
    tpu.vector_store %arg12[%167, %c0_69], %166 {strides = array<i32>} : memref<64x128xf32, #tpu.memory_space<vmem>>, vector<8x128xf32>,
    %c4_i32 = arith.constant 4 : i32
    %c8_i32_70 = arith.constant 8 : i32
    %169 = arith.muli %c4_i32, %c8_i32_70 : i32
    %170 = tpu.assume_multiple %169, 8 : i32
    %171 = arith.index_cast %170 : i32 to index
    %c0_71 = arith.constant 0 : index
    %172 = vector.load %arg11[%171, %c0_71] : memref<64x512xf32, #tpu.memory_space<vmem>>, vector<8x512xf32>
    %c0_72 = arith.constant 0 : index
    %c0_73 = arith.constant 0 : index
    %173 = vector.load %arg4[%c0_72, %c0_73] : memref<128x512xf32, #tpu.memory_space<vmem>>, vector<128x512xf32>
    %cst_74 = arith.constant dense<0.000000e+00> : vector<8x512xf32>
    %174 = tpu.matmul %166, %173, %cst_74 {dimension_numbers = #tpu.dot_dimension_numbers<[1], [0], [0], [1], [0, 0, 1, 1], [], []>} : vector<8x128xf32>, vector<128x512xf32>, vector<8x512xf32> -> vector<8x512xf32>
    %175 = arith.addf %172, %174 : vector<8x512xf32>
    %176 = vector.extract_strided_slice %175 {offsets = [0, 0], sizes = [8, 128], strides = [1, 1]} : vector<8x512xf32> to vector<8x128xf32>
    %cst_75 = arith.constant 5.000000e-01 : f32
    %177 = vector.broadcast %cst_75 : f32 to vector<8x128xf32>
    %178 = arith.mulf %177, %176 : vector<8x128xf32>
    %179 = math.tanh %178 : vector<8x128xf32>
    %cst_76 = arith.constant 5.000000e-01 : f32
    %180 = vector.broadcast %cst_76 : f32 to vector<8x128xf32>
    %181 = arith.mulf %180, %179 : vector<8x128xf32>
    %cst_77 = arith.constant 5.000000e-01 : f32
    %182 = vector.broadcast %cst_77 : f32 to vector<8x128xf32>
    %183 = arith.addf %181, %182 : vector<8x128xf32>
    %184 = vector.extract_strided_slice %175 {offsets = [0, 128], sizes = [8, 128], strides = [1, 1]} : vector<8x512xf32> to vector<8x128xf32>
    %cst_78 = arith.constant 5.000000e-01 : f32
    %185 = vector.broadcast %cst_78 : f32 to vector<8x128xf32>
    %186 = arith.mulf %185, %184 : vector<8x128xf32>
    %187 = math.tanh %186 : vector<8x128xf32>
    %cst_79 = arith.constant 5.000000e-01 : f32
    %188 = vector.broadcast %cst_79 : f32 to vector<8x128xf32>
    %189 = arith.mulf %188, %187 : vector<8x128xf32>
    %cst_80 = arith.constant 5.000000e-01 : f32
    %190 = vector.broadcast %cst_80 : f32 to vector<8x128xf32>
    %191 = arith.addf %189, %190 : vector<8x128xf32>
    %192 = vector.extract_strided_slice %175 {offsets = [0, 256], sizes = [8, 128], strides = [1, 1]} : vector<8x512xf32> to vector<8x128xf32>
    %193 = math.tanh %192 : vector<8x128xf32>
    %194 = vector.extract_strided_slice %175 {offsets = [0, 384], sizes = [8, 128], strides = [1, 1]} : vector<8x512xf32> to vector<8x128xf32>
    %cst_81 = arith.constant 5.000000e-01 : f32
    %195 = vector.broadcast %cst_81 : f32 to vector<8x128xf32>
    %196 = arith.mulf %195, %194 : vector<8x128xf32>
    %197 = math.tanh %196 : vector<8x128xf32>
    %cst_82 = arith.constant 5.000000e-01 : f32
    %198 = vector.broadcast %cst_82 : f32 to vector<8x128xf32>
    %199 = arith.mulf %198, %197 : vector<8x128xf32>
    %cst_83 = arith.constant 5.000000e-01 : f32
    %200 = vector.broadcast %cst_83 : f32 to vector<8x128xf32>
    %201 = arith.addf %199, %200 : vector<8x128xf32>
    %202 = arith.mulf %191, %164 : vector<8x128xf32>
    %203 = arith.mulf %183, %193 : vector<8x128xf32>
    %204 = arith.addf %202, %203 : vector<8x128xf32>
    %205 = math.tanh %204 : vector<8x128xf32>
    %206 = arith.mulf %201, %205 : vector<8x128xf32>
    %207 = arith.index_cast %170 : i32 to index
    %c0_84 = arith.constant 0 : index
    %208 = vector.load %arg12[%207, %c0_84] : memref<64x128xf32, #tpu.memory_space<vmem>>, vector<8x128xf32>
    tpu.vector_store %arg12[%207, %c0_84], %206 {strides = array<i32>} : memref<64x128xf32, #tpu.memory_space<vmem>>, vector<8x128xf32>,
    %c5_i32 = arith.constant 5 : i32
    %c8_i32_85 = arith.constant 8 : i32
    %209 = arith.muli %c5_i32, %c8_i32_85 : i32
    %210 = tpu.assume_multiple %209, 8 : i32
    %211 = arith.index_cast %210 : i32 to index
    %c0_86 = arith.constant 0 : index
    %212 = vector.load %arg11[%211, %c0_86] : memref<64x512xf32, #tpu.memory_space<vmem>>, vector<8x512xf32>
    %c0_87 = arith.constant 0 : index
    %c0_88 = arith.constant 0 : index
    %213 = vector.load %arg4[%c0_87, %c0_88] : memref<128x512xf32, #tpu.memory_space<vmem>>, vector<128x512xf32>
    %cst_89 = arith.constant dense<0.000000e+00> : vector<8x512xf32>
    %214 = tpu.matmul %206, %213, %cst_89 {dimension_numbers = #tpu.dot_dimension_numbers<[1], [0], [0], [1], [0, 0, 1, 1], [], []>} : vector<8x128xf32>, vector<128x512xf32>, vector<8x512xf32> -> vector<8x512xf32>
    %215 = arith.addf %212, %214 : vector<8x512xf32>
    %216 = vector.extract_strided_slice %215 {offsets = [0, 0], sizes = [8, 128], strides = [1, 1]} : vector<8x512xf32> to vector<8x128xf32>
    %cst_90 = arith.constant 5.000000e-01 : f32
    %217 = vector.broadcast %cst_90 : f32 to vector<8x128xf32>
    %218 = arith.mulf %217, %216 : vector<8x128xf32>
    %219 = math.tanh %218 : vector<8x128xf32>
    %cst_91 = arith.constant 5.000000e-01 : f32
    %220 = vector.broadcast %cst_91 : f32 to vector<8x128xf32>
    %221 = arith.mulf %220, %219 : vector<8x128xf32>
    %cst_92 = arith.constant 5.000000e-01 : f32
    %222 = vector.broadcast %cst_92 : f32 to vector<8x128xf32>
    %223 = arith.addf %221, %222 : vector<8x128xf32>
    %224 = vector.extract_strided_slice %215 {offsets = [0, 128], sizes = [8, 128], strides = [1, 1]} : vector<8x512xf32> to vector<8x128xf32>
    %cst_93 = arith.constant 5.000000e-01 : f32
    %225 = vector.broadcast %cst_93 : f32 to vector<8x128xf32>
    %226 = arith.mulf %225, %224 : vector<8x128xf32>
    %227 = math.tanh %226 : vector<8x128xf32>
    %cst_94 = arith.constant 5.000000e-01 : f32
    %228 = vector.broadcast %cst_94 : f32 to vector<8x128xf32>
    %229 = arith.mulf %228, %227 : vector<8x128xf32>
    %cst_95 = arith.constant 5.000000e-01 : f32
    %230 = vector.broadcast %cst_95 : f32 to vector<8x128xf32>
    %231 = arith.addf %229, %230 : vector<8x128xf32>
    %232 = vector.extract_strided_slice %215 {offsets = [0, 256], sizes = [8, 128], strides = [1, 1]} : vector<8x512xf32> to vector<8x128xf32>
    %233 = math.tanh %232 : vector<8x128xf32>
    %234 = vector.extract_strided_slice %215 {offsets = [0, 384], sizes = [8, 128], strides = [1, 1]} : vector<8x512xf32> to vector<8x128xf32>
    %cst_96 = arith.constant 5.000000e-01 : f32
    %235 = vector.broadcast %cst_96 : f32 to vector<8x128xf32>
    %236 = arith.mulf %235, %234 : vector<8x128xf32>
    %237 = math.tanh %236 : vector<8x128xf32>
    %cst_97 = arith.constant 5.000000e-01 : f32
    %238 = vector.broadcast %cst_97 : f32 to vector<8x128xf32>
    %239 = arith.mulf %238, %237 : vector<8x128xf32>
    %cst_98 = arith.constant 5.000000e-01 : f32
    %240 = vector.broadcast %cst_98 : f32 to vector<8x128xf32>
    %241 = arith.addf %239, %240 : vector<8x128xf32>
    %242 = arith.mulf %231, %204 : vector<8x128xf32>
    %243 = arith.mulf %223, %233 : vector<8x128xf32>
    %244 = arith.addf %242, %243 : vector<8x128xf32>
    %245 = math.tanh %244 : vector<8x128xf32>
    %246 = arith.mulf %241, %245 : vector<8x128xf32>
    %247 = arith.index_cast %210 : i32 to index
    %c0_99 = arith.constant 0 : index
    %248 = vector.load %arg12[%247, %c0_99] : memref<64x128xf32, #tpu.memory_space<vmem>>, vector<8x128xf32>
    tpu.vector_store %arg12[%247, %c0_99], %246 {strides = array<i32>} : memref<64x128xf32, #tpu.memory_space<vmem>>, vector<8x128xf32>,
    %c6_i32 = arith.constant 6 : i32
    %c8_i32_100 = arith.constant 8 : i32
    %249 = arith.muli %c6_i32, %c8_i32_100 : i32
    %250 = tpu.assume_multiple %249, 8 : i32
    %251 = arith.index_cast %250 : i32 to index
    %c0_101 = arith.constant 0 : index
    %252 = vector.load %arg11[%251, %c0_101] : memref<64x512xf32, #tpu.memory_space<vmem>>, vector<8x512xf32>
    %c0_102 = arith.constant 0 : index
    %c0_103 = arith.constant 0 : index
    %253 = vector.load %arg4[%c0_102, %c0_103] : memref<128x512xf32, #tpu.memory_space<vmem>>, vector<128x512xf32>
    %cst_104 = arith.constant dense<0.000000e+00> : vector<8x512xf32>
    %254 = tpu.matmul %246, %253, %cst_104 {dimension_numbers = #tpu.dot_dimension_numbers<[1], [0], [0], [1], [0, 0, 1, 1], [], []>} : vector<8x128xf32>, vector<128x512xf32>, vector<8x512xf32> -> vector<8x512xf32>
    %255 = arith.addf %252, %254 : vector<8x512xf32>
    %256 = vector.extract_strided_slice %255 {offsets = [0, 0], sizes = [8, 128], strides = [1, 1]} : vector<8x512xf32> to vector<8x128xf32>
    %cst_105 = arith.constant 5.000000e-01 : f32
    %257 = vector.broadcast %cst_105 : f32 to vector<8x128xf32>
    %258 = arith.mulf %257, %256 : vector<8x128xf32>
    %259 = math.tanh %258 : vector<8x128xf32>
    %cst_106 = arith.constant 5.000000e-01 : f32
    %260 = vector.broadcast %cst_106 : f32 to vector<8x128xf32>
    %261 = arith.mulf %260, %259 : vector<8x128xf32>
    %cst_107 = arith.constant 5.000000e-01 : f32
    %262 = vector.broadcast %cst_107 : f32 to vector<8x128xf32>
    %263 = arith.addf %261, %262 : vector<8x128xf32>
    %264 = vector.extract_strided_slice %255 {offsets = [0, 128], sizes = [8, 128], strides = [1, 1]} : vector<8x512xf32> to vector<8x128xf32>
    %cst_108 = arith.constant 5.000000e-01 : f32
    %265 = vector.broadcast %cst_108 : f32 to vector<8x128xf32>
    %266 = arith.mulf %265, %264 : vector<8x128xf32>
    %267 = math.tanh %266 : vector<8x128xf32>
    %cst_109 = arith.constant 5.000000e-01 : f32
    %268 = vector.broadcast %cst_109 : f32 to vector<8x128xf32>
    %269 = arith.mulf %268, %267 : vector<8x128xf32>
    %cst_110 = arith.constant 5.000000e-01 : f32
    %270 = vector.broadcast %cst_110 : f32 to vector<8x128xf32>
    %271 = arith.addf %269, %270 : vector<8x128xf32>
    %272 = vector.extract_strided_slice %255 {offsets = [0, 256], sizes = [8, 128], strides = [1, 1]} : vector<8x512xf32> to vector<8x128xf32>
    %273 = math.tanh %272 : vector<8x128xf32>
    %274 = vector.extract_strided_slice %255 {offsets = [0, 384], sizes = [8, 128], strides = [1, 1]} : vector<8x512xf32> to vector<8x128xf32>
    %cst_111 = arith.constant 5.000000e-01 : f32
    %275 = vector.broadcast %cst_111 : f32 to vector<8x128xf32>
    %276 = arith.mulf %275, %274 : vector<8x128xf32>
    %277 = math.tanh %276 : vector<8x128xf32>
    %cst_112 = arith.constant 5.000000e-01 : f32
    %278 = vector.broadcast %cst_112 : f32 to vector<8x128xf32>
    %279 = arith.mulf %278, %277 : vector<8x128xf32>
    %cst_113 = arith.constant 5.000000e-01 : f32
    %280 = vector.broadcast %cst_113 : f32 to vector<8x128xf32>
    %281 = arith.addf %279, %280 : vector<8x128xf32>
    %282 = arith.mulf %271, %244 : vector<8x128xf32>
    %283 = arith.mulf %263, %273 : vector<8x128xf32>
    %284 = arith.addf %282, %283 : vector<8x128xf32>
    %285 = math.tanh %284 : vector<8x128xf32>
    %286 = arith.mulf %281, %285 : vector<8x128xf32>
    %287 = arith.index_cast %250 : i32 to index
    %c0_114 = arith.constant 0 : index
    %288 = vector.load %arg12[%287, %c0_114] : memref<64x128xf32, #tpu.memory_space<vmem>>, vector<8x128xf32>
    tpu.vector_store %arg12[%287, %c0_114], %286 {strides = array<i32>} : memref<64x128xf32, #tpu.memory_space<vmem>>, vector<8x128xf32>,
    %c7_i32 = arith.constant 7 : i32
    %c8_i32_115 = arith.constant 8 : i32
    %289 = arith.muli %c7_i32, %c8_i32_115 : i32
    %290 = tpu.assume_multiple %289, 8 : i32
    %291 = arith.index_cast %290 : i32 to index
    %c0_116 = arith.constant 0 : index
    %292 = vector.load %arg11[%291, %c0_116] : memref<64x512xf32, #tpu.memory_space<vmem>>, vector<8x512xf32>
    %c0_117 = arith.constant 0 : index
    %c0_118 = arith.constant 0 : index
    %293 = vector.load %arg4[%c0_117, %c0_118] : memref<128x512xf32, #tpu.memory_space<vmem>>, vector<128x512xf32>
    %cst_119 = arith.constant dense<0.000000e+00> : vector<8x512xf32>
    %294 = tpu.matmul %286, %293, %cst_119 {dimension_numbers = #tpu.dot_dimension_numbers<[1], [0], [0], [1], [0, 0, 1, 1], [], []>} : vector<8x128xf32>, vector<128x512xf32>, vector<8x512xf32> -> vector<8x512xf32>
    %295 = arith.addf %292, %294 : vector<8x512xf32>
    %296 = vector.extract_strided_slice %295 {offsets = [0, 0], sizes = [8, 128], strides = [1, 1]} : vector<8x512xf32> to vector<8x128xf32>
    %cst_120 = arith.constant 5.000000e-01 : f32
    %297 = vector.broadcast %cst_120 : f32 to vector<8x128xf32>
    %298 = arith.mulf %297, %296 : vector<8x128xf32>
    %299 = math.tanh %298 : vector<8x128xf32>
    %cst_121 = arith.constant 5.000000e-01 : f32
    %300 = vector.broadcast %cst_121 : f32 to vector<8x128xf32>
    %301 = arith.mulf %300, %299 : vector<8x128xf32>
    %cst_122 = arith.constant 5.000000e-01 : f32
    %302 = vector.broadcast %cst_122 : f32 to vector<8x128xf32>
    %303 = arith.addf %301, %302 : vector<8x128xf32>
    %304 = vector.extract_strided_slice %295 {offsets = [0, 128], sizes = [8, 128], strides = [1, 1]} : vector<8x512xf32> to vector<8x128xf32>
    %cst_123 = arith.constant 5.000000e-01 : f32
    %305 = vector.broadcast %cst_123 : f32 to vector<8x128xf32>
    %306 = arith.mulf %305, %304 : vector<8x128xf32>
    %307 = math.tanh %306 : vector<8x128xf32>
    %cst_124 = arith.constant 5.000000e-01 : f32
    %308 = vector.broadcast %cst_124 : f32 to vector<8x128xf32>
    %309 = arith.mulf %308, %307 : vector<8x128xf32>
    %cst_125 = arith.constant 5.000000e-01 : f32
    %310 = vector.broadcast %cst_125 : f32 to vector<8x128xf32>
    %311 = arith.addf %309, %310 : vector<8x128xf32>
    %312 = vector.extract_strided_slice %295 {offsets = [0, 256], sizes = [8, 128], strides = [1, 1]} : vector<8x512xf32> to vector<8x128xf32>
    %313 = math.tanh %312 : vector<8x128xf32>
    %314 = vector.extract_strided_slice %295 {offsets = [0, 384], sizes = [8, 128], strides = [1, 1]} : vector<8x512xf32> to vector<8x128xf32>
    %cst_126 = arith.constant 5.000000e-01 : f32
    %315 = vector.broadcast %cst_126 : f32 to vector<8x128xf32>
    %316 = arith.mulf %315, %314 : vector<8x128xf32>
    %317 = math.tanh %316 : vector<8x128xf32>
    %cst_127 = arith.constant 5.000000e-01 : f32
    %318 = vector.broadcast %cst_127 : f32 to vector<8x128xf32>
    %319 = arith.mulf %318, %317 : vector<8x128xf32>
    %cst_128 = arith.constant 5.000000e-01 : f32
    %320 = vector.broadcast %cst_128 : f32 to vector<8x128xf32>
    %321 = arith.addf %319, %320 : vector<8x128xf32>
    %322 = arith.mulf %311, %284 : vector<8x128xf32>
    %323 = arith.mulf %303, %313 : vector<8x128xf32>
    %324 = arith.addf %322, %323 : vector<8x128xf32>
    %325 = math.tanh %324 : vector<8x128xf32>
    %326 = arith.mulf %321, %325 : vector<8x128xf32>
    %327 = arith.index_cast %290 : i32 to index
    %c0_129 = arith.constant 0 : index
    %328 = vector.load %arg12[%327, %c0_129] : memref<64x128xf32, #tpu.memory_space<vmem>>, vector<8x128xf32>
    tpu.vector_store %arg12[%327, %c0_129], %326 {strides = array<i32>} : memref<64x128xf32, #tpu.memory_space<vmem>>, vector<8x128xf32>,
    %c8_i32_130 = arith.constant 8 : i32
    %c0_131 = arith.constant 0 : index
    %c0_132 = arith.constant 0 : index
    %329 = vector.load %arg9[%c0_131, %c0_132] : memref<8x128xf32, #tpu.memory_space<vmem>>, vector<8x128xf32>
    tpu.vector_store %arg9[%c0_131, %c0_132], %326 {strides = array<i32>} : memref<8x128xf32, #tpu.memory_space<vmem>>, vector<8x128xf32>,
    %c0_133 = arith.constant 0 : index
    %c0_134 = arith.constant 0 : index
    %330 = vector.load %arg10[%c0_133, %c0_134] : memref<8x128xf32, #tpu.memory_space<vmem>>, vector<8x128xf32>
    tpu.vector_store %arg10[%c0_133, %c0_134], %324 {strides = array<i32>} : memref<8x128xf32, #tpu.memory_space<vmem>>, vector<8x128xf32>,
    %c0_135 = arith.constant 0 : index
    %c0_136 = arith.constant 0 : index
    %331 = vector.load %arg12[%c0_135, %c0_136] : memref<64x128xf32, #tpu.memory_space<vmem>>, vector<64x128xf32>
    %c0_137 = arith.constant 0 : index
    %c0_138 = arith.constant 0 : index
    %332 = vector.load %arg6[%c0_137, %c0_138] : memref<128x3xf32, #tpu.memory_space<vmem>>, vector<128x3xf32>
    %cst_139 = arith.constant dense<0.000000e+00> : vector<64x3xf32>
    %333 = tpu.matmul %331, %332, %cst_139 {dimension_numbers = #tpu.dot_dimension_numbers<[1], [0], [0], [1], [0, 0, 1, 1], [], []>} : vector<64x128xf32>, vector<128x3xf32>, vector<64x3xf32> -> vector<64x3xf32>
    %c0_140 = arith.constant 0 : index
    %c0_141 = arith.constant 0 : index
    %334 = vector.load %arg7[%c0_140, %c0_141] : memref<1x3xf32, #tpu.memory_space<vmem>>, vector<1x3xf32>
    %335 = vector.broadcast %334 : vector<1x3xf32> to vector<64x3xf32>
    %336 = arith.addf %333, %335 : vector<64x3xf32>
    %c0_142 = arith.constant 0 : index
    %c0_143 = arith.constant 0 : index
    %337 = vector.load %arg8[%c0_142, %c0_143] : memref<64x3xf32, #tpu.memory_space<vmem>>, vector<64x3xf32>
    tpu.vector_store %arg8[%c0_142, %c0_143], %336 {strides = array<i32>} : memref<64x3xf32, #tpu.memory_space<vmem>>, vector<64x3xf32>,
    return
  }
}

</mosaic_0001>

<llo_original>
// kernel: smiles_generator_forward.1
$region0: #{smiles_generator_forward.1}
  #allocation0 [shape = 'u32[]', space=smem, size = 0x4, offset = 0x4, fixed_abs, tag = 'smem constant byte address 0x4 - core index']
  #allocation1 [shape = 'u32[144,128]{1,0:T(1,128)}', space=vmem, size = 0x12000, scoped, tag = 'internal scratch']
  #allocation2 [shape = 'f32[64,512]{1,0:T(8,128)}', space=vmem, size = 0x20000, scoped, tag = 'scratch operand']
  #allocation3 [shape = 'f32[64,128]{1,0:T(8,128)}', space=vmem, size = 0x8000, scoped, tag = 'scratch operand']
  %s0 = inlined_call_operand.hbm [shape: f32[64,8], index: 0, kind: input, shape index: {}]
  %s1 = inlined_call_operand.hbm [shape: f32[8,128], index: 1, kind: input, shape index: {}]
  %s2 = inlined_call_operand.hbm [shape: f32[8,128], index: 2, kind: input, shape index: {}]
  %s3 = inlined_call_operand.hbm [shape: f32[8,512], index: 3, kind: input, shape index: {}]
  %s4 = inlined_call_operand.hbm [shape: f32[128,512], index: 4, kind: input, shape index: {}]
  %s5 = inlined_call_operand.hbm [shape: f32[1,512], index: 5, kind: input, shape index: {}]
  %s6 = inlined_call_operand.hbm [shape: f32[128,3], index: 6, kind: input, shape index: {}]
  %s7 = inlined_call_operand.hbm [shape: f32[1,3], index: 7, kind: input, shape index: {}]
  %s8 = inlined_call_operand.hbm [shape: f32[64,3], index: 8, kind: output, shape index: {0}]
  %s9 = inlined_call_operand.hbm [shape: f32[8,128], index: 9, kind: output, shape index: {1}]
  %s10 = inlined_call_operand.hbm [shape: f32[8,128], index: 10, kind: output, shape index: {2}]
  %11 = xla_tuple %s8, %s9, %s10
  %s12 = sld [smem:[#allocation0]]
  $region90: #{smiles_generator_forward.1} parent=0
    _
  %s14 = ssub.s32 1, %s12
  %s15 = scalar_select 0, %s14, %s12
  $region1: #{smiles_generator_forward.1} parent=0
    #allocation4 [shape = 'u8[32768]{0}', space=vmem, size = 0x8000, scoped, tag = 'input window, operand 0, single buffered']
    #allocation5 [shape = 's32[1]{0}', space=sflag, size = 0x4, scoped, tag = 'scoped memory for smiles_generator_forward.1']
    #allocation6 [shape = 's32[1]{0}', space=sflag, size = 0x4, scoped, tag = 'scoped memory for smiles_generator_forward.1']
    #allocation7 [shape = 'u8[4096]{0}', space=vmem, size = 0x1000, scoped, tag = 'input window, operand 1, single buffered']
    #allocation8 [shape = 's32[1]{0}', space=sflag, size = 0x4, scoped, tag = 'scoped memory for smiles_generator_forward.1']
    #allocation9 [shape = 'u8[4096]{0}', space=vmem, size = 0x1000, scoped, tag = 'input window, operand 2, single buffered']
    #allocation10 [shape = 'u8[16384]{0}', space=vmem, size = 0x4000, scoped, tag = 'input window, operand 3, single buffered']
    #allocation11 [shape = 's32[1]{0}', space=sflag, size = 0x4, scoped, tag = 'scoped memory for smiles_generator_forward.1']
    #allocation12 [shape = 'u8[262144]{0}', space=vmem, size = 0x40000, scoped, tag = 'input window, operand 4, single buffered']
    #allocation13 [shape = 'u8[2048]{0}', space=vmem, size = 0x800, scoped, tag = 'input window, operand 5, single buffered']
    #allocation14 [shape = 's32[1]{0}', space=sflag, size = 0x4, scoped, tag = 'scoped memory for smiles_generator_forward.1']
    #allocation15 [shape = 'u8[65536]{0}', space=vmem, size = 0x10000, scoped, tag = 'input window, operand 6, single buffered']
    #allocation16 [shape = 'u8[512]{0}', space=vmem, size = 0x400, scoped, tag = 'input window, operand 7, single buffered']
    #allocation17 [shape = 's32[1]{0}', space=sflag, size = 0x4, scoped, tag = 'scoped memory for smiles_generator_forward.1']
    #allocation18 [shape = 'u8[32768]{0}', space=vmem, size = 0x8000, scoped, tag = 'output window, operand 0, single buffered']
    #allocation19 [shape = 'u8[4096]{0}', space=vmem, size = 0x1000, scoped, tag = 'output window, operand 1, single buffered']
    #allocation20 [shape = 's32[1]{0}', space=sflag, size = 0x4, scoped, tag = 'scoped memory for smiles_generator_forward.1']
    #allocation21 [shape = 'u8[4096]{0}', space=vmem, size = 0x1000, scoped, tag = 'output window, operand 2, single buffered']
    %16 = vsyncpa [#allocation5], 0
    %17 = vsyncpa [#allocation8], 0
    %18 = vsyncpa [#allocation11], 0
    %19 = vsyncpa [#allocation14], 0
    %20 = vsyncpa [#allocation17], 0
    %21 = vsyncpa [#allocation6], 0
    %22 = vsyncpa [#allocation20], 0
    // Predicated region
    $region2: #{smiles_generator_forward.1} parent=1 // pred_check
      _
    $region3: #{smiles_generator_forward.1} parent=1 // pred_check_branch
      %24 = sbr.rel (0) target = $region5
    $region4: #{smiles_generator_forward.1} parent=1 // pred_region
      %s26 = ssub.s32 1024, 1024
      %27 = vsyncadd [#allocation5], %s26
      %s28 = sshll.u32 [#allocation4], 4
      %s29 = int_to_ptr.vmem [resolvable:$true] %s28
      %34 = dma.hbm_to_vmem [thread:$0]  %s0, 1024, %s29, [#allocation5], 128, 128, 8
    $region5: #{smiles_generator_forward.1} parent=1 // pred_fallthru
      _
    // Predicated region
    $region6: #{smiles_generator_forward.1} parent=1 // pred_check
      _
    $region7: #{smiles_generator_forward.1} parent=1 // pred_check_branch
      %36 = sbr.rel (0) target = $region9
    $region8: #{smiles_generator_forward.1} parent=1 // pred_region
      %s38 = ssub.s32 128, 128
      %39 = vsyncadd [#allocation8], %s38
      %s41 = sshll.u32 [#allocation7], 4
      %s42 = int_to_ptr.vmem [resolvable:$true] %s41
      %44 = dma.hbm_to_vmem [thread:$0]  %s1, 128, %s42, [#allocation8]
    $region9: #{smiles_generator_forward.1} parent=1 // pred_fallthru
      _
    // Predicated region
    $region10: #{smiles_generator_forward.1} parent=1 // pred_check
      _
    $region11: #{smiles_generator_forward.1} parent=1 // pred_check_branch
      %46 = sbr.rel (0) target = $region13
    $region12: #{smiles_generator_forward.1} parent=1 // pred_region
      %s48 = ssub.s32 128, 128
      %49 = vsyncadd [#allocation8], %s48
      %s51 = sshll.u32 [#allocation9], 4
      %s52 = int_to_ptr.vmem [resolvable:$true] %s51
      %54 = dma.hbm_to_vmem [thread:$0]  %s2, 128, %s52, [#allocation8]
    $region13: #{smiles_generator_forward.1} parent=1 // pred_fallthru
      _
    // Predicated region
    $region14: #{smiles_generator_forward.1} parent=1 // pred_check
      _
    $region15: #{smiles_generator_forward.1} parent=1 // pred_check_branch
      %56 = sbr.rel (0) target = $region17
    $region16: #{smiles_generator_forward.1} parent=1 // pred_region
      %s58 = ssub.s32 512, 512
      %59 = vsyncadd [#allocation11], %s58
      %s61 = sshll.u32 [#allocation10], 4
      %s62 = int_to_ptr.vmem [resolvable:$true] %s61
      %64 = dma.hbm_to_vmem [thread:$0]  %s3, 512, %s62, [#allocation11]
    $region17: #{smiles_generator_forward.1} parent=1 // pred_fallthru
      _
    // Predicated region
    $region18: #{smiles_generator_forward.1} parent=1 // pred_check
      _
    $region19: #{smiles_generator_forward.1} parent=1 // pred_check_branch
      %66 = sbr.rel (0) target = $region21
    $region20: #{smiles_generator_forward.1} parent=1 // pred_region
      %s68 = ssub.s32 8192, 8192
      %69 = vsyncadd [#allocation11], %s68
      %s70 = sshll.u32 [#allocation12], 4
      %s71 = int_to_ptr.vmem [resolvable:$true] %s70
      %76 = dma.hbm_to_vmem [thread:$0]  %s4, 8192, %s71, [#allocation11], 512, 512, 32
    $region21: #{smiles_generator_forward.1} parent=1 // pred_fallthru
      _
    // Predicated region
    $region22: #{smiles_generator_forward.1} parent=1 // pred_check
      _
    $region23: #{smiles_generator_forward.1} parent=1 // pred_check_branch
      %78 = sbr.rel (0) target = $region25
    $region24: #{smiles_generator_forward.1} parent=1 // pred_region
      %s80 = ssub.s32 64, 64
      %81 = vsyncadd [#allocation14], %s80
      %s83 = sshll.u32 [#allocation13], 4
      %s84 = int_to_ptr.vmem [resolvable:$true] %s83
      %86 = dma.hbm_to_vmem [thread:$0]  %s5, 64, %s84, [#allocation14]
    $region25: #{smiles_generator_forward.1} parent=1 // pred_fallthru
      _
    // Predicated region
    $region26: #{smiles_generator_forward.1} parent=1 // pred_check
      _
    $region27: #{smiles_generator_forward.1} parent=1 // pred_check_branch
      %88 = sbr.rel (0) target = $region29
    $region28: #{smiles_generator_forward.1} parent=1 // pred_region
      %s90 = ssub.s32 2048, 2048
      %91 = vsyncadd [#allocation14], %s90
      %s92 = sshll.u32 [#allocation15], 4
      %s93 = int_to_ptr.vmem [resolvable:$true] %s92
      %98 = dma.hbm_to_vmem [thread:$0]  %s6, 2048, %s93, [#allocation14], 128, 128, 8
    $region29: #{smiles_generator_forward.1} parent=1 // pred_fallthru
      _
    // Predicated region
    $region30: #{smiles_generator_forward.1} parent=1 // pred_check
      _
    $region31: #{smiles_generator_forward.1} parent=1 // pred_check_branch
      %100 = sbr.rel (0) target = $region33
    $region32: #{smiles_generator_forward.1} parent=1 // pred_region
      %s102 = ssub.s32 16, 16
      %103 = vsyncadd [#allocation17], %s102
      %s105 = sshll.u32 [#allocation16], 4
      %s106 = int_to_ptr.vmem [resolvable:$true] %s105
      %108 = dma.hbm_to_vmem [thread:$0]  %s7, 16, %s106, [#allocation17]
    $region33: #{smiles_generator_forward.1} parent=1 // pred_fallthru
      _
    // Predicated region
    $region34: #{smiles_generator_forward.1} parent=1 // pred_check
      _
    $region35: #{smiles_generator_forward.1} parent=1 // pred_check_branch
      %110 = sbr.rel (0) target = $region37
    $region36: #{smiles_generator_forward.1} parent=1 // pred_region
      %111 = dma.done [#allocation5], 1024
    $region37: #{smiles_generator_forward.1} parent=1 // pred_fallthru
      _
    // Predicated region
    $region38: #{smiles_generator_forward.1} parent=1 // pred_check
      _
    $region39: #{smiles_generator_forward.1} parent=1 // pred_check_branch
      %113 = sbr.rel (0) target = $region41
    $region40: #{smiles_generator_forward.1} parent=1 // pred_region
      %114 = dma.done [#allocation8], 128
    $region41: #{smiles_generator_forward.1} parent=1 // pred_fallthru
      _
    // Predicated region
    $region42: #{smiles_generator_forward.1} parent=1 // pred_check
      _
    $region43: #{smiles_generator_forward.1} parent=1 // pred_check_branch
      %116 = sbr.rel (0) target = $region45
    $region44: #{smiles_generator_forward.1} parent=1 // pred_region
      %117 = dma.done [#allocation8], 128
    $region45: #{smiles_generator_forward.1} parent=1 // pred_fallthru
      _
    // Predicated region
    $region46: #{smiles_generator_forward.1} parent=1 // pred_check
      _
    $region47: #{smiles_generator_forward.1} parent=1 // pred_check_branch
      %119 = sbr.rel (0) target = $region49
    $region48: #{smiles_generator_forward.1} parent=1 // pred_region
      %120 = dma.done [#allocation11], 512
    $region49: #{smiles_generator_forward.1} parent=1 // pred_fallthru
      _
    // Predicated region
    $region50: #{smiles_generator_forward.1} parent=1 // pred_check
      _
    $region51: #{smiles_generator_forward.1} parent=1 // pred_check_branch
      %122 = sbr.rel (0) target = $region53
    $region52: #{smiles_generator_forward.1} parent=1 // pred_region
      %123 = dma.done [#allocation11], 8192
    $region53: #{smiles_generator_forward.1} parent=1 // pred_fallthru
      _
    // Predicated region
    $region54: #{smiles_generator_forward.1} parent=1 // pred_check
      _
    $region55: #{smiles_generator_forward.1} parent=1 // pred_check_branch
      %125 = sbr.rel (0) target = $region57
    $region56: #{smiles_generator_forward.1} parent=1 // pred_region
      %126 = dma.done [#allocation14], 64
    $region57: #{smiles_generator_forward.1} parent=1 // pred_fallthru
      _
    // Predicated region
    $region58: #{smiles_generator_forward.1} parent=1 // pred_check
      _
    $region59: #{smiles_generator_forward.1} parent=1 // pred_check_branch
      %128 = sbr.rel (0) target = $region61
    $region60: #{smiles_generator_forward.1} parent=1 // pred_region
      %129 = dma.done [#allocation14], 2048
    $region61: #{smiles_generator_forward.1} parent=1 // pred_fallthru
      _
    // Predicated region
    $region62: #{smiles_generator_forward.1} parent=1 // pred_check
      _
    $region63: #{smiles_generator_forward.1} parent=1 // pred_check_branch
      %131 = sbr.rel (0) target = $region65
    $region64: #{smiles_generator_forward.1} parent=1 // pred_region
      %132 = dma.done [#allocation17], 16
    $region65: #{smiles_generator_forward.1} parent=1 // pred_fallthru
      _
    %v133 = vld [vmem:[#allocation4] sm:$0xff]
    %v134 = vld [vmem:[#allocation4 + $0x8] sm:$0xff]
    %v135 = vld [vmem:[#allocation4 + $0x10] sm:$0xff]
    %v136 = vld [vmem:[#allocation4 + $0x18] sm:$0xff]
    %v137 = vld [vmem:[#allocation4 + $0x20] sm:$0xff]
    %v138 = vld [vmem:[#allocation4 + $0x28] sm:$0xff]
    %v139 = vld [vmem:[#allocation4 + $0x30] sm:$0xff]
    %v140 = vld [vmem:[#allocation4 + $0x38] sm:$0xff]
    %v141 = vld [vmem:[#allocation10] sm:$0xff]
    %v142 = vld [vmem:[#allocation10 + $0x8] sm:$0xff]
    %v143 = vld [vmem:[#allocation10 + $0x10] sm:$0xff]
    %v144 = vld [vmem:[#allocation10 + $0x18] sm:$0xff]
    %v145 = vld [vmem:[#allocation13] sm:$0xf]
    %v147 = vlaneseq
    %v148 = vshrl.u32 %v147, 7
    %v149 = vsub.s32 0, %v148
    %v150 = vrot.slane %v145, %v149
    %v151 = vlaneseq
    %v152 = vshrl.u32 %v151, 7
    %v153 = vsub.s32 1, %v152
    %v154 = vrot.slane %v145, %v153
    %v155 = vlaneseq
    %v156 = vshrl.u32 %v155, 7
    %v157 = vsub.s32 2, %v156
    %v158 = vrot.slane %v145, %v157
    %v159 = vlaneseq
    %v160 = vshrl.u32 %v159, 7
    %v161 = vsub.s32 3, %v160
    %v162 = vrot.slane %v145, %v161
    %vm167 = vcmask 64512
    %v169 = vsel %vm167, %v133, 0
    %v172 = vsel %vm167, %v134, 0
    %v175 = vsel %vm167, %v135, 0
    %v178 = vsel %vm167, %v136, 0
    %v181 = vsel %vm167, %v137, 0
    %v184 = vsel %vm167, %v138, 0
    %v187 = vsel %vm167, %v139, 0
    %v190 = vsel %vm167, %v140, 0
    %192 = vmatprep.subr.mxu0 %v142
    %193 = vmatpush1.msra.mxu0 %v141
    %194 = vmatprep.subr.mxu0 0.0
    %195 = vmatpush1.msra.mxu0 0.0
    %196 = vmatprep.subr.mxu0 0.0
    %197 = vmatpush1.msra.mxu0 0.0
    %198 = vmatprep.subr.mxu0 0.0
    %199 = vmatpush1.msra.mxu0 0.0
    %200 = vmatprep.subr.mxu0 0.0
    %201 = vmatpush1.msra.mxu0 0.0
    %202 = vmatprep.subr.mxu0 0.0
    %203 = vmatpush1.msra.mxu0 0.0
    %204 = vmatprep.subr.mxu0 0.0
    %205 = vmatpush1.msra.mxu0 0.0
    %206 = vmatprep.subr.mxu0 0.0
    %207 = vmatpush1.msra.mxu0 0.0
    %208 = vmatprep.subr.mxu0 0.0
    %209 = vmatpush1.msra.mxu0 0.0
    %210 = vmatprep.subr.mxu0 0.0
    %211 = vmatpush1.msra.mxu0 0.0
    %212 = vmatprep.subr.mxu0 0.0
    %213 = vmatpush1.msra.mxu0 0.0
    %214 = vmatprep.subr.mxu0 0.0
    %215 = vmatpush1.msra.mxu0 0.0
    %216 = vmatprep.subr.mxu0 0.0
    %217 = vmatpush1.msra.mxu0 0.0
    %218 = vmatprep.subr.mxu0 0.0
    %219 = vmatpush1.msra.mxu0 0.0
    %220 = vmatprep.subr.mxu0 0.0
    %221 = vmatpush1.msra.mxu0 0.0
    %222 = vmatprep.subr.mxu0 0.0
    %223 = vmatpush1.msra.mxu0 0.0
    %224 = vmatprep.subr.mxu0 0.0
    %225 = vmatpush1.msra.mxu0 0.0
    %226 = vmatprep.subr.mxu0 0.0
    %227 = vmatpush1.msra.mxu0 0.0
    %228 = vmatprep.subr.mxu0 0.0
    %229 = vmatpush1.msra.mxu0 0.0
    %230 = vmatprep.subr.mxu0 0.0
    %231 = vmatpush1.msra.mxu0 0.0
    %232 = vmatprep.subr.mxu0 0.0
    %233 = vmatpush1.msra.mxu0 0.0
    %234 = vmatprep.subr.mxu0 0.0
    %235 = vmatpush1.msra.mxu0 0.0
    %236 = vmatprep.subr.mxu0 0.0
    %237 = vmatpush1.msra.mxu0 0.0
    %238 = vmatprep.subr.mxu0 0.0
    %239 = vmatpush1.msra.mxu0 0.0
    %240 = vmatprep.subr.mxu0 0.0
    %241 = vmatpush1.msra.mxu0 0.0
    %242 = vmatprep.subr.mxu0 0.0
    %243 = vmatpush1.msra.mxu0 0.0
    %244 = vmatprep.subr.mxu0 0.0
    %245 = vmatpush1.msra.mxu0 0.0
    %246 = vmatprep.subr.mxu0 0.0
    %247 = vmatpush1.msra.mxu0 0.0
    %248 = vmatprep.subr.mxu0 0.0
    %249 = vmatpush1.msra.mxu0 0.0
    %250 = vmatprep.subr.mxu0 0.0
    %251 = vmatpush1.msra.mxu0 0.0
    %252 = vmatprep.subr.mxu0 0.0
    %253 = vmatpush1.msra.mxu0 0.0
    %254 = vmatprep.subr.mxu0 0.0
    %255 = vmatpush1.msra.mxu0 0.0
    %256 = vmatprep.mubr.f32.mxu0 0.0
    %257 = vmatmul.mubr.f32.gmra.mrb[0].mxu0 %v169
    %v258 = vpop.f32.mrb[0].mxu0
    %v259 = vadd.f32 %v150, %v258
    %v260 = vpop.f32.mrb[0].mxu0
    %v261 = vadd.f32 %v154, %v260
    %262 = vmatprep.mubr.f32.mxu0 0.0
    %263 = vmatmul.mubr.f32.gmra.mrb[0].mxu0 %v172
    %v264 = vpop.f32.mrb[0].mxu0
    %v265 = vadd.f32 %v150, %v264
    %v266 = vpop.f32.mrb[0].mxu0
    %v267 = vadd.f32 %v154, %v266
    %268 = vmatprep.mubr.f32.mxu0 0.0
    %269 = vmatmul.mubr.f32.gmra.mrb[0].mxu0 %v175
    %v270 = vpop.f32.mrb[0].mxu0
    %v271 = vadd.f32 %v150, %v270
    %v272 = vpop.f32.mrb[0].mxu0
    %v273 = vadd.f32 %v154, %v272
    %274 = vmatprep.mubr.f32.mxu0 0.0
    %275 = vmatmul.mubr.f32.gmra.mrb[0].mxu0 %v178
    %v276 = vpop.f32.mrb[0].mxu0
    %v277 = vadd.f32 %v150, %v276
    %v278 = vpop.f32.mrb[0].mxu0
    %v279 = vadd.f32 %v154, %v278
    %280 = vmatprep.mubr.f32.mxu0 0.0
    %281 = vmatmul.mubr.f32.gmra.mrb[0].mxu0 %v181
    %v282 = vpop.f32.mrb[0].mxu0
    %v283 = vadd.f32 %v150, %v282
    %v284 = vpop.f32.mrb[0].mxu0
    %v285 = vadd.f32 %v154, %v284
    %286 = vmatprep.mubr.f32.mxu0 0.0
    %287 = vmatmul.mubr.f32.gmra.mrb[0].mxu0 %v184
    %v288 = vpop.f32.mrb[0].mxu0
    %v289 = vadd.f32 %v150, %v288
    %v290 = vpop.f32.mrb[0].mxu0
    %v291 = vadd.f32 %v154, %v290
    %292 = vmatprep.mubr.f32.mxu0 0.0
    %293 = vmatmul.mubr.f32.gmra.mrb[0].mxu0 %v187
    %v294 = vpop.f32.mrb[0].mxu0
    %v295 = vadd.f32 %v150, %v294
    %v296 = vpop.f32.mrb[0].mxu0
    %v297 = vadd.f32 %v154, %v296
    %298 = vmatprep.mubr.f32.mxu0 0.0
    %299 = vmatmul.mubr.f32.gmra.mrb[0].mxu0 %v190
    %v300 = vpop.f32.mrb[0].mxu0
    %v301 = vadd.f32 %v150, %v300
    %v302 = vpop.f32.mrb[0].mxu0
    %v303 = vadd.f32 %v154, %v302
    %304 = vdwg.mxu0
    %305 = vmatprep.subr.mxu0 %v144
    %306 = vmatpush1.msra.mxu0 %v143
    %307 = vmatprep.subr.mxu0 0.0
    %308 = vmatpush1.msra.mxu0 0.0
    %309 = vmatprep.subr.mxu0 0.0
    %310 = vmatpush1.msra.mxu0 0.0
    %311 = vmatprep.subr.mxu0 0.0
    %312 = vmatpush1.msra.mxu0 0.0
    %313 = vmatprep.subr.mxu0 0.0
    %314 = vmatpush1.msra.mxu0 0.0
    %315 = vmatprep.subr.mxu0 0.0
    %316 = vmatpush1.msra.mxu0 0.0
    %317 = vmatprep.subr.mxu0 0.0
    %318 = vmatpush1.msra.mxu0 0.0
    %319 = vmatprep.subr.mxu0 0.0
    %320 = vmatpush1.msra.mxu0 0.0
    %321 = vmatprep.subr.mxu0 0.0
    %322 = vmatpush1.msra.mxu0 0.0
    %323 = vmatprep.subr.mxu0 0.0
    %324 = vmatpush1.msra.mxu0 0.0
    %325 = vmatprep.subr.mxu0 0.0
    %326 = vmatpush1.msra.mxu0 0.0
    %327 = vmatprep.subr.mxu0 0.0
    %328 = vmatpush1.msra.mxu0 0.0
    %329 = vmatprep.subr.mxu0 0.0
    %330 = vmatpush1.msra.mxu0 0.0
    %331 = vmatprep.subr.mxu0 0.0
    %332 = vmatpush1.msra.mxu0 0.0
    %333 = vmatprep.subr.mxu0 0.0
    %334 = vmatpush1.msra.mxu0 0.0
    %335 = vmatprep.subr.mxu0 0.0
    %336 = vmatpush1.msra.mxu0 0.0
    %337 = vmatprep.subr.mxu0 0.0
    %338 = vmatpush1.msra.mxu0 0.0
    %339 = vmatprep.subr.mxu0 0.0
    %340 = vmatpush1.msra.mxu0 0.0
    %341 = vmatprep.subr.mxu0 0.0
    %342 = vmatpush1.msra.mxu0 0.0
    %343 = vmatprep.subr.mxu0 0.0
    %344 = vmatpush1.msra.mxu0 0.0
    %345 = vmatprep.subr.mxu0 0.0
    %346 = vmatpush1.msra.mxu0 0.0
    %347 = vmatprep.subr.mxu0 0.0
    %348 = vmatpush1.msra.mxu0 0.0
    %349 = vmatprep.subr.mxu0 0.0
    %350 = vmatpush1.msra.mxu0 0.0
    %351 = vmatprep.subr.mxu0 0.0
    %352 = vmatpush1.msra.mxu0 0.0
    %353 = vmatprep.subr.mxu0 0.0
    %354 = vmatpush1.msra.mxu0 0.0
    %355 = vmatprep.subr.mxu0 0.0
    %356 = vmatpush1.msra.mxu0 0.0
    %357 = vmatprep.subr.mxu0 0.0
    %358 = vmatpush1.msra.mxu0 0.0
    %359 = vmatprep.subr.mxu0 0.0
    %360 = vmatpush1.msra.mxu0 0.0
    %361 = vmatprep.subr.mxu0 0.0
    %362 = vmatpush1.msra.mxu0 0.0
    %363 = vmatprep.subr.mxu0 0.0
    %364 = vmatpush1.msra.mxu0 0.0
    %365 = vmatprep.subr.mxu0 0.0
    %366 = vmatpush1.msra.mxu0 0.0
    %367 = vmatprep.subr.mxu0 0.0
    %368 = vmatpush1.msra.mxu0 0.0
    %369 = vmatprep.mubr.f32.mxu0 0.0
    %370 = vmatmul.mubr.f32.gmra.mrb[0].mxu0 %v169
    %v371 = vpop.f32.mrb[0].mxu0
    %v372 = vadd.f32 %v158, %v371
    %v373 = vpop.f32.mrb[0].mxu0
    %v374 = vadd.f32 %v162, %v373
    %375 = vmatprep.mubr.f32.mxu0 0.0
    %376 = vmatmul.mubr.f32.gmra.mrb[0].mxu0 %v172
    %v377 = vpop.f32.mrb[0].mxu0
    %v378 = vadd.f32 %v158, %v377
    %v379 = vpop.f32.mrb[0].mxu0
    %v380 = vadd.f32 %v162, %v379
    %381 = vmatprep.mubr.f32.mxu0 0.0
    %382 = vmatmul.mubr.f32.gmra.mrb[0].mxu0 %v175
    %v383 = vpop.f32.mrb[0].mxu0
    %v384 = vadd.f32 %v158, %v383
    %v385 = vpop.f32.mrb[0].mxu0
    %v386 = vadd.f32 %v162, %v385
    %387 = vmatprep.mubr.f32.mxu0 0.0
    %388 = vmatmul.mubr.f32.gmra.mrb[0].mxu0 %v178
    %v389 = vpop.f32.mrb[0].mxu0
    %v390 = vadd.f32 %v158, %v389
    %v391 = vpop.f32.mrb[0].mxu0
    %v392 = vadd.f32 %v162, %v391
    %393 = vmatprep.mubr.f32.mxu0 0.0
    %394 = vmatmul.mubr.f32.gmra.mrb[0].mxu0 %v181
    %v395 = vpop.f32.mrb[0].mxu0
    %v396 = vadd.f32 %v158, %v395
    %v397 = vpop.f32.mrb[0].mxu0
    %v398 = vadd.f32 %v162, %v397
    %399 = vmatprep.mubr.f32.mxu0 0.0
    %400 = vmatmul.mubr.f32.gmra.mrb[0].mxu0 %v184
    %v401 = vpop.f32.mrb[0].mxu0
    %v402 = vadd.f32 %v158, %v401
    %v403 = vpop.f32.mrb[0].mxu0
    %v404 = vadd.f32 %v162, %v403
    %405 = vmatprep.mubr.f32.mxu0 0.0
    %406 = vmatmul.mubr.f32.gmra.mrb[0].mxu0 %v187
    %v407 = vpop.f32.mrb[0].mxu0
    %v408 = vadd.f32 %v158, %v407
    %v409 = vpop.f32.mrb[0].mxu0
    %v410 = vadd.f32 %v162, %v409
    %411 = vmatprep.mubr.f32.mxu0 0.0
    %412 = vmatmul.mubr.f32.gmra.mrb[0].mxu0 %v190
    %v413 = vpop.f32.mrb[0].mxu0
    %v414 = vadd.f32 %v158, %v413
    %v415 = vpop.f32.mrb[0].mxu0
    %v416 = vadd.f32 %v162, %v415
    %417 = vdwg.mxu0
    %418 = vst [vmem:[#allocation2] sm:$0xff] %v259
    %419 = vst [vmem:[#allocation2 + $0x8] sm:$0xff] %v261
    %420 = vst [vmem:[#allocation2 + $0x10] sm:$0xff] %v372
    %421 = vst [vmem:[#allocation2 + $0x18] sm:$0xff] %v374
    %422 = vst [vmem:[#allocation2 + $0x20] sm:$0xff] %v265
    %423 = vst [vmem:[#allocation2 + $0x28] sm:$0xff] %v267
    %424 = vst [vmem:[#allocation2 + $0x30] sm:$0xff] %v378
    %425 = vst [vmem:[#allocation2 + $0x38] sm:$0xff] %v380
    %426 = vst [vmem:[#allocation2 + $0x40] sm:$0xff] %v271
    %427 = vst [vmem:[#allocation2 + $0x48] sm:$0xff] %v273
    %428 = vst [vmem:[#allocation2 + $0x50] sm:$0xff] %v384
    %429 = vst [vmem:[#allocation2 + $0x58] sm:$0xff] %v386
    %430 = vst [vmem:[#allocation2 + $0x60] sm:$0xff] %v277
    %431 = vst [vmem:[#allocation2 + $0x68] sm:$0xff] %v279
    %432 = vst [vmem:[#allocation2 + $0x70] sm:$0xff] %v390
    %433 = vst [vmem:[#allocation2 + $0x78] sm:$0xff] %v392
    %434 = vst [vmem:[#allocation2 + $0x80] sm:$0xff] %v283
    %435 = vst [vmem:[#allocation2 + $0x88] sm:$0xff] %v285
    %436 = vst [vmem:[#allocation2 + $0x90] sm:$0xff] %v396
    %437 = vst [vmem:[#allocation2 + $0x98] sm:$0xff] %v398
    %438 = vst [vmem:[#allocation2 + $0xa0] sm:$0xff] %v289
    %439 = vst [vmem:[#allocation2 + $0xa8] sm:$0xff] %v291
    %440 = vst [vmem:[#allocation2 + $0xb0] sm:$0xff] %v402
    %441 = vst [vmem:[#allocation2 + $0xb8] sm:$0xff] %v404
    %442 = vst [vmem:[#allocation2 + $0xc0] sm:$0xff] %v295
    %443 = vst [vmem:[#allocation2 + $0xc8] sm:$0xff] %v297
    %444 = vst [vmem:[#allocation2 + $0xd0] sm:$0xff] %v408
    %445 = vst [vmem:[#allocation2 + $0xd8] sm:$0xff] %v410
    %446 = vst [vmem:[#allocation2 + $0xe0] sm:$0xff] %v301
    %447 = vst [vmem:[#allocation2 + $0xe8] sm:$0xff] %v303
    %448 = vst [vmem:[#allocation2 + $0xf0] sm:$0xff] %v414
    %449 = vst [vmem:[#allocation2 + $0xf8] sm:$0xff] %v416
    %v450 = vld [vmem:[#allocation7] sm:$0xff]
    %v451 = vld [vmem:[#allocation9] sm:$0xff]
    %s452 = smul.u32 0, 4
    %s453 = smul.addr %s452, 8
    %s454 = scalar_lea.vmem [#allocation2], %s453
    %v455 = vld [vmem:[%s454] sm:$0xff]
    %v456 = vld [vmem:[%s454 + $0x8] sm:$0xff]
    %v457 = vld [vmem:[%s454 + $0x10] sm:$0xff]
    %v458 = vld [vmem:[%s454 + $0x18] sm:$0xff]
    %v459 = vld [vmem:[#allocation12] sm:$0xff]
    %v460 = vld [vmem:[#allocation12 + $0x8] sm:$0xff]
    %v461 = vld [vmem:[#allocation12 + $0x10] sm:$0xff]
    %v462 = vld [vmem:[#allocation12 + $0x18] sm:$0xff]
    %v463 = vld [vmem:[#allocation12 + $0x20] sm:$0xff]
    %v464 = vld [vmem:[#allocation12 + $0x28] sm:$0xff]
    %v465 = vld [vmem:[#allocation12 + $0x30] sm:$0xff]
    %v466 = vld [vmem:[#allocation12 + $0x38] sm:$0xff]
    %v467 = vld [vmem:[#allocation12 + $0x40] sm:$0xff]
    %v468 = vld [vmem:[#allocation12 + $0x48] sm:$0xff]
    %v469 = vld [vmem:[#allocation12 + $0x50] sm:$0xff]
    %v470 = vld [vmem:[#allocation12 + $0x58] sm:$0xff]
    %v471 = vld [vmem:[#allocation12 + $0x60] sm:$0xff]
    %v472 = vld [vmem:[#allocation12 + $0x68] sm:$0xff]
    %v473 = vld [vmem:[#allocation12 + $0x70] sm:$0xff]
    %v474 = vld [vmem:[#allocation12 + $0x78] sm:$0xff]
    %v475 = vld [vmem:[#allocation12 + $0x80] sm:$0xff]
    %v476 = vld [vmem:[#allocation12 + $0x88] sm:$0xff]
    %v477 = vld [vmem:[#allocation12 + $0x90] sm:$0xff]
    %v478 = vld [vmem:[#allocation12 + $0x98] sm:$0xff]
    %v479 = vld [vmem:[#allocation12 + $0xa0] sm:$0xff]
    %v480 = vld [vmem:[#allocation12 + $0xa8] sm:$0xff]
    %v481 = vld [vmem:[#allocation12 + $0xb0] sm:$0xff]
    %v482 = vld [vmem:[#allocation12 + $0xb8] sm:$0xff]
    %v483 = vld [vmem:[#allocation12 + $0xc0] sm:$0xff]
    %v484 = vld [vmem:[#allocation12 + $0xc8] sm:$0xff]
    %v485 = vld [vmem:[#allocation12 + $0xd0] sm:$0xff]
    %v486 = vld [vmem:[#allocation12 + $0xd8] sm:$0xff]
    %v487 = vld [vmem:[#allocation12 + $0xe0] sm:$0xff]
    %v488 = vld [vmem:[#allocation12 + $0xe8] sm:$0xff]
    %v489 = vld [vmem:[#allocation12 + $0xf0] sm:$0xff]
    %v490 = vld [vmem:[#allocation12 + $0xf8] sm:$0xff]
    %v491 = vld [vmem:[#allocation12 + $0x100] sm:$0xff]
    %v492 = vld [vmem:[#allocation12 + $0x108] sm:$0xff]
    %v493 = vld [vmem:[#allocation12 + $0x110] sm:$0xff]
    %v494 = vld [vmem:[#allocation12 + $0x118] sm:$0xff]
    %v495 = vld [vmem:[#allocation12 + $0x120] sm:$0xff]
    %v496 = vld [vmem:[#allocation12 + $0x128] sm:$0xff]
    %v497 = vld [vmem:[#allocation12 + $0x130] sm:$0xff]
    %v498 = vld [vmem:[#allocation12 + $0x138] sm:$0xff]
    %v499 = vld [vmem:[#allocation12 + $0x140] sm:$0xff]
    %v500 = vld [vmem:[#allocation12 + $0x148] sm:$0xff]
    %v501 = vld [vmem:[#allocation12 + $0x150] sm:$0xff]
    %v502 = vld [vmem:[#allocation12 + $0x158] sm:$0xff]
    %v503 = vld [vmem:[#allocation12 + $0x160] sm:$0xff]
    %v504 = vld [vmem:[#allocation12 + $0x168] sm:$0xff]
    %v505 = vld [vmem:[#allocation12 + $0x170] sm:$0xff]
    %v506 = vld [vmem:[#allocation12 + $0x178] sm:$0xff]
    %v507 = vld [vmem:[#allocation12 + $0x180] sm:$0xff]
    %v508 = vld [vmem:[#allocation12 + $0x188] sm:$0xff]
    %v509 = vld [vmem:[#allocation12 + $0x190] sm:$0xff]
    %v510 = vld [vmem:[#allocation12 + $0x198] sm:$0xff]
    %v511 = vld [vmem:[#allocation12 + $0x1a0] sm:$0xff]
    %v512 = vld [vmem:[#allocation12 + $0x1a8] sm:$0xff]
    %v513 = vld [vmem:[#allocation12 + $0x1b0] sm:$0xff]
    %v514 = vld [vmem:[#allocation12 + $0x1b8] sm:$0xff]
    %v515 = vld [vmem:[#allocation12 + $0x1c0] sm:$0xff]
    %v516 = vld [vmem:[#allocation12 + $0x1c8] sm:$0xff]
    %v517 = vld [vmem:[#allocation12 + $0x1d0] sm:$0xff]
    %v518 = vld [vmem:[#allocation12 + $0x1d8] sm:$0xff]
    %v519 = vld [vmem:[#allocation12 + $0x1e0] sm:$0xff]
    %v520 = vld [vmem:[#allocation12 + $0x1e8] sm:$0xff]
    %v521 = vld [vmem:[#allocation12 + $0x1f0] sm:$0xff]
    %v522 = vld [vmem:[#allocation12 + $0x1f8] sm:$0xff]
    %523 = vmatprep.subr.mxu0 %v460
    %524 = vmatpush1.msra.mxu0 %v459
    %525 = vmatprep.subr.mxu0 %v464
    %526 = vmatpush1.msra.mxu0 %v463
    %527 = vmatprep.subr.mxu0 %v468
    %528 = vmatpush1.msra.mxu0 %v467
    %529 = vmatprep.subr.mxu0 %v472
    %530 = vmatpush1.msra.mxu0 %v471
    %531 = vmatprep.subr.mxu0 %v476
    %532 = vmatpush1.msra.mxu0 %v475
    %533 = vmatprep.subr.mxu0 %v480
    %534 = vmatpush1.msra.mxu0 %v479
    %535 = vmatprep.subr.mxu0 %v484
    %536 = vmatpush1.msra.mxu0 %v483
    %537 = vmatprep.subr.mxu0 %v488
    %538 = vmatpush1.msra.mxu0 %v487
    %539 = vmatprep.subr.mxu0 %v492
    %540 = vmatpush1.msra.mxu0 %v491
    %541 = vmatprep.subr.mxu0 %v496
    %542 = vmatpush1.msra.mxu0 %v495
    %543 = vmatprep.subr.mxu0 %v500
    %544 = vmatpush1.msra.mxu0 %v499
    %545 = vmatprep.subr.mxu0 %v504
    %546 = vmatpush1.msra.mxu0 %v503
    %547 = vmatprep.subr.mxu0 %v508
    %548 = vmatpush1.msra.mxu0 %v507
    %549 = vmatprep.subr.mxu0 %v512
    %550 = vmatpush1.msra.mxu0 %v511
    %551 = vmatprep.subr.mxu0 %v516
    %552 = vmatpush1.msra.mxu0 %v515
    %553 = vmatprep.subr.mxu0 %v520
    %554 = vmatpush1.msra.mxu0 %v519
    %555 = vmatprep.subr.mxu0 0.0
    %556 = vmatpush1.msra.mxu0 0.0
    %557 = vmatprep.subr.mxu0 0.0
    %558 = vmatpush1.msra.mxu0 0.0
    %559 = vmatprep.subr.mxu0 0.0
    %560 = vmatpush1.msra.mxu0 0.0
    %561 = vmatprep.subr.mxu0 0.0
    %562 = vmatpush1.msra.mxu0 0.0
    %563 = vmatprep.subr.mxu0 0.0
    %564 = vmatpush1.msra.mxu0 0.0
    %565 = vmatprep.subr.mxu0 0.0
    %566 = vmatpush1.msra.mxu0 0.0
    %567 = vmatprep.subr.mxu0 0.0
    %568 = vmatpush1.msra.mxu0 0.0
    %569 = vmatprep.subr.mxu0 0.0
    %570 = vmatpush1.msra.mxu0 0.0
    %571 = vmatprep.subr.mxu0 0.0
    %572 = vmatpush1.msra.mxu0 0.0
    %573 = vmatprep.subr.mxu0 0.0
    %574 = vmatpush1.msra.mxu0 0.0
    %575 = vmatprep.subr.mxu0 0.0
    %576 = vmatpush1.msra.mxu0 0.0
    %577 = vmatprep.subr.mxu0 0.0
    %578 = vmatpush1.msra.mxu0 0.0
    %579 = vmatprep.subr.mxu0 0.0
    %580 = vmatpush1.msra.mxu0 0.0
    %581 = vmatprep.subr.mxu0 0.0
    %582 = vmatpush1.msra.mxu0 0.0
    %583 = vmatprep.subr.mxu0 0.0
    %584 = vmatpush1.msra.mxu0 0.0
    %585 = vmatprep.subr.mxu0 0.0
    %586 = vmatpush1.msra.mxu0 0.0
    %587 = vmatprep.mubr.f32.mxu0 0.0
    %588 = vmatmul.mubr.f32.gmra.mrb[0].mxu0 %v450
    %v589 = vpop.f32.mrb[0].mxu0
    %v590 = vadd.f32 0.0, %v589
    %v591 = vpop.f32.mrb[0].mxu0
    %v592 = vadd.f32 0.0, %v591
    %593 = vdwg.mxu0
    %594 = vmatprep.subr.mxu0 %v462
    %595 = vmatpush1.msra.mxu0 %v461
    %596 = vmatprep.subr.mxu0 %v466
    %597 = vmatpush1.msra.mxu0 %v465
    %598 = vmatprep.subr.mxu0 %v470
    %599 = vmatpush1.msra.mxu0 %v469
    %600 = vmatprep.subr.mxu0 %v474
    %601 = vmatpush1.msra.mxu0 %v473
    %602 = vmatprep.subr.mxu0 %v478
    %603 = vmatpush1.msra.mxu0 %v477
    %604 = vmatprep.subr.mxu0 %v482
    %605 = vmatpush1.msra.mxu0 %v481
    %606 = vmatprep.subr.mxu0 %v486
    %607 = vmatpush1.msra.mxu0 %v485
    %608 = vmatprep.subr.mxu0 %v490
    %609 = vmatpush1.msra.mxu0 %v489
    %610 = vmatprep.subr.mxu0 %v494
    %611 = vmatpush1.msra.mxu0 %v493
    %612 = vmatprep.subr.mxu0 %v498
    %613 = vmatpush1.msra.mxu0 %v497
    %614 = vmatprep.subr.mxu0 %v502
    %615 = vmatpush1.msra.mxu0 %v501
    %616 = vmatprep.subr.mxu0 %v506
    %617 = vmatpush1.msra.mxu0 %v505
    %618 = vmatprep.subr.mxu0 %v510
    %619 = vmatpush1.msra.mxu0 %v509
    %620 = vmatprep.subr.mxu0 %v514
    %621 = vmatpush1.msra.mxu0 %v513
    %622 = vmatprep.subr.mxu0 %v518
    %623 = vmatpush1.msra.mxu0 %v517
    %624 = vmatprep.subr.mxu0 %v522
    %625 = vmatpush1.msra.mxu0 %v521
    %626 = vmatprep.subr.mxu0 0.0
    %627 = vmatpush1.msra.mxu0 0.0
    %628 = vmatprep.subr.mxu0 0.0
    %629 = vmatpush1.msra.mxu0 0.0
    %630 = vmatprep.subr.mxu0 0.0
    %631 = vmatpush1.msra.mxu0 0.0
    %632 = vmatprep.subr.mxu0 0.0
    %633 = vmatpush1.msra.mxu0 0.0
    %634 = vmatprep.subr.mxu0 0.0
    %635 = vmatpush1.msra.mxu0 0.0
    %636 = vmatprep.subr.mxu0 0.0
    %637 = vmatpush1.msra.mxu0 0.0
    %638 = vmatprep.subr.mxu0 0.0
    %639 = vmatpush1.msra.mxu0 0.0
    %640 = vmatprep.subr.mxu0 0.0
    %641 = vmatpush1.msra.mxu0 0.0
    %642 = vmatprep.subr.mxu0 0.0
    %643 = vmatpush1.msra.mxu0 0.0
    %644 = vmatprep.subr.mxu0 0.0
    %645 = vmatpush1.msra.mxu0 0.0
    %646 = vmatprep.subr.mxu0 0.0
    %647 = vmatpush1.msra.mxu0 0.0
    %648 = vmatprep.subr.mxu0 0.0
    %649 = vmatpush1.msra.mxu0 0.0
    %650 = vmatprep.subr.mxu0 0.0
    %651 = vmatpush1.msra.mxu0 0.0
    %652 = vmatprep.subr.mxu0 0.0
    %653 = vmatpush1.msra.mxu0 0.0
    %654 = vmatprep.subr.mxu0 0.0
    %655 = vmatpush1.msra.mxu0 0.0
    %656 = vmatprep.subr.mxu0 0.0
    %657 = vmatpush1.msra.mxu0 0.0
    %658 = vmatprep.mubr.f32.mxu0 0.0
    %659 = vmatmul.mubr.f32.gmra.mrb[0].mxu0 %v450
    %v660 = vpop.f32.mrb[0].mxu0
    %v661 = vadd.f32 0.0, %v660
    %v662 = vpop.f32.mrb[0].mxu0
    %v663 = vadd.f32 0.0, %v662
    %664 = vdwg.mxu0
    %v665 = vadd.f32 %v455, %v590
    %v666 = vadd.f32 %v456, %v592
    %v667 = vadd.f32 %v457, %v661
    %v668 = vadd.f32 %v458, %v663
    %v669 = vmul.f32 %v665, 0.5
    %v670 = vtanh.pop %v669
    %v671 = vmul.f32 %v670, 0.5
    %v672 = vadd.f32 %v671, 0.5
    %v673 = vmul.f32 %v666, 0.5
    %v674 = vtanh.pop %v673
    %v675 = vmul.f32 %v674, 0.5
    %v676 = vadd.f32 %v675, 0.5
    %v677 = vtanh.pop %v667
    %v678 = vmul.f32 %v668, 0.5
    %v679 = vtanh.pop %v678
    %v680 = vmul.f32 %v679, 0.5
    %v681 = vadd.f32 %v680, 0.5
    %v682 = vmul.f32 %v676, %v451
    %v683 = vmul.f32 %v672, %v677
    %v684 = vadd.f32 %v682, %v683
    %v685 = vtanh.pop %v684
    %v686 = vmul.f32 %v681, %v685
    %687 = vst [vmem:[#allocation3] sm:$0xff] %v686
    %s688 = smul.u32 1, 4
    %s689 = smul.addr %s688, 8
    %s690 = scalar_lea.vmem [#allocation2], %s689
    %v691 = vld [vmem:[%s690] sm:$0xff]
    %v692 = vld [vmem:[%s690 + $0x8] sm:$0xff]
    %v693 = vld [vmem:[%s690 + $0x10] sm:$0xff]
    %v694 = vld [vmem:[%s690 + $0x18] sm:$0xff]
    %v695 = vld [vmem:[#allocation12] sm:$0xff]
    %v696 = vld [vmem:[#allocation12 + $0x8] sm:$0xff]
    %v697 = vld [vmem:[#allocation12 + $0x10] sm:$0xff]
    %v698 = vld [vmem:[#allocation12 + $0x18] sm:$0xff]
    %v699 = vld [vmem:[#allocation12 + $0x20] sm:$0xff]
    %v700 = vld [vmem:[#allocation12 + $0x28] sm:$0xff]
    %v701 = vld [vmem:[#allocation12 + $0x30] sm:$0xff]
    %v702 = vld [vmem:[#allocation12 + $0x38] sm:$0xff]
    %v703 = vld [vmem:[#allocation12 + $0x40] sm:$0xff]
    %v704 = vld [vmem:[#allocation12 + $0x48] sm:$0xff]
    %v705 = vld [vmem:[#allocation12 + $0x50] sm:$0xff]
    %v706 = vld [vmem:[#allocation12 + $0x58] sm:$0xff]
    %v707 = vld [vmem:[#allocation12 + $0x60] sm:$0xff]
    %v708 = vld [vmem:[#allocation12 + $0x68] sm:$0xff]
    %v709 = vld [vmem:[#allocation12 + $0x70] sm:$0xff]
    %v710 = vld [vmem:[#allocation12 + $0x78] sm:$0xff]
    %v711 = vld [vmem:[#allocation12 + $0x80] sm:$0xff]
    %v712 = vld [vmem:[#allocation12 + $0x88] sm:$0xff]
    %v713 = vld [vmem:[#allocation12 + $0x90] sm:$0xff]
    %v714 = vld [vmem:[#allocation12 + $0x98] sm:$0xff]
    %v715 = vld [vmem:[#allocation12 + $0xa0] sm:$0xff]
    %v716 = vld [vmem:[#allocation12 + $0xa8] sm:$0xff]
    %v717 = vld [vmem:[#allocation12 + $0xb0] sm:$0xff]
    %v718 = vld [vmem:[#allocation12 + $0xb8] sm:$0xff]
    %v719 = vld [vmem:[#allocation12 + $0xc0] sm:$0xff]
    %v720 = vld [vmem:[#allocation12 + $0xc8] sm:$0xff]
    %v721 = vld [vmem:[#allocation12 + $0xd0] sm:$0xff]
    %v722 = vld [vmem:[#allocation12 + $0xd8] sm:$0xff]
    %v723 = vld [vmem:[#allocation12 + $0xe0] sm:$0xff]
    %v724 = vld [vmem:[#allocation12 + $0xe8] sm:$0xff]
    %v725 = vld [vmem:[#allocation12 + $0xf0] sm:$0xff]
    %v726 = vld [vmem:[#allocation12 + $0xf8] sm:$0xff]
    %v727 = vld [vmem:[#allocation12 + $0x100] sm:$0xff]
    %v728 = vld [vmem:[#allocation12 + $0x108] sm:$0xff]
    %v729 = vld [vmem:[#allocation12 + $0x110] sm:$0xff]
    %v730 = vld [vmem:[#allocation12 + $0x118] sm:$0xff]
    %v731 = vld [vmem:[#allocation12 + $0x120] sm:$0xff]
    %v732 = vld [vmem:[#allocation12 + $0x128] sm:$0xff]
    %v733 = vld [vmem:[#allocation12 + $0x130] sm:$0xff]
    %v734 = vld [vmem:[#allocation12 + $0x138] sm:$0xff]
    %v735 = vld [vmem:[#allocation12 + $0x140] sm:$0xff]
    %v736 = vld [vmem:[#allocation12 + $0x148] sm:$0xff]
    %v737 = vld [vmem:[#allocation12 + $0x150] sm:$0xff]
    %v738 = vld [vmem:[#allocation12 + $0x158] sm:$0xff]
    %v739 = vld [vmem:[#allocation12 + $0x160] sm:$0xff]
    %v740 = vld [vmem:[#allocation12 + $0x168] sm:$0xff]
    %v741 = vld [vmem:[#allocation12 + $0x170] sm:$0xff]
    %v742 = vld [vmem:[#allocation12 + $0x178] sm:$0xff]
    %v743 = vld [vmem:[#allocation12 + $0x180] sm:$0xff]
    %v744 = vld [vmem:[#allocation12 + $0x188] sm:$0xff]
    %v745 = vld [vmem:[#allocation12 + $0x190] sm:$0xff]
    %v746 = vld [vmem:[#allocation12 + $0x198] sm:$0xff]
    %v747 = vld [vmem:[#allocation12 + $0x1a0] sm:$0xff]
    %v748 = vld [vmem:[#allocation12 + $0x1a8] sm:$0xff]
    %v749 = vld [vmem:[#allocation12 + $0x1b0] sm:$0xff]
    %v750 = vld [vmem:[#allocation12 + $0x1b8] sm:$0xff]
    %v751 = vld [vmem:[#allocation12 + $0x1c0] sm:$0xff]
    %v752 = vld [vmem:[#allocation12 + $0x1c8] sm:$0xff]
    %v753 = vld [vmem:[#allocation12 + $0x1d0] sm:$0xff]
    %v754 = vld [vmem:[#allocation12 + $0x1d8] sm:$0xff]
    %v755 = vld [vmem:[#allocation12 + $0x1e0] sm:$0xff]
    %v756 = vld [vmem:[#allocation12 + $0x1e8] sm:$0xff]
    %v757 = vld [vmem:[#allocation12 + $0x1f0] sm:$0xff]
    %v758 = vld [vmem:[#allocation12 + $0x1f8] sm:$0xff]
    %759 = vmatprep.subr.mxu0 %v696
    %760 = vmatpush1.msra.mxu0 %v695
    %761 = vmatprep.subr.mxu0 %v700
    %762 = vmatpush1.msra.mxu0 %v699
    %763 = vmatprep.subr.mxu0 %v704
    %764 = vmatpush1.msra.mxu0 %v703
    %765 = vmatprep.subr.mxu0 %v708
    %766 = vmatpush1.msra.mxu0 %v707
    %767 = vmatprep.subr.mxu0 %v712
    %768 = vmatpush1.msra.mxu0 %v711
    %769 = vmatprep.subr.mxu0 %v716
    %770 = vmatpush1.msra.mxu0 %v715
    %771 = vmatprep.subr.mxu0 %v720
    %772 = vmatpush1.msra.mxu0 %v719
    %773 = vmatprep.subr.mxu0 %v724
    %774 = vmatpush1.msra.mxu0 %v723
    %775 = vmatprep.subr.mxu0 %v728
    %776 = vmatpush1.msra.mxu0 %v727
    %777 = vmatprep.subr.mxu0 %v732
    %778 = vmatpush1.msra.mxu0 %v731
    %779 = vmatprep.subr.mxu0 %v736
    %780 = vmatpush1.msra.mxu0 %v735
    %781 = vmatprep.subr.mxu0 %v740
    %782 = vmatpush1.msra.mxu0 %v739
    %783 = vmatprep.subr.mxu0 %v744
    %784 = vmatpush1.msra.mxu0 %v743
    %785 = vmatprep.subr.mxu0 %v748
    %786 = vmatpush1.msra.mxu0 %v747
    %787 = vmatprep.subr.mxu0 %v752
    %788 = vmatpush1.msra.mxu0 %v751
    %789 = vmatprep.subr.mxu0 %v756
    %790 = vmatpush1.msra.mxu0 %v755
    %791 = vmatprep.subr.mxu0 0.0
    %792 = vmatpush1.msra.mxu0 0.0
    %793 = vmatprep.subr.mxu0 0.0
    %794 = vmatpush1.msra.mxu0 0.0
    %795 = vmatprep.subr.mxu0 0.0
    %796 = vmatpush1.msra.mxu0 0.0
    %797 = vmatprep.subr.mxu0 0.0
    %798 = vmatpush1.msra.mxu0 0.0
    %799 = vmatprep.subr.mxu0 0.0
    %800 = vmatpush1.msra.mxu0 0.0
    %801 = vmatprep.subr.mxu0 0.0
    %802 = vmatpush1.msra.mxu0 0.0
    %803 = vmatprep.subr.mxu0 0.0
    %804 = vmatpush1.msra.mxu0 0.0
    %805 = vmatprep.subr.mxu0 0.0
    %806 = vmatpush1.msra.mxu0 0.0
    %807 = vmatprep.subr.mxu0 0.0
    %808 = vmatpush1.msra.mxu0 0.0
    %809 = vmatprep.subr.mxu0 0.0
    %810 = vmatpush1.msra.mxu0 0.0
    %811 = vmatprep.subr.mxu0 0.0
    %812 = vmatpush1.msra.mxu0 0.0
    %813 = vmatprep.subr.mxu0 0.0
    %814 = vmatpush1.msra.mxu0 0.0
    %815 = vmatprep.subr.mxu0 0.0
    %816 = vmatpush1.msra.mxu0 0.0
    %817 = vmatprep.subr.mxu0 0.0
    %818 = vmatpush1.msra.mxu0 0.0
    %819 = vmatprep.subr.mxu0 0.0
    %820 = vmatpush1.msra.mxu0 0.0
    %821 = vmatprep.subr.mxu0 0.0
    %822 = vmatpush1.msra.mxu0 0.0
    %823 = vmatprep.mubr.f32.mxu0 0.0
    %824 = vmatmul.mubr.f32.gmra.mrb[0].mxu0 %v686
    %v825 = vpop.f32.mrb[0].mxu0
    %v826 = vadd.f32 0.0, %v825
    %v827 = vpop.f32.mrb[0].mxu0
    %v828 = vadd.f32 0.0, %v827
    %829 = vdwg.mxu0
    %830 = vmatprep.subr.mxu0 %v698
    %831 = vmatpush1.msra.mxu0 %v697
    %832 = vmatprep.subr.mxu0 %v702
    %833 = vmatpush1.msra.mxu0 %v701
    %834 = vmatprep.subr.mxu0 %v706
    %835 = vmatpush1.msra.mxu0 %v705
    %836 = vmatprep.subr.mxu0 %v710
    %837 = vmatpush1.msra.mxu0 %v709
    %838 = vmatprep.subr.mxu0 %v714
    %839 = vmatpush1.msra.mxu0 %v713
    %840 = vmatprep.subr.mxu0 %v718
    %841 = vmatpush1.msra.mxu0 %v717
    %842 = vmatprep.subr.mxu0 %v722
    %843 = vmatpush1.msra.mxu0 %v721
    %844 = vmatprep.subr.mxu0 %v726
    %845 = vmatpush1.msra.mxu0 %v725
    %846 = vmatprep.subr.mxu0 %v730
    %847 = vmatpush1.msra.mxu0 %v729
    %848 = vmatprep.subr.mxu0 %v734
    %849 = vmatpush1.msra.mxu0 %v733
    %850 = vmatprep.subr.mxu0 %v738
    %851 = vmatpush1.msra.mxu0 %v737
    %852 = vmatprep.subr.mxu0 %v742
    %853 = vmatpush1.msra.mxu0 %v741
    %854 = vmatprep.subr.mxu0 %v746
    %855 = vmatpush1.msra.mxu0 %v745
    %856 = vmatprep.subr.mxu0 %v750
    %857 = vmatpush1.msra.mxu0 %v749
    %858 = vmatprep.subr.mxu0 %v754
    %859 = vmatpush1.msra.mxu0 %v753
    %860 = vmatprep.subr.mxu0 %v758
    %861 = vmatpush1.msra.mxu0 %v757
    %862 = vmatprep.subr.mxu0 0.0
    %863 = vmatpush1.msra.mxu0 0.0
    %864 = vmatprep.subr.mxu0 0.0
    %865 = vmatpush1.msra.mxu0 0.0
    %866 = vmatprep.subr.mxu0 0.0
    %867 = vmatpush1.msra.mxu0 0.0
    %868 = vmatprep.subr.mxu0 0.0
    %869 = vmatpush1.msra.mxu0 0.0
    %870 = vmatprep.subr.mxu0 0.0
    %871 = vmatpush1.msra.mxu0 0.0
    %872 = vmatprep.subr.mxu0 0.0
    %873 = vmatpush1.msra.mxu0 0.0
    %874 = vmatprep.subr.mxu0 0.0
    %875 = vmatpush1.msra.mxu0 0.0
    %876 = vmatprep.subr.mxu0 0.0
    %877 = vmatpush1.msra.mxu0 0.0
    %878 = vmatprep.subr.mxu0 0.0
    %879 = vmatpush1.msra.mxu0 0.0
    %880 = vmatprep.subr.mxu0 0.0
    %881 = vmatpush1.msra.mxu0 0.0
    %882 = vmatprep.subr.mxu0 0.0
    %883 = vmatpush1.msra.mxu0 0.0
    %884 = vmatprep.subr.mxu0 0.0
    %885 = vmatpush1.msra.mxu0 0.0
    %886 = vmatprep.subr.mxu0 0.0
    %887 = vmatpush1.msra.mxu0 0.0
    %888 = vmatprep.subr.mxu0 0.0
    %889 = vmatpush1.msra.mxu0 0.0
    %890 = vmatprep.subr.mxu0 0.0
    %891 = vmatpush1.msra.mxu0 0.0
    %892 = vmatprep.subr.mxu0 0.0
    %893 = vmatpush1.msra.mxu0 0.0
    %894 = vmatprep.mubr.f32.mxu0 0.0
    %895 = vmatmul.mubr.f32.gmra.mrb[0].mxu0 %v686
    %v896 = vpop.f32.mrb[0].mxu0
    %v897 = vadd.f32 0.0, %v896
    %v898 = vpop.f32.mrb[0].mxu0
    %v899 = vadd.f32 0.0, %v898
    %900 = vdwg.mxu0
    %v901 = vadd.f32 %v691, %v826
    %v902 = vadd.f32 %v692, %v828
    %v903 = vadd.f32 %v693, %v897
    %v904 = vadd.f32 %v694, %v899
    %v905 = vmul.f32 %v901, 0.5
    %v906 = vtanh.pop %v905
    %v907 = vmul.f32 %v906, 0.5
    %v908 = vadd.f32 %v907, 0.5
    %v909 = vmul.f32 %v902, 0.5
    %v910 = vtanh.pop %v909
    %v911 = vmul.f32 %v910, 0.5
    %v912 = vadd.f32 %v911, 0.5
    %v913 = vtanh.pop %v903
    %v914 = vmul.f32 %v904, 0.5
    %v915 = vtanh.pop %v914
    %v916 = vmul.f32 %v915, 0.5
    %v917 = vadd.f32 %v916, 0.5
    %v918 = vmul.f32 %v912, %v684
    %v919 = vmul.f32 %v908, %v913
    %v920 = vadd.f32 %v918, %v919
    %v921 = vtanh.pop %v920
    %v922 = vmul.f32 %v917, %v921
    %s923 = scalar_lea.vmem [#allocation3], 8
    %924 = vst [vmem:[%s923] sm:$0xff] %v922
    %s925 = smul.u32 2, 4
    %s926 = smul.addr %s925, 8
    %s927 = scalar_lea.vmem [#allocation2], %s926
    %v928 = vld [vmem:[%s927] sm:$0xff]
    %v929 = vld [vmem:[%s927 + $0x8] sm:$0xff]
    %v930 = vld [vmem:[%s927 + $0x10] sm:$0xff]
    %v931 = vld [vmem:[%s927 + $0x18] sm:$0xff]
    %v932 = vld [vmem:[#allocation12] sm:$0xff]
    %v933 = vld [vmem:[#allocation12 + $0x8] sm:$0xff]
    %v934 = vld [vmem:[#allocation12 + $0x10] sm:$0xff]
    %v935 = vld [vmem:[#allocation12 + $0x18] sm:$0xff]
    %v936 = vld [vmem:[#allocation12 + $0x20] sm:$0xff]
    %v937 = vld [vmem:[#allocation12 + $0x28] sm:$0xff]
    %v938 = vld [vmem:[#allocation12 + $0x30] sm:$0xff]
    %v939 = vld [vmem:[#allocation12 + $0x38] sm:$0xff]
    %v940 = vld [vmem:[#allocation12 + $0x40] sm:$0xff]
    %v941 = vld [vmem:[#allocation12 + $0x48] sm:$0xff]
    %v942 = vld [vmem:[#allocation12 + $0x50] sm:$0xff]
    %v943 = vld [vmem:[#allocation12 + $0x58] sm:$0xff]
    %v944 = vld [vmem:[#allocation12 + $0x60] sm:$0xff]
    %v945 = vld [vmem:[#allocation12 + $0x68] sm:$0xff]
    %v946 = vld [vmem:[#allocation12 + $0x70] sm:$0xff]
    %v947 = vld [vmem:[#allocation12 + $0x78] sm:$0xff]
    %v948 = vld [vmem:[#allocation12 + $0x80] sm:$0xff]
    %v949 = vld [vmem:[#allocation12 + $0x88] sm:$0xff]
    %v950 = vld [vmem:[#allocation12 + $0x90] sm:$0xff]
    %v951 = vld [vmem:[#allocation12 + $0x98] sm:$0xff]
    %v952 = vld [vmem:[#allocation12 + $0xa0] sm:$0xff]
    %v953 = vld [vmem:[#allocation12 + $0xa8] sm:$0xff]
    %v954 = vld [vmem:[#allocation12 + $0xb0] sm:$0xff]
    %v955 = vld [vmem:[#allocation12 + $0xb8] sm:$0xff]
    %v956 = vld [vmem:[#allocation12 + $0xc0] sm:$0xff]
    %v957 = vld [vmem:[#allocation12 + $0xc8] sm:$0xff]
    %v958 = vld [vmem:[#allocation12 + $0xd0] sm:$0xff]
    %v959 = vld [vmem:[#allocation12 + $0xd8] sm:$0xff]
    %v960 = vld [vmem:[#allocation12 + $0xe0] sm:$0xff]
    %v961 = vld [vmem:[#allocation12 + $0xe8] sm:$0xff]
    %v962 = vld [vmem:[#allocation12 + $0xf0] sm:$0xff]
    %v963 = vld [vmem:[#allocation12 + $0xf8] sm:$0xff]
    %v964 = vld [vmem:[#allocation12 + $0x100] sm:$0xff]
    %v965 = vld [vmem:[#allocation12 + $0x108] sm:$0xff]
    %v966 = vld [vmem:[#allocation12 + $0x110] sm:$0xff]
    %v967 = vld [vmem:[#allocation12 + $0x118] sm:$0xff]
    %v968 = vld [vmem:[#allocation12 + $0x120] sm:$0xff]
    %v969 = vld [vmem:[#allocation12 + $0x128] sm:$0xff]
    %v970 = vld [vmem:[#allocation12 + $0x130] sm:$0xff]
    %v971 = vld [vmem:[#allocation12 + $0x138] sm:$0xff]
    %v972 = vld [vmem:[#allocation12 + $0x140] sm:$0xff]
    %v973 = vld [vmem:[#allocation12 + $0x148] sm:$0xff]
    %v974 = vld [vmem:[#allocation12 + $0x150] sm:$0xff]
    %v975 = vld [vmem:[#allocation12 + $0x158] sm:$0xff]
    %v976 = vld [vmem:[#allocation12 + $0x160] sm:$0xff]
    %v977 = vld [vmem:[#allocation12 + $0x168] sm:$0xff]
    %v978 = vld [vmem:[#allocation12 + $0x170] sm:$0xff]
    %v979 = vld [vmem:[#allocation12 + $0x178] sm:$0xff]
    %v980 = vld [vmem:[#allocation12 + $0x180] sm:$0xff]
    %v981 = vld [vmem:[#allocation12 + $0x188] sm:$0xff]
    %v982 = vld [vmem:[#allocation12 + $0x190] sm:$0xff]
    %v983 = vld [vmem:[#allocation12 + $0x198] sm:$0xff]
    %v984 = vld [vmem:[#allocation12 + $0x1a0] sm:$0xff]
    %v985 = vld [vmem:[#allocation12 + $0x1a8] sm:$0xff]
    %v986 = vld [vmem:[#allocation12 + $0x1b0] sm:$0xff]
    %v987 = vld [vmem:[#allocation12 + $0x1b8] sm:$0xff]
    %v988 = vld [vmem:[#allocation12 + $0x1c0] sm:$0xff]
    %v989 = vld [vmem:[#allocation12 + $0x1c8] sm:$0xff]
    %v990 = vld [vmem:[#allocation12 + $0x1d0] sm:$0xff]
    %v991 = vld [vmem:[#allocation12 + $0x1d8] sm:$0xff]
    %v992 = vld [vmem:[#allocation12 + $0x1e0] sm:$0xff]
    %v993 = vld [vmem:[#allocation12 + $0x1e8] sm:$0xff]
    %v994 = vld [vmem:[#allocation12 + $0x1f0] sm:$0xff]
    %v995 = vld [vmem:[#allocation12 + $0x1f8] sm:$0xff]
    %996 = vmatprep.subr.mxu0 %v933
    %997 = vmatpush1.msra.mxu0 %v932
    %998 = vmatprep.subr.mxu0 %v937
    %999 = vmatpush1.msra.mxu0 %v936
    %1000 = vmatprep.subr.mxu0 %v941
    %1001 = vmatpush1.msra.mxu0 %v940
    %1002 = vmatprep.subr.mxu0 %v945
    %1003 = vmatpush1.msra.mxu0 %v944
    %1004 = vmatprep.subr.mxu0 %v949
    %1005 = vmatpush1.msra.mxu0 %v948
    %1006 = vmatprep.subr.mxu0 %v953
    %1007 = vmatpush1.msra.mxu0 %v952
    %1008 = vmatprep.subr.mxu0 %v957
    %1009 = vmatpush1.msra.mxu0 %v956
    %1010 = vmatprep.subr.mxu0 %v961
    %1011 = vmatpush1.msra.mxu0 %v960
    %1012 = vmatprep.subr.mxu0 %v965
    %1013 = vmatpush1.msra.mxu0 %v964
    %1014 = vmatprep.subr.mxu0 %v969
    %1015 = vmatpush1.msra.mxu0 %v968
    %1016 = vmatprep.subr.mxu0 %v973
    %1017 = vmatpush1.msra.mxu0 %v972
    %1018 = vmatprep.subr.mxu0 %v977
    %1019 = vmatpush1.msra.mxu0 %v976
    %1020 = vmatprep.subr.mxu0 %v981
    %1021 = vmatpush1.msra.mxu0 %v980
    %1022 = vmatprep.subr.mxu0 %v985
    %1023 = vmatpush1.msra.mxu0 %v984
    %1024 = vmatprep.subr.mxu0 %v989
    %1025 = vmatpush1.msra.mxu0 %v988
    %1026 = vmatprep.subr.mxu0 %v993
    %1027 = vmatpush1.msra.mxu0 %v992
    %1028 = vmatprep.subr.mxu0 0.0
    %1029 = vmatpush1.msra.mxu0 0.0
    %1030 = vmatprep.subr.mxu0 0.0
    %1031 = vmatpush1.msra.mxu0 0.0
    %1032 = vmatprep.subr.mxu0 0.0
    %1033 = vmatpush1.msra.mxu0 0.0
    %1034 = vmatprep.subr.mxu0 0.0
    %1035 = vmatpush1.msra.mxu0 0.0
    %1036 = vmatprep.subr.mxu0 0.0
    %1037 = vmatpush1.msra.mxu0 0.0
    %1038 = vmatprep.subr.mxu0 0.0
    %1039 = vmatpush1.msra.mxu0 0.0
    %1040 = vmatprep.subr.mxu0 0.0
    %1041 = vmatpush1.msra.mxu0 0.0
    %1042 = vmatprep.subr.mxu0 0.0
    %1043 = vmatpush1.msra.mxu0 0.0
    %1044 = vmatprep.subr.mxu0 0.0
    %1045 = vmatpush1.msra.mxu0 0.0
    %1046 = vmatprep.subr.mxu0 0.0
    %1047 = vmatpush1.msra.mxu0 0.0
    %1048 = vmatprep.subr.mxu0 0.0
    %1049 = vmatpush1.msra.mxu0 0.0
    %1050 = vmatprep.subr.mxu0 0.0
    %1051 = vmatpush1.msra.mxu0 0.0
    %1052 = vmatprep.subr.mxu0 0.0
    %1053 = vmatpush1.msra.mxu0 0.0
    %1054 = vmatprep.subr.mxu0 0.0
    %1055 = vmatpush1.msra.mxu0 0.0
    %1056 = vmatprep.subr.mxu0 0.0
    %1057 = vmatpush1.msra.mxu0 0.0
    %1058 = vmatprep.subr.mxu0 0.0
    %1059 = vmatpush1.msra.mxu0 0.0
    %1060 = vmatprep.mubr.f32.mxu0 0.0
    %1061 = vmatmul.mubr.f32.gmra.mrb[0].mxu0 %v922
    %v1062 = vpop.f32.mrb[0].mxu0
    %v1063 = vadd.f32 0.0, %v1062
    %v1064 = vpop.f32.mrb[0].mxu0
    %v1065 = vadd.f32 0.0, %v1064
    %1066 = vdwg.mxu0
    %1067 = vmatprep.subr.mxu0 %v935
    %1068 = vmatpush1.msra.mxu0 %v934
    %1069 = vmatprep.subr.mxu0 %v939
    %1070 = vmatpush1.msra.mxu0 %v938
    %1071 = vmatprep.subr.mxu0 %v943
    %1072 = vmatpush1.msra.mxu0 %v942
    %1073 = vmatprep.subr.mxu0 %v947
    %1074 = vmatpush1.msra.mxu0 %v946
    %1075 = vmatprep.subr.mxu0 %v951
    %1076 = vmatpush1.msra.mxu0 %v950
    %1077 = vmatprep.subr.mxu0 %v955
    %1078 = vmatpush1.msra.mxu0 %v954
    %1079 = vmatprep.subr.mxu0 %v959
    %1080 = vmatpush1.msra.mxu0 %v958
    %1081 = vmatprep.subr.mxu0 %v963
    %1082 = vmatpush1.msra.mxu0 %v962
    %1083 = vmatprep.subr.mxu0 %v967
    %1084 = vmatpush1.msra.mxu0 %v966
    %1085 = vmatprep.subr.mxu0 %v971
    %1086 = vmatpush1.msra.mxu0 %v970
    %1087 = vmatprep.subr.mxu0 %v975
    %1088 = vmatpush1.msra.mxu0 %v974
    %1089 = vmatprep.subr.mxu0 %v979
    %1090 = vmatpush1.msra.mxu0 %v978
    %1091 = vmatprep.subr.mxu0 %v983
    %1092 = vmatpush1.msra.mxu0 %v982
    %1093 = vmatprep.subr.mxu0 %v987
    %1094 = vmatpush1.msra.mxu0 %v986
    %1095 = vmatprep.subr.mxu0 %v991
    %1096 = vmatpush1.msra.mxu0 %v990
    %1097 = vmatprep.subr.mxu0 %v995
    %1098 = vmatpush1.msra.mxu0 %v994
    %1099 = vmatprep.subr.mxu0 0.0
    %1100 = vmatpush1.msra.mxu0 0.0
    %1101 = vmatprep.subr.mxu0 0.0
    %1102 = vmatpush1.msra.mxu0 0.0
    %1103 = vmatprep.subr.mxu0 0.0
    %1104 = vmatpush1.msra.mxu0 0.0
    %1105 = vmatprep.subr.mxu0 0.0
    %1106 = vmatpush1.msra.mxu0 0.0
    %1107 = vmatprep.subr.mxu0 0.0
    %1108 = vmatpush1.msra.mxu0 0.0
    %1109 = vmatprep.subr.mxu0 0.0
    %1110 = vmatpush1.msra.mxu0 0.0
    %1111 = vmatprep.subr.mxu0 0.0
    %1112 = vmatpush1.msra.mxu0 0.0
    %1113 = vmatprep.subr.mxu0 0.0
    %1114 = vmatpush1.msra.mxu0 0.0
    %1115 = vmatprep.subr.mxu0 0.0
    %1116 = vmatpush1.msra.mxu0 0.0
    %1117 = vmatprep.subr.mxu0 0.0
    %1118 = vmatpush1.msra.mxu0 0.0
    %1119 = vmatprep.subr.mxu0 0.0
    %1120 = vmatpush1.msra.mxu0 0.0
    %1121 = vmatprep.subr.mxu0 0.0
    %1122 = vmatpush1.msra.mxu0 0.0
    %1123 = vmatprep.subr.mxu0 0.0
    %1124 = vmatpush1.msra.mxu0 0.0
    %1125 = vmatprep.subr.mxu0 0.0
    %1126 = vmatpush1.msra.mxu0 0.0
    %1127 = vmatprep.subr.mxu0 0.0
    %1128 = vmatpush1.msra.mxu0 0.0
    %1129 = vmatprep.subr.mxu0 0.0
    %1130 = vmatpush1.msra.mxu0 0.0
    %1131 = vmatprep.mubr.f32.mxu0 0.0
    %1132 = vmatmul.mubr.f32.gmra.mrb[0].mxu0 %v922
    %v1133 = vpop.f32.mrb[0].mxu0
    %v1134 = vadd.f32 0.0, %v1133
    %v1135 = vpop.f32.mrb[0].mxu0
    %v1136 = vadd.f32 0.0, %v1135
    %1137 = vdwg.mxu0
    %v1138 = vadd.f32 %v928, %v1063
    %v1139 = vadd.f32 %v929, %v1065
    %v1140 = vadd.f32 %v930, %v1134
    %v1141 = vadd.f32 %v931, %v1136
    %v1142 = vmul.f32 %v1138, 0.5
    %v1143 = vtanh.pop %v1142
    %v1144 = vmul.f32 %v1143, 0.5
    %v1145 = vadd.f32 %v1144, 0.5
    %v1146 = vmul.f32 %v1139, 0.5
    %v1147 = vtanh.pop %v1146
    %v1148 = vmul.f32 %v1147, 0.5
    %v1149 = vadd.f32 %v1148, 0.5
    %v1150 = vtanh.pop %v1140
    %v1151 = vmul.f32 %v1141, 0.5
    %v1152 = vtanh.pop %v1151
    %v1153 = vmul.f32 %v1152, 0.5
    %v1154 = vadd.f32 %v1153, 0.5
    %v1155 = vmul.f32 %v1149, %v920
    %v1156 = vmul.f32 %v1145, %v1150
    %v1157 = vadd.f32 %v1155, %v1156
    %v1158 = vtanh.pop %v1157
    %v1159 = vmul.f32 %v1154, %v1158
    %s1160 = scalar_lea.vmem [#allocation3], 16
    %1161 = vst [vmem:[%s1160] sm:$0xff] %v1159
    %s1162 = smul.u32 3, 4
    %s1163 = smul.addr %s1162, 8
    %s1164 = scalar_lea.vmem [#allocation2], %s1163
    %v1165 = vld [vmem:[%s1164] sm:$0xff]
    %v1166 = vld [vmem:[%s1164 + $0x8] sm:$0xff]
    %v1167 = vld [vmem:[%s1164 + $0x10] sm:$0xff]
    %v1168 = vld [vmem:[%s1164 + $0x18] sm:$0xff]
    %v1169 = vld [vmem:[#allocation12] sm:$0xff]
    %v1170 = vld [vmem:[#allocation12 + $0x8] sm:$0xff]
    %v1171 = vld [vmem:[#allocation12 + $0x10] sm:$0xff]
    %v1172 = vld [vmem:[#allocation12 + $0x18] sm:$0xff]
    %v1173 = vld [vmem:[#allocation12 + $0x20] sm:$0xff]
    %v1174 = vld [vmem:[#allocation12 + $0x28] sm:$0xff]
    %v1175 = vld [vmem:[#allocation12 + $0x30] sm:$0xff]
    %v1176 = vld [vmem:[#allocation12 + $0x38] sm:$0xff]
    %v1177 = vld [vmem:[#allocation12 + $0x40] sm:$0xff]
    %v1178 = vld [vmem:[#allocation12 + $0x48] sm:$0xff]
    %v1179 = vld [vmem:[#allocation12 + $0x50] sm:$0xff]
    %v1180 = vld [vmem:[#allocation12 + $0x58] sm:$0xff]
    %v1181 = vld [vmem:[#allocation12 + $0x60] sm:$0xff]
    %v1182 = vld [vmem:[#allocation12 + $0x68] sm:$0xff]
    %v1183 = vld [vmem:[#allocation12 + $0x70] sm:$0xff]
    %v1184 = vld [vmem:[#allocation12 + $0x78] sm:$0xff]
    %v1185 = vld [vmem:[#allocation12 + $0x80] sm:$0xff]
    %v1186 = vld [vmem:[#allocation12 + $0x88] sm:$0xff]
    %v1187 = vld [vmem:[#allocation12 + $0x90] sm:$0xff]
    %v1188 = vld [vmem:[#allocation12 + $0x98] sm:$0xff]
    %v1189 = vld [vmem:[#allocation12 + $0xa0] sm:$0xff]
    %v1190 = vld [vmem:[#allocation12 + $0xa8] sm:$0xff]
    %v1191 = vld [vmem:[#allocation12 + $0xb0] sm:$0xff]
    %v1192 = vld [vmem:[#allocation12 + $0xb8] sm:$0xff]
    %v1193 = vld [vmem:[#allocation12 + $0xc0] sm:$0xff]
    %v1194 = vld [vmem:[#allocation12 + $0xc8] sm:$0xff]
    %v1195 = vld [vmem:[#allocation12 + $0xd0] sm:$0xff]
    %v1196 = vld [vmem:[#allocation12 + $0xd8] sm:$0xff]
    %v1197 = vld [vmem:[#allocation12 + $0xe0] sm:$0xff]
    %v1198 = vld [vmem:[#allocation12 + $0xe8] sm:$0xff]
    %v1199 = vld [vmem:[#allocation12 + $0xf0] sm:$0xff]
    %v1200 = vld [vmem:[#allocation12 + $0xf8] sm:$0xff]
    %v1201 = vld [vmem:[#allocation12 + $0x100] sm:$0xff]
    %v1202 = vld [vmem:[#allocation12 + $0x108] sm:$0xff]
    %v1203 = vld [vmem:[#allocation12 + $0x110] sm:$0xff]
    %v1204 = vld [vmem:[#allocation12 + $0x118] sm:$0xff]
    %v1205 = vld [vmem:[#allocation12 + $0x120] sm:$0xff]
    %v1206 = vld [vmem:[#allocation12 + $0x128] sm:$0xff]
    %v1207 = vld [vmem:[#allocation12 + $0x130] sm:$0xff]
    %v1208 = vld [vmem:[#allocation12 + $0x138] sm:$0xff]
    %v1209 = vld [vmem:[#allocation12 + $0x140] sm:$0xff]
    %v1210 = vld [vmem:[#allocation12 + $0x148] sm:$0xff]
    %v1211 = vld [vmem:[#allocation12 + $0x150] sm:$0xff]
    %v1212 = vld [vmem:[#allocation12 + $0x158] sm:$0xff]
    %v1213 = vld [vmem:[#allocation12 + $0x160] sm:$0xff]
    %v1214 = vld [vmem:[#allocation12 + $0x168] sm:$0xff]
    %v1215 = vld [vmem:[#allocation12 + $0x170] sm:$0xff]
    %v1216 = vld [vmem:[#allocation12 + $0x178] sm:$0xff]
    %v1217 = vld [vmem:[#allocation12 + $0x180] sm:$0xff]
    %v1218 = vld [vmem:[#allocation12 + $0x188] sm:$0xff]
    %v1219 = vld [vmem:[#allocation12 + $0x190] sm:$0xff]
    %v1220 = vld [vmem:[#allocation12 + $0x198] sm:$0xff]
    %v1221 = vld [vmem:[#allocation12 + $0x1a0] sm:$0xff]
    %v1222 = vld [vmem:[#allocation12 + $0x1a8] sm:$0xff]
    %v1223 = vld [vmem:[#allocation12 + $0x1b0] sm:$0xff]
    %v1224 = vld [vmem:[#allocation12 + $0x1b8] sm:$0xff]
    %v1225 = vld [vmem:[#allocation12 + $0x1c0] sm:$0xff]
    %v1226 = vld [vmem:[#allocation12 + $0x1c8] sm:$0xff]
    %v1227 = vld [vmem:[#allocation12 + $0x1d0] sm:$0xff]
    %v1228 = vld [vmem:[#allocation12 + $0x1d8] sm:$0xff]
    %v1229 = vld [vmem:[#allocation12 + $0x1e0] sm:$0xff]
    %v1230 = vld [vmem:[#allocation12 + $0x1e8] sm:$0xff]
    %v1231 = vld [vmem:[#allocation12 + $0x1f0] sm:$0xff]
    %v1232 = vld [vmem:[#allocation12 + $0x1f8] sm:$0xff]
    %1233 = vmatprep.subr.mxu0 %v1170
    %1234 = vmatpush1.msra.mxu0 %v1169
    %1235 = vmatprep.subr.mxu0 %v1174
    %1236 = vmatpush1.msra.mxu0 %v1173
    %1237 = vmatprep.subr.mxu0 %v1178
    %1238 = vmatpush1.msra.mxu0 %v1177
    %1239 = vmatprep.subr.mxu0 %v1182
    %1240 = vmatpush1.msra.mxu0 %v1181
    %1241 = vmatprep.subr.mxu0 %v1186
    %1242 = vmatpush1.msra.mxu0 %v1185
    %1243 = vmatprep.subr.mxu0 %v1190
    %1244 = vmatpush1.msra.mxu0 %v1189
    %1245 = vmatprep.subr.mxu0 %v1194
    %1246 = vmatpush1.msra.mxu0 %v1193
    %1247 = vmatprep.subr.mxu0 %v1198
    %1248 = vmatpush1.msra.mxu0 %v1197
    %1249 = vmatprep.subr.mxu0 %v1202
    %1250 = vmatpush1.msra.mxu0 %v1201
    %1251 = vmatprep.subr.mxu0 %v1206
    %1252 = vmatpush1.msra.mxu0 %v1205
    %1253 = vmatprep.subr.mxu0 %v1210
    %1254 = vmatpush1.msra.mxu0 %v1209
    %1255 = vmatprep.subr.mxu0 %v1214
    %1256 = vmatpush1.msra.mxu0 %v1213
    %1257 = vmatprep.subr.mxu0 %v1218
    %1258 = vmatpush1.msra.mxu0 %v1217
    %1259 = vmatprep.subr.mxu0 %v1222
    %1260 = vmatpush1.msra.mxu0 %v1221
    %1261 = vmatprep.subr.mxu0 %v1226
    %1262 = vmatpush1.msra.mxu0 %v1225
    %1263 = vmatprep.subr.mxu0 %v1230
    %1264 = vmatpush1.msra.mxu0 %v1229
    %1265 = vmatprep.subr.mxu0 0.0
    %1266 = vmatpush1.msra.mxu0 0.0
    %1267 = vmatprep.subr.mxu0 0.0
    %1268 = vmatpush1.msra.mxu0 0.0
    %1269 = vmatprep.subr.mxu0 0.0
    %1270 = vmatpush1.msra.mxu0 0.0
    %1271 = vmatprep.subr.mxu0 0.0
    %1272 = vmatpush1.msra.mxu0 0.0
    %1273 = vmatprep.subr.mxu0 0.0
    %1274 = vmatpush1.msra.mxu0 0.0
    %1275 = vmatprep.subr.mxu0 0.0
    %1276 = vmatpush1.msra.mxu0 0.0
    %1277 = vmatprep.subr.mxu0 0.0
    %1278 = vmatpush1.msra.mxu0 0.0
    %1279 = vmatprep.subr.mxu0 0.0
    %1280 = vmatpush1.msra.mxu0 0.0
    %1281 = vmatprep.subr.mxu0 0.0
    %1282 = vmatpush1.msra.mxu0 0.0
    %1283 = vmatprep.subr.mxu0 0.0
    %1284 = vmatpush1.msra.mxu0 0.0
    %1285 = vmatprep.subr.mxu0 0.0
    %1286 = vmatpush1.msra.mxu0 0.0
    %1287 = vmatprep.subr.mxu0 0.0
    %1288 = vmatpush1.msra.mxu0 0.0
    %1289 = vmatprep.subr.mxu0 0.0
    %1290 = vmatpush1.msra.mxu0 0.0
    %1291 = vmatprep.subr.mxu0 0.0
    %1292 = vmatpush1.msra.mxu0 0.0
    %1293 = vmatprep.subr.mxu0 0.0
    %1294 = vmatpush1.msra.mxu0 0.0
    %1295 = vmatprep.subr.mxu0 0.0
    %1296 = vmatpush1.msra.mxu0 0.0
    %1297 = vmatprep.mubr.f32.mxu0 0.0
    %1298 = vmatmul.mubr.f32.gmra.mrb[0].mxu0 %v1159
    %v1299 = vpop.f32.mrb[0].mxu0
    %v1300 = vadd.f32 0.0, %v1299
    %v1301 = vpop.f32.mrb[0].mxu0
    %v1302 = vadd.f32 0.0, %v1301
    %1303 = vdwg.mxu0
    %1304 = vmatprep.subr.mxu0 %v1172
    %1305 = vmatpush1.msra.mxu0 %v1171
    %1306 = vmatprep.subr.mxu0 %v1176
    %1307 = vmatpush1.msra.mxu0 %v1175
    %1308 = vmatprep.subr.mxu0 %v1180
    %1309 = vmatpush1.msra.mxu0 %v1179
    %1310 = vmatprep.subr.mxu0 %v1184
    %1311 = vmatpush1.msra.mxu0 %v1183
    %1312 = vmatprep.subr.mxu0 %v1188
    %1313 = vmatpush1.msra.mxu0 %v1187
    %1314 = vmatprep.subr.mxu0 %v1192
    %1315 = vmatpush1.msra.mxu0 %v1191
    %1316 = vmatprep.subr.mxu0 %v1196
    %1317 = vmatpush1.msra.mxu0 %v1195
    %1318 = vmatprep.subr.mxu0 %v1200
    %1319 = vmatpush1.msra.mxu0 %v1199
    %1320 = vmatprep.subr.mxu0 %v1204
    %1321 = vmatpush1.msra.mxu0 %v1203
    %1322 = vmatprep.subr.mxu0 %v1208
    %1323 = vmatpush1.msra.mxu0 %v1207
    %1324 = vmatprep.subr.mxu0 %v1212
    %1325 = vmatpush1.msra.mxu0 %v1211
    %1326 = vmatprep.subr.mxu0 %v1216
    %1327 = vmatpush1.msra.mxu0 %v1215
    %1328 = vmatprep.subr.mxu0 %v1220
    %1329 = vmatpush1.msra.mxu0 %v1219
    %1330 = vmatprep.subr.mxu0 %v1224
    %1331 = vmatpush1.msra.mxu0 %v1223
    %1332 = vmatprep.subr.mxu0 %v1228
    %1333 = vmatpush1.msra.mxu0 %v1227
    %1334 = vmatprep.subr.mxu0 %v1232
    %1335 = vmatpush1.msra.mxu0 %v1231
    %1336 = vmatprep.subr.mxu0 0.0
    %1337 = vmatpush1.msra.mxu0 0.0
    %1338 = vmatprep.subr.mxu0 0.0
    %1339 = vmatpush1.msra.mxu0 0.0
    %1340 = vmatprep.subr.mxu0 0.0
    %1341 = vmatpush1.msra.mxu0 0.0
    %1342 = vmatprep.subr.mxu0 0.0
    %1343 = vmatpush1.msra.mxu0 0.0
    %1344 = vmatprep.subr.mxu0 0.0
    %1345 = vmatpush1.msra.mxu0 0.0
    %1346 = vmatprep.subr.mxu0 0.0
    %1347 = vmatpush1.msra.mxu0 0.0
    %1348 = vmatprep.subr.mxu0 0.0
    %1349 = vmatpush1.msra.mxu0 0.0
    %1350 = vmatprep.subr.mxu0 0.0
    %1351 = vmatpush1.msra.mxu0 0.0
    %1352 = vmatprep.subr.mxu0 0.0
    %1353 = vmatpush1.msra.mxu0 0.0
    %1354 = vmatprep.subr.mxu0 0.0
    %1355 = vmatpush1.msra.mxu0 0.0
    %1356 = vmatprep.subr.mxu0 0.0
    %1357 = vmatpush1.msra.mxu0 0.0
    %1358 = vmatprep.subr.mxu0 0.0
    %1359 = vmatpush1.msra.mxu0 0.0
    %1360 = vmatprep.subr.mxu0 0.0
    %1361 = vmatpush1.msra.mxu0 0.0
    %1362 = vmatprep.subr.mxu0 0.0
    %1363 = vmatpush1.msra.mxu0 0.0
    %1364 = vmatprep.subr.mxu0 0.0
    %1365 = vmatpush1.msra.mxu0 0.0
    %1366 = vmatprep.subr.mxu0 0.0
    %1367 = vmatpush1.msra.mxu0 0.0
    %1368 = vmatprep.mubr.f32.mxu0 0.0
    %1369 = vmatmul.mubr.f32.gmra.mrb[0].mxu0 %v1159
    %v1370 = vpop.f32.mrb[0].mxu0
    %v1371 = vadd.f32 0.0, %v1370
    %v1372 = vpop.f32.mrb[0].mxu0
    %v1373 = vadd.f32 0.0, %v1372
    %1374 = vdwg.mxu0
    %v1375 = vadd.f32 %v1165, %v1300
    %v1376 = vadd.f32 %v1166, %v1302
    %v1377 = vadd.f32 %v1167, %v1371
    %v1378 = vadd.f32 %v1168, %v1373
    %v1379 = vmul.f32 %v1375, 0.5
    %v1380 = vtanh.pop %v1379
    %v1381 = vmul.f32 %v1380, 0.5
    %v1382 = vadd.f32 %v1381, 0.5
    %v1383 = vmul.f32 %v1376, 0.5
    %v1384 = vtanh.pop %v1383
    %v1385 = vmul.f32 %v1384, 0.5
    %v1386 = vadd.f32 %v1385, 0.5
    %v1387 = vtanh.pop %v1377
    %v1388 = vmul.f32 %v1378, 0.5
    %v1389 = vtanh.pop %v1388
    %v1390 = vmul.f32 %v1389, 0.5
    %v1391 = vadd.f32 %v1390, 0.5
    %v1392 = vmul.f32 %v1386, %v1157
    %v1393 = vmul.f32 %v1382, %v1387
    %v1394 = vadd.f32 %v1392, %v1393
    %v1395 = vtanh.pop %v1394
    %v1396 = vmul.f32 %v1391, %v1395
    %s1397 = scalar_lea.vmem [#allocation3], 24
    %1398 = vst [vmem:[%s1397] sm:$0xff] %v1396
    %s1399 = smul.u32 4, 4
    %s1400 = smul.addr %s1399, 8
    %s1401 = scalar_lea.vmem [#allocation2], %s1400
    %v1402 = vld [vmem:[%s1401] sm:$0xff]
    %v1403 = vld [vmem:[%s1401 + $0x8] sm:$0xff]
    %v1404 = vld [vmem:[%s1401 + $0x10] sm:$0xff]
    %v1405 = vld [vmem:[%s1401 + $0x18] sm:$0xff]
    %v1406 = vld [vmem:[#allocation12] sm:$0xff]
    %v1407 = vld [vmem:[#allocation12 + $0x8] sm:$0xff]
    %v1408 = vld [vmem:[#allocation12 + $0x10] sm:$0xff]
    %v1409 = vld [vmem:[#allocation12 + $0x18] sm:$0xff]
    %v1410 = vld [vmem:[#allocation12 + $0x20] sm:$0xff]
    %v1411 = vld [vmem:[#allocation12 + $0x28] sm:$0xff]
    %v1412 = vld [vmem:[#allocation12 + $0x30] sm:$0xff]
    %v1413 = vld [vmem:[#allocation12 + $0x38] sm:$0xff]
    %v1414 = vld [vmem:[#allocation12 + $0x40] sm:$0xff]
    %v1415 = vld [vmem:[#allocation12 + $0x48] sm:$0xff]
    %v1416 = vld [vmem:[#allocation12 + $0x50] sm:$0xff]
    %v1417 = vld [vmem:[#allocation12 + $0x58] sm:$0xff]
    %v1418 = vld [vmem:[#allocation12 + $0x60] sm:$0xff]
    %v1419 = vld [vmem:[#allocation12 + $0x68] sm:$0xff]
    %v1420 = vld [vmem:[#allocation12 + $0x70] sm:$0xff]
    %v1421 = vld [vmem:[#allocation12 + $0x78] sm:$0xff]
    %v1422 = vld [vmem:[#allocation12 + $0x80] sm:$0xff]
    %v1423 = vld [vmem:[#allocation12 + $0x88] sm:$0xff]
    %v1424 = vld [vmem:[#allocation12 + $0x90] sm:$0xff]
    %v1425 = vld [vmem:[#allocation12 + $0x98] sm:$0xff]
    %v1426 = vld [vmem:[#allocation12 + $0xa0] sm:$0xff]
    %v1427 = vld [vmem:[#allocation12 + $0xa8] sm:$0xff]
    %v1428 = vld [vmem:[#allocation12 + $0xb0] sm:$0xff]
    %v1429 = vld [vmem:[#allocation12 + $0xb8] sm:$0xff]
    %v1430 = vld [vmem:[#allocation12 + $0xc0] sm:$0xff]
    %v1431 = vld [vmem:[#allocation12 + $0xc8] sm:$0xff]
    %v1432 = vld [vmem:[#allocation12 + $0xd0] sm:$0xff]
    %v1433 = vld [vmem:[#allocation12 + $0xd8] sm:$0xff]
    %v1434 = vld [vmem:[#allocation12 + $0xe0] sm:$0xff]
    %v1435 = vld [vmem:[#allocation12 + $0xe8] sm:$0xff]
    %v1436 = vld [vmem:[#allocation12 + $0xf0] sm:$0xff]
    %v1437 = vld [vmem:[#allocation12 + $0xf8] sm:$0xff]
    %v1438 = vld [vmem:[#allocation12 + $0x100] sm:$0xff]
    %v1439 = vld [vmem:[#allocation12 + $0x108] sm:$0xff]
    %v1440 = vld [vmem:[#allocation12 + $0x110] sm:$0xff]
    %v1441 = vld [vmem:[#allocation12 + $0x118] sm:$0xff]
    %v1442 = vld [vmem:[#allocation12 + $0x120] sm:$0xff]
    %v1443 = vld [vmem:[#allocation12 + $0x128] sm:$0xff]
    %v1444 = vld [vmem:[#allocation12 + $0x130] sm:$0xff]
    %v1445 = vld [vmem:[#allocation12 + $0x138] sm:$0xff]
    %v1446 = vld [vmem:[#allocation12 + $0x140] sm:$0xff]
    %v1447 = vld [vmem:[#allocation12 + $0x148] sm:$0xff]
    %v1448 = vld [vmem:[#allocation12 + $0x150] sm:$0xff]
    %v1449 = vld [vmem:[#allocation12 + $0x158] sm:$0xff]
    %v1450 = vld [vmem:[#allocation12 + $0x160] sm:$0xff]
    %v1451 = vld [vmem:[#allocation12 + $0x168] sm:$0xff]
    %v1452 = vld [vmem:[#allocation12 + $0x170] sm:$0xff]
    %v1453 = vld [vmem:[#allocation12 + $0x178] sm:$0xff]
    %v1454 = vld [vmem:[#allocation12 + $0x180] sm:$0xff]
    %v1455 = vld [vmem:[#allocation12 + $0x188] sm:$0xff]
    %v1456 = vld [vmem:[#allocation12 + $0x190] sm:$0xff]
    %v1457 = vld [vmem:[#allocation12 + $0x198] sm:$0xff]
    %v1458 = vld [vmem:[#allocation12 + $0x1a0] sm:$0xff]
    %v1459 = vld [vmem:[#allocation12 + $0x1a8] sm:$0xff]
    %v1460 = vld [vmem:[#allocation12 + $0x1b0] sm:$0xff]
    %v1461 = vld [vmem:[#allocation12 + $0x1b8] sm:$0xff]
    %v1462 = vld [vmem:[#allocation12 + $0x1c0] sm:$0xff]
    %v1463 = vld [vmem:[#allocation12 + $0x1c8] sm:$0xff]
    %v1464 = vld [vmem:[#allocation12 + $0x1d0] sm:$0xff]
    %v1465 = vld [vmem:[#allocation12 + $0x1d8] sm:$0xff]
    %v1466 = vld [vmem:[#allocation12 + $0x1e0] sm:$0xff]
    %v1467 = vld [vmem:[#allocation12 + $0x1e8] sm:$0xff]
    %v1468 = vld [vmem:[#allocation12 + $0x1f0] sm:$0xff]
    %v1469 = vld [vmem:[#allocation12 + $0x1f8] sm:$0xff]
    %1470 = vmatprep.subr.mxu0 %v1407
    %1471 = vmatpush1.msra.mxu0 %v1406
    %1472 = vmatprep.subr.mxu0 %v1411
    %1473 = vmatpush1.msra.mxu0 %v1410
    %1474 = vmatprep.subr.mxu0 %v1415
    %1475 = vmatpush1.msra.mxu0 %v1414
    %1476 = vmatprep.subr.mxu0 %v1419
    %1477 = vmatpush1.msra.mxu0 %v1418
    %1478 = vmatprep.subr.mxu0 %v1423
    %1479 = vmatpush1.msra.mxu0 %v1422
    %1480 = vmatprep.subr.mxu0 %v1427
    %1481 = vmatpush1.msra.mxu0 %v1426
    %1482 = vmatprep.subr.mxu0 %v1431
    %1483 = vmatpush1.msra.mxu0 %v1430
    %1484 = vmatprep.subr.mxu0 %v1435
    %1485 = vmatpush1.msra.mxu0 %v1434
    %1486 = vmatprep.subr.mxu0 %v1439
    %1487 = vmatpush1.msra.mxu0 %v1438
    %1488 = vmatprep.subr.mxu0 %v1443
    %1489 = vmatpush1.msra.mxu0 %v1442
    %1490 = vmatprep.subr.mxu0 %v1447
    %1491 = vmatpush1.msra.mxu0 %v1446
    %1492 = vmatprep.subr.mxu0 %v1451
    %1493 = vmatpush1.msra.mxu0 %v1450
    %1494 = vmatprep.subr.mxu0 %v1455
    %1495 = vmatpush1.msra.mxu0 %v1454
    %1496 = vmatprep.subr.mxu0 %v1459
    %1497 = vmatpush1.msra.mxu0 %v1458
    %1498 = vmatprep.subr.mxu0 %v1463
    %1499 = vmatpush1.msra.mxu0 %v1462
    %1500 = vmatprep.subr.mxu0 %v1467
    %1501 = vmatpush1.msra.mxu0 %v1466
    %1502 = vmatprep.subr.mxu0 0.0
    %1503 = vmatpush1.msra.mxu0 0.0
    %1504 = vmatprep.subr.mxu0 0.0
    %1505 = vmatpush1.msra.mxu0 0.0
    %1506 = vmatprep.subr.mxu0 0.0
    %1507 = vmatpush1.msra.mxu0 0.0
    %1508 = vmatprep.subr.mxu0 0.0
    %1509 = vmatpush1.msra.mxu0 0.0
    %1510 = vmatprep.subr.mxu0 0.0
    %1511 = vmatpush1.msra.mxu0 0.0
    %1512 = vmatprep.subr.mxu0 0.0
    %1513 = vmatpush1.msra.mxu0 0.0
    %1514 = vmatprep.subr.mxu0 0.0
    %1515 = vmatpush1.msra.mxu0 0.0
    %1516 = vmatprep.subr.mxu0 0.0
    %1517 = vmatpush1.msra.mxu0 0.0
    %1518 = vmatprep.subr.mxu0 0.0
    %1519 = vmatpush1.msra.mxu0 0.0
    %1520 = vmatprep.subr.mxu0 0.0
    %1521 = vmatpush1.msra.mxu0 0.0
    %1522 = vmatprep.subr.mxu0 0.0
    %1523 = vmatpush1.msra.mxu0 0.0
    %1524 = vmatprep.subr.mxu0 0.0
    %1525 = vmatpush1.msra.mxu0 0.0
    %1526 = vmatprep.subr.mxu0 0.0
    %1527 = vmatpush1.msra.mxu0 0.0
    %1528 = vmatprep.subr.mxu0 0.0
    %1529 = vmatpush1.msra.mxu0 0.0
    %1530 = vmatprep.subr.mxu0 0.0
    %1531 = vmatpush1.msra.mxu0 0.0
    %1532 = vmatprep.subr.mxu0 0.0
    %1533 = vmatpush1.msra.mxu0 0.0
    %1534 = vmatprep.mubr.f32.mxu0 0.0
    %1535 = vmatmul.mubr.f32.gmra.mrb[0].mxu0 %v1396
    %v1536 = vpop.f32.mrb[0].mxu0
    %v1537 = vadd.f32 0.0, %v1536
    %v1538 = vpop.f32.mrb[0].mxu0
    %v1539 = vadd.f32 0.0, %v1538
    %1540 = vdwg.mxu0
    %1541 = vmatprep.subr.mxu0 %v1409
    %1542 = vmatpush1.msra.mxu0 %v1408
    %1543 = vmatprep.subr.mxu0 %v1413
    %1544 = vmatpush1.msra.mxu0 %v1412
    %1545 = vmatprep.subr.mxu0 %v1417
    %1546 = vmatpush1.msra.mxu0 %v1416
    %1547 = vmatprep.subr.mxu0 %v1421
    %1548 = vmatpush1.msra.mxu0 %v1420
    %1549 = vmatprep.subr.mxu0 %v1425
    %1550 = vmatpush1.msra.mxu0 %v1424
    %1551 = vmatprep.subr.mxu0 %v1429
    %1552 = vmatpush1.msra.mxu0 %v1428
    %1553 = vmatprep.subr.mxu0 %v1433
    %1554 = vmatpush1.msra.mxu0 %v1432
    %1555 = vmatprep.subr.mxu0 %v1437
    %1556 = vmatpush1.msra.mxu0 %v1436
    %1557 = vmatprep.subr.mxu0 %v1441
    %1558 = vmatpush1.msra.mxu0 %v1440
    %1559 = vmatprep.subr.mxu0 %v1445
    %1560 = vmatpush1.msra.mxu0 %v1444
    %1561 = vmatprep.subr.mxu0 %v1449
    %1562 = vmatpush1.msra.mxu0 %v1448
    %1563 = vmatprep.subr.mxu0 %v1453
    %1564 = vmatpush1.msra.mxu0 %v1452
    %1565 = vmatprep.subr.mxu0 %v1457
    %1566 = vmatpush1.msra.mxu0 %v1456
    %1567 = vmatprep.subr.mxu0 %v1461
    %1568 = vmatpush1.msra.mxu0 %v1460
    %1569 = vmatprep.subr.mxu0 %v1465
    %1570 = vmatpush1.msra.mxu0 %v1464
    %1571 = vmatprep.subr.mxu0 %v1469
    %1572 = vmatpush1.msra.mxu0 %v1468
    %1573 = vmatprep.subr.mxu0 0.0
    %1574 = vmatpush1.msra.mxu0 0.0
    %1575 = vmatprep.subr.mxu0 0.0
    %1576 = vmatpush1.msra.mxu0 0.0
    %1577 = vmatprep.subr.mxu0 0.0
    %1578 = vmatpush1.msra.mxu0 0.0
    %1579 = vmatprep.subr.mxu0 0.0
    %1580 = vmatpush1.msra.mxu0 0.0
    %1581 = vmatprep.subr.mxu0 0.0
    %1582 = vmatpush1.msra.mxu0 0.0
    %1583 = vmatprep.subr.mxu0 0.0
    %1584 = vmatpush1.msra.mxu0 0.0
    %1585 = vmatprep.subr.mxu0 0.0
    %1586 = vmatpush1.msra.mxu0 0.0
    %1587 = vmatprep.subr.mxu0 0.0
    %1588 = vmatpush1.msra.mxu0 0.0
    %1589 = vmatprep.subr.mxu0 0.0
    %1590 = vmatpush1.msra.mxu0 0.0
    %1591 = vmatprep.subr.mxu0 0.0
    %1592 = vmatpush1.msra.mxu0 0.0
    %1593 = vmatprep.subr.mxu0 0.0
    %1594 = vmatpush1.msra.mxu0 0.0
    %1595 = vmatprep.subr.mxu0 0.0
    %1596 = vmatpush1.msra.mxu0 0.0
    %1597 = vmatprep.subr.mxu0 0.0
    %1598 = vmatpush1.msra.mxu0 0.0
    %1599 = vmatprep.subr.mxu0 0.0
    %1600 = vmatpush1.msra.mxu0 0.0
    %1601 = vmatprep.subr.mxu0 0.0
    %1602 = vmatpush1.msra.mxu0 0.0
    %1603 = vmatprep.subr.mxu0 0.0
    %1604 = vmatpush1.msra.mxu0 0.0
    %1605 = vmatprep.mubr.f32.mxu0 0.0
    %1606 = vmatmul.mubr.f32.gmra.mrb[0].mxu0 %v1396
    %v1607 = vpop.f32.mrb[0].mxu0
    %v1608 = vadd.f32 0.0, %v1607
    %v1609 = vpop.f32.mrb[0].mxu0
    %v1610 = vadd.f32 0.0, %v1609
    %1611 = vdwg.mxu0
    %v1612 = vadd.f32 %v1402, %v1537
    %v1613 = vadd.f32 %v1403, %v1539
    %v1614 = vadd.f32 %v1404, %v1608
    %v1615 = vadd.f32 %v1405, %v1610
    %v1616 = vmul.f32 %v1612, 0.5
    %v1617 = vtanh.pop %v1616
    %v1618 = vmul.f32 %v1617, 0.5
    %v1619 = vadd.f32 %v1618, 0.5
    %v1620 = vmul.f32 %v1613, 0.5
    %v1621 = vtanh.pop %v1620
    %v1622 = vmul.f32 %v1621, 0.5
    %v1623 = vadd.f32 %v1622, 0.5
    %v1624 = vtanh.pop %v1614
    %v1625 = vmul.f32 %v1615, 0.5
    %v1626 = vtanh.pop %v1625
    %v1627 = vmul.f32 %v1626, 0.5
    %v1628 = vadd.f32 %v1627, 0.5
    %v1629 = vmul.f32 %v1623, %v1394
    %v1630 = vmul.f32 %v1619, %v1624
    %v1631 = vadd.f32 %v1629, %v1630
    %v1632 = vtanh.pop %v1631
    %v1633 = vmul.f32 %v1628, %v1632
    %s1634 = scalar_lea.vmem [#allocation3], 32
    %1635 = vst [vmem:[%s1634] sm:$0xff] %v1633
    %s1636 = smul.u32 5, 4
    %s1637 = smul.addr %s1636, 8
    %s1638 = scalar_lea.vmem [#allocation2], %s1637
    %v1639 = vld [vmem:[%s1638] sm:$0xff]
    %v1640 = vld [vmem:[%s1638 + $0x8] sm:$0xff]
    %v1641 = vld [vmem:[%s1638 + $0x10] sm:$0xff]
    %v1642 = vld [vmem:[%s1638 + $0x18] sm:$0xff]
    %v1643 = vld [vmem:[#allocation12] sm:$0xff]
    %v1644 = vld [vmem:[#allocation12 + $0x8] sm:$0xff]
    %v1645 = vld [vmem:[#allocation12 + $0x10] sm:$0xff]
    %v1646 = vld [vmem:[#allocation12 + $0x18] sm:$0xff]
    %v1647 = vld [vmem:[#allocation12 + $0x20] sm:$0xff]
    %v1648 = vld [vmem:[#allocation12 + $0x28] sm:$0xff]
    %v1649 = vld [vmem:[#allocation12 + $0x30] sm:$0xff]
    %v1650 = vld [vmem:[#allocation12 + $0x38] sm:$0xff]
    %v1651 = vld [vmem:[#allocation12 + $0x40] sm:$0xff]
    %v1652 = vld [vmem:[#allocation12 + $0x48] sm:$0xff]
    %v1653 = vld [vmem:[#allocation12 + $0x50] sm:$0xff]
    %v1654 = vld [vmem:[#allocation12 + $0x58] sm:$0xff]
    %v1655 = vld [vmem:[#allocation12 + $0x60] sm:$0xff]
    %v1656 = vld [vmem:[#allocation12 + $0x68] sm:$0xff]
    %v1657 = vld [vmem:[#allocation12 + $0x70] sm:$0xff]
    %v1658 = vld [vmem:[#allocation12 + $0x78] sm:$0xff]
    %v1659 = vld [vmem:[#allocation12 + $0x80] sm:$0xff]
    %v1660 = vld [vmem:[#allocation12 + $0x88] sm:$0xff]
    %v1661 = vld [vmem:[#allocation12 + $0x90] sm:$0xff]
    %v1662 = vld [vmem:[#allocation12 + $0x98] sm:$0xff]
    %v1663 = vld [vmem:[#allocation12 + $0xa0] sm:$0xff]
    %v1664 = vld [vmem:[#allocation12 + $0xa8] sm:$0xff]
    %v1665 = vld [vmem:[#allocation12 + $0xb0] sm:$0xff]
    %v1666 = vld [vmem:[#allocation12 + $0xb8] sm:$0xff]
    %v1667 = vld [vmem:[#allocation12 + $0xc0] sm:$0xff]
    %v1668 = vld [vmem:[#allocation12 + $0xc8] sm:$0xff]
    %v1669 = vld [vmem:[#allocation12 + $0xd0] sm:$0xff]
    %v1670 = vld [vmem:[#allocation12 + $0xd8] sm:$0xff]
    %v1671 = vld [vmem:[#allocation12 + $0xe0] sm:$0xff]
    %v1672 = vld [vmem:[#allocation12 + $0xe8] sm:$0xff]
    %v1673 = vld [vmem:[#allocation12 + $0xf0] sm:$0xff]
    %v1674 = vld [vmem:[#allocation12 + $0xf8] sm:$0xff]
    %v1675 = vld [vmem:[#allocation12 + $0x100] sm:$0xff]
    %v1676 = vld [vmem:[#allocation12 + $0x108] sm:$0xff]
    %v1677 = vld [vmem:[#allocation12 + $0x110] sm:$0xff]
    %v1678 = vld [vmem:[#allocation12 + $0x118] sm:$0xff]
    %v1679 = vld [vmem:[#allocation12 + $0x120] sm:$0xff]
    %v1680 = vld [vmem:[#allocation12 + $0x128] sm:$0xff]
    %v1681 = vld [vmem:[#allocation12 + $0x130] sm:$0xff]
    %v1682 = vld [vmem:[#allocation12 + $0x138] sm:$0xff]
    %v1683 = vld [vmem:[#allocation12 + $0x140] sm:$0xff]
    %v1684 = vld [vmem:[#allocation12 + $0x148] sm:$0xff]
    %v1685 = vld [vmem:[#allocation12 + $0x150] sm:$0xff]
    %v1686 = vld [vmem:[#allocation12 + $0x158] sm:$0xff]
    %v1687 = vld [vmem:[#allocation12 + $0x160] sm:$0xff]
    %v1688 = vld [vmem:[#allocation12 + $0x168] sm:$0xff]
    %v1689 = vld [vmem:[#allocation12 + $0x170] sm:$0xff]
    %v1690 = vld [vmem:[#allocation12 + $0x178] sm:$0xff]
    %v1691 = vld [vmem:[#allocation12 + $0x180] sm:$0xff]
    %v1692 = vld [vmem:[#allocation12 + $0x188] sm:$0xff]
    %v1693 = vld [vmem:[#allocation12 + $0x190] sm:$0xff]
    %v1694 = vld [vmem:[#allocation12 + $0x198] sm:$0xff]
    %v1695 = vld [vmem:[#allocation12 + $0x1a0] sm:$0xff]
    %v1696 = vld [vmem:[#allocation12 + $0x1a8] sm:$0xff]
    %v1697 = vld [vmem:[#allocation12 + $0x1b0] sm:$0xff]
    %v1698 = vld [vmem:[#allocation12 + $0x1b8] sm:$0xff]
    %v1699 = vld [vmem:[#allocation12 + $0x1c0] sm:$0xff]
    %v1700 = vld [vmem:[#allocation12 + $0x1c8] sm:$0xff]
    %v1701 = vld [vmem:[#allocation12 + $0x1d0] sm:$0xff]
    %v1702 = vld [vmem:[#allocation12 + $0x1d8] sm:$0xff]
    %v1703 = vld [vmem:[#allocation12 + $0x1e0] sm:$0xff]
    %v1704 = vld [vmem:[#allocation12 + $0x1e8] sm:$0xff]
    %v1705 = vld [vmem:[#allocation12 + $0x1f0] sm:$0xff]
    %v1706 = vld [vmem:[#allocation12 + $0x1f8] sm:$0xff]
    %1707 = vmatprep.subr.mxu0 %v1644
    %1708 = vmatpush1.msra.mxu0 %v1643
    %1709 = vmatprep.subr.mxu0 %v1648
    %1710 = vmatpush1.msra.mxu0 %v1647
    %1711 = vmatprep.subr.mxu0 %v1652
    %1712 = vmatpush1.msra.mxu0 %v1651
    %1713 = vmatprep.subr.mxu0 %v1656
    %1714 = vmatpush1.msra.mxu0 %v1655
    %1715 = vmatprep.subr.mxu0 %v1660
    %1716 = vmatpush1.msra.mxu0 %v1659
    %1717 = vmatprep.subr.mxu0 %v1664
    %1718 = vmatpush1.msra.mxu0 %v1663
    %1719 = vmatprep.subr.mxu0 %v1668
    %1720 = vmatpush1.msra.mxu0 %v1667
    %1721 = vmatprep.subr.mxu0 %v1672
    %1722 = vmatpush1.msra.mxu0 %v1671
    %1723 = vmatprep.subr.mxu0 %v1676
    %1724 = vmatpush1.msra.mxu0 %v1675
    %1725 = vmatprep.subr.mxu0 %v1680
    %1726 = vmatpush1.msra.mxu0 %v1679
    %1727 = vmatprep.subr.mxu0 %v1684
    %1728 = vmatpush1.msra.mxu0 %v1683
    %1729 = vmatprep.subr.mxu0 %v1688
    %1730 = vmatpush1.msra.mxu0 %v1687
    %1731 = vmatprep.subr.mxu0 %v1692
    %1732 = vmatpush1.msra.mxu0 %v1691
    %1733 = vmatprep.subr.mxu0 %v1696
    %1734 = vmatpush1.msra.mxu0 %v1695
    %1735 = vmatprep.subr.mxu0 %v1700
    %1736 = vmatpush1.msra.mxu0 %v1699
    %1737 = vmatprep.subr.mxu0 %v1704
    %1738 = vmatpush1.msra.mxu0 %v1703
    %1739 = vmatprep.subr.mxu0 0.0
    %1740 = vmatpush1.msra.mxu0 0.0
    %1741 = vmatprep.subr.mxu0 0.0
    %1742 = vmatpush1.msra.mxu0 0.0
    %1743 = vmatprep.subr.mxu0 0.0
    %1744 = vmatpush1.msra.mxu0 0.0
    %1745 = vmatprep.subr.mxu0 0.0
    %1746 = vmatpush1.msra.mxu0 0.0
    %1747 = vmatprep.subr.mxu0 0.0
    %1748 = vmatpush1.msra.mxu0 0.0
    %1749 = vmatprep.subr.mxu0 0.0
    %1750 = vmatpush1.msra.mxu0 0.0
    %1751 = vmatprep.subr.mxu0 0.0
    %1752 = vmatpush1.msra.mxu0 0.0
    %1753 = vmatprep.subr.mxu0 0.0
    %1754 = vmatpush1.msra.mxu0 0.0
    %1755 = vmatprep.subr.mxu0 0.0
    %1756 = vmatpush1.msra.mxu0 0.0
    %1757 = vmatprep.subr.mxu0 0.0
    %1758 = vmatpush1.msra.mxu0 0.0
    %1759 = vmatprep.subr.mxu0 0.0
    %1760 = vmatpush1.msra.mxu0 0.0
    %1761 = vmatprep.subr.mxu0 0.0
    %1762 = vmatpush1.msra.mxu0 0.0
    %1763 = vmatprep.subr.mxu0 0.0
    %1764 = vmatpush1.msra.mxu0 0.0
    %1765 = vmatprep.subr.mxu0 0.0
    %1766 = vmatpush1.msra.mxu0 0.0
    %1767 = vmatprep.subr.mxu0 0.0
    %1768 = vmatpush1.msra.mxu0 0.0
    %1769 = vmatprep.subr.mxu0 0.0
    %1770 = vmatpush1.msra.mxu0 0.0
    %1771 = vmatprep.mubr.f32.mxu0 0.0
    %1772 = vmatmul.mubr.f32.gmra.mrb[0].mxu0 %v1633
    %v1773 = vpop.f32.mrb[0].mxu0
    %v1774 = vadd.f32 0.0, %v1773
    %v1775 = vpop.f32.mrb[0].mxu0
    %v1776 = vadd.f32 0.0, %v1775
    %1777 = vdwg.mxu0
    %1778 = vmatprep.subr.mxu0 %v1646
    %1779 = vmatpush1.msra.mxu0 %v1645
    %1780 = vmatprep.subr.mxu0 %v1650
    %1781 = vmatpush1.msra.mxu0 %v1649
    %1782 = vmatprep.subr.mxu0 %v1654
    %1783 = vmatpush1.msra.mxu0 %v1653
    %1784 = vmatprep.subr.mxu0 %v1658
    %1785 = vmatpush1.msra.mxu0 %v1657
    %1786 = vmatprep.subr.mxu0 %v1662
    %1787 = vmatpush1.msra.mxu0 %v1661
    %1788 = vmatprep.subr.mxu0 %v1666
    %1789 = vmatpush1.msra.mxu0 %v1665
    %1790 = vmatprep.subr.mxu0 %v1670
    %1791 = vmatpush1.msra.mxu0 %v1669
    %1792 = vmatprep.subr.mxu0 %v1674
    %1793 = vmatpush1.msra.mxu0 %v1673
    %1794 = vmatprep.subr.mxu0 %v1678
    %1795 = vmatpush1.msra.mxu0 %v1677
    %1796 = vmatprep.subr.mxu0 %v1682
    %1797 = vmatpush1.msra.mxu0 %v1681
    %1798 = vmatprep.subr.mxu0 %v1686
    %1799 = vmatpush1.msra.mxu0 %v1685
    %1800 = vmatprep.subr.mxu0 %v1690
    %1801 = vmatpush1.msra.mxu0 %v1689
    %1802 = vmatprep.subr.mxu0 %v1694
    %1803 = vmatpush1.msra.mxu0 %v1693
    %1804 = vmatprep.subr.mxu0 %v1698
    %1805 = vmatpush1.msra.mxu0 %v1697
    %1806 = vmatprep.subr.mxu0 %v1702
    %1807 = vmatpush1.msra.mxu0 %v1701
    %1808 = vmatprep.subr.mxu0 %v1706
    %1809 = vmatpush1.msra.mxu0 %v1705
    %1810 = vmatprep.subr.mxu0 0.0
    %1811 = vmatpush1.msra.mxu0 0.0
    %1812 = vmatprep.subr.mxu0 0.0
    %1813 = vmatpush1.msra.mxu0 0.0
    %1814 = vmatprep.subr.mxu0 0.0
    %1815 = vmatpush1.msra.mxu0 0.0
    %1816 = vmatprep.subr.mxu0 0.0
    %1817 = vmatpush1.msra.mxu0 0.0
    %1818 = vmatprep.subr.mxu0 0.0
    %1819 = vmatpush1.msra.mxu0 0.0
    %1820 = vmatprep.subr.mxu0 0.0
    %1821 = vmatpush1.msra.mxu0 0.0
    %1822 = vmatprep.subr.mxu0 0.0
    %1823 = vmatpush1.msra.mxu0 0.0
    %1824 = vmatprep.subr.mxu0 0.0
    %1825 = vmatpush1.msra.mxu0 0.0
    %1826 = vmatprep.subr.mxu0 0.0
    %1827 = vmatpush1.msra.mxu0 0.0
    %1828 = vmatprep.subr.mxu0 0.0
    %1829 = vmatpush1.msra.mxu0 0.0
    %1830 = vmatprep.subr.mxu0 0.0
    %1831 = vmatpush1.msra.mxu0 0.0
    %1832 = vmatprep.subr.mxu0 0.0
    %1833 = vmatpush1.msra.mxu0 0.0
    %1834 = vmatprep.subr.mxu0 0.0
    %1835 = vmatpush1.msra.mxu0 0.0
    %1836 = vmatprep.subr.mxu0 0.0
    %1837 = vmatpush1.msra.mxu0 0.0
    %1838 = vmatprep.subr.mxu0 0.0
    %1839 = vmatpush1.msra.mxu0 0.0
    %1840 = vmatprep.subr.mxu0 0.0
    %1841 = vmatpush1.msra.mxu0 0.0
    %1842 = vmatprep.mubr.f32.mxu0 0.0
    %1843 = vmatmul.mubr.f32.gmra.mrb[0].mxu0 %v1633
    %v1844 = vpop.f32.mrb[0].mxu0
    %v1845 = vadd.f32 0.0, %v1844
    %v1846 = vpop.f32.mrb[0].mxu0
    %v1847 = vadd.f32 0.0, %v1846
    %1848 = vdwg.mxu0
    %v1849 = vadd.f32 %v1639, %v1774
    %v1850 = vadd.f32 %v1640, %v1776
    %v1851 = vadd.f32 %v1641, %v1845
    %v1852 = vadd.f32 %v1642, %v1847
    %v1853 = vmul.f32 %v1849, 0.5
    %v1854 = vtanh.pop %v1853
    %v1855 = vmul.f32 %v1854, 0.5
    %v1856 = vadd.f32 %v1855, 0.5
    %v1857 = vmul.f32 %v1850, 0.5
    %v1858 = vtanh.pop %v1857
    %v1859 = vmul.f32 %v1858, 0.5
    %v1860 = vadd.f32 %v1859, 0.5
    %v1861 = vtanh.pop %v1851
    %v1862 = vmul.f32 %v1852, 0.5
    %v1863 = vtanh.pop %v1862
    %v1864 = vmul.f32 %v1863, 0.5
    %v1865 = vadd.f32 %v1864, 0.5
    %v1866 = vmul.f32 %v1860, %v1631
    %v1867 = vmul.f32 %v1856, %v1861
    %v1868 = vadd.f32 %v1866, %v1867
    %v1869 = vtanh.pop %v1868
    %v1870 = vmul.f32 %v1865, %v1869
    %s1871 = scalar_lea.vmem [#allocation3], 40
    %1872 = vst [vmem:[%s1871] sm:$0xff] %v1870
    %s1873 = smul.u32 6, 4
    %s1874 = smul.addr %s1873, 8
    %s1875 = scalar_lea.vmem [#allocation2], %s1874
    %v1876 = vld [vmem:[%s1875] sm:$0xff]
    %v1877 = vld [vmem:[%s1875 + $0x8] sm:$0xff]
    %v1878 = vld [vmem:[%s1875 + $0x10] sm:$0xff]
    %v1879 = vld [vmem:[%s1875 + $0x18] sm:$0xff]
    %v1880 = vld [vmem:[#allocation12] sm:$0xff]
    %v1881 = vld [vmem:[#allocation12 + $0x8] sm:$0xff]
    %v1882 = vld [vmem:[#allocation12 + $0x10] sm:$0xff]
    %v1883 = vld [vmem:[#allocation12 + $0x18] sm:$0xff]
    %v1884 = vld [vmem:[#allocation12 + $0x20] sm:$0xff]
    %v1885 = vld [vmem:[#allocation12 + $0x28] sm:$0xff]
    %v1886 = vld [vmem:[#allocation12 + $0x30] sm:$0xff]
    %v1887 = vld [vmem:[#allocation12 + $0x38] sm:$0xff]
    %v1888 = vld [vmem:[#allocation12 + $0x40] sm:$0xff]
    %v1889 = vld [vmem:[#allocation12 + $0x48] sm:$0xff]
    %v1890 = vld [vmem:[#allocation12 + $0x50] sm:$0xff]
    %v1891 = vld [vmem:[#allocation12 + $0x58] sm:$0xff]
    %v1892 = vld [vmem:[#allocation12 + $0x60] sm:$0xff]
    %v1893 = vld [vmem:[#allocation12 + $0x68] sm:$0xff]
    %v1894 = vld [vmem:[#allocation12 + $0x70] sm:$0xff]
    %v1895 = vld [vmem:[#allocation12 + $0x78] sm:$0xff]
    %v1896 = vld [vmem:[#allocation12 + $0x80] sm:$0xff]
    %v1897 = vld [vmem:[#allocation12 + $0x88] sm:$0xff]
    %v1898 = vld [vmem:[#allocation12 + $0x90] sm:$0xff]
    %v1899 = vld [vmem:[#allocation12 + $0x98] sm:$0xff]
    %v1900 = vld [vmem:[#allocation12 + $0xa0] sm:$0xff]
    %v1901 = vld [vmem:[#allocation12 + $0xa8] sm:$0xff]
    %v1902 = vld [vmem:[#allocation12 + $0xb0] sm:$0xff]
    %v1903 = vld [vmem:[#allocation12 + $0xb8] sm:$0xff]
    %v1904 = vld [vmem:[#allocation12 + $0xc0] sm:$0xff]
    %v1905 = vld [vmem:[#allocation12 + $0xc8] sm:$0xff]
    %v1906 = vld [vmem:[#allocation12 + $0xd0] sm:$0xff]
    %v1907 = vld [vmem:[#allocation12 + $0xd8] sm:$0xff]
    %v1908 = vld [vmem:[#allocation12 + $0xe0] sm:$0xff]
    %v1909 = vld [vmem:[#allocation12 + $0xe8] sm:$0xff]
    %v1910 = vld [vmem:[#allocation12 + $0xf0] sm:$0xff]
    %v1911 = vld [vmem:[#allocation12 + $0xf8] sm:$0xff]
    %v1912 = vld [vmem:[#allocation12 + $0x100] sm:$0xff]
    %v1913 = vld [vmem:[#allocation12 + $0x108] sm:$0xff]
    %v1914 = vld [vmem:[#allocation12 + $0x110] sm:$0xff]
    %v1915 = vld [vmem:[#allocation12 + $0x118] sm:$0xff]
    %v1916 = vld [vmem:[#allocation12 + $0x120] sm:$0xff]
    %v1917 = vld [vmem:[#allocation12 + $0x128] sm:$0xff]
    %v1918 = vld [vmem:[#allocation12 + $0x130] sm:$0xff]
    %v1919 = vld [vmem:[#allocation12 + $0x138] sm:$0xff]
    %v1920 = vld [vmem:[#allocation12 + $0x140] sm:$0xff]
    %v1921 = vld [vmem:[#allocation12 + $0x148] sm:$0xff]
    %v1922 = vld [vmem:[#allocation12 + $0x150] sm:$0xff]
    %v1923 = vld [vmem:[#allocation12 + $0x158] sm:$0xff]
    %v1924 = vld [vmem:[#allocation12 + $0x160] sm:$0xff]
    %v1925 = vld [vmem:[#allocation12 + $0x168] sm:$0xff]
    %v1926 = vld [vmem:[#allocation12 + $0x170] sm:$0xff]
    %v1927 = vld [vmem:[#allocation12 + $0x178] sm:$0xff]
    %v1928 = vld [vmem:[#allocation12 + $0x180] sm:$0xff]
    %v1929 = vld [vmem:[#allocation12 + $0x188] sm:$0xff]
    %v1930 = vld [vmem:[#allocation12 + $0x190] sm:$0xff]
    %v1931 = vld [vmem:[#allocation12 + $0x198] sm:$0xff]
    %v1932 = vld [vmem:[#allocation12 + $0x1a0] sm:$0xff]
    %v1933 = vld [vmem:[#allocation12 + $0x1a8] sm:$0xff]
    %v1934 = vld [vmem:[#allocation12 + $0x1b0] sm:$0xff]
    %v1935 = vld [vmem:[#allocation12 + $0x1b8] sm:$0xff]
    %v1936 = vld [vmem:[#allocation12 + $0x1c0] sm:$0xff]
    %v1937 = vld [vmem:[#allocation12 + $0x1c8] sm:$0xff]
    %v1938 = vld [vmem:[#allocation12 + $0x1d0] sm:$0xff]
    %v1939 = vld [vmem:[#allocation12 + $0x1d8] sm:$0xff]
    %v1940 = vld [vmem:[#allocation12 + $0x1e0] sm:$0xff]
    %v1941 = vld [vmem:[#allocation12 + $0x1e8] sm:$0xff]
    %v1942 = vld [vmem:[#allocation12 + $0x1f0] sm:$0xff]
    %v1943 = vld [vmem:[#allocation12 + $0x1f8] sm:$0xff]
    %1944 = vmatprep.subr.mxu0 %v1881
    %1945 = vmatpush1.msra.mxu0 %v1880
    %1946 = vmatprep.subr.mxu0 %v1885
    %1947 = vmatpush1.msra.mxu0 %v1884
    %1948 = vmatprep.subr.mxu0 %v1889
    %1949 = vmatpush1.msra.mxu0 %v1888
    %1950 = vmatprep.subr.mxu0 %v1893
    %1951 = vmatpush1.msra.mxu0 %v1892
    %1952 = vmatprep.subr.mxu0 %v1897
    %1953 = vmatpush1.msra.mxu0 %v1896
    %1954 = vmatprep.subr.mxu0 %v1901
    %1955 = vmatpush1.msra.mxu0 %v1900
    %1956 = vmatprep.subr.mxu0 %v1905
    %1957 = vmatpush1.msra.mxu0 %v1904
    %1958 = vmatprep.subr.mxu0 %v1909
    %1959 = vmatpush1.msra.mxu0 %v1908
    %1960 = vmatprep.subr.mxu0 %v1913
    %1961 = vmatpush1.msra.mxu0 %v1912
    %1962 = vmatprep.subr.mxu0 %v1917
    %1963 = vmatpush1.msra.mxu0 %v1916
    %1964 = vmatprep.subr.mxu0 %v1921
    %1965 = vmatpush1.msra.mxu0 %v1920
    %1966 = vmatprep.subr.mxu0 %v1925
    %1967 = vmatpush1.msra.mxu0 %v1924
    %1968 = vmatprep.subr.mxu0 %v1929
    %1969 = vmatpush1.msra.mxu0 %v1928
    %1970 = vmatprep.subr.mxu0 %v1933
    %1971 = vmatpush1.msra.mxu0 %v1932
    %1972 = vmatprep.subr.mxu0 %v1937
    %1973 = vmatpush1.msra.mxu0 %v1936
    %1974 = vmatprep.subr.mxu0 %v1941
    %1975 = vmatpush1.msra.mxu0 %v1940
    %1976 = vmatprep.subr.mxu0 0.0
    %1977 = vmatpush1.msra.mxu0 0.0
    %1978 = vmatprep.subr.mxu0 0.0
    %1979 = vmatpush1.msra.mxu0 0.0
    %1980 = vmatprep.subr.mxu0 0.0
    %1981 = vmatpush1.msra.mxu0 0.0
    %1982 = vmatprep.subr.mxu0 0.0
    %1983 = vmatpush1.msra.mxu0 0.0
    %1984 = vmatprep.subr.mxu0 0.0
    %1985 = vmatpush1.msra.mxu0 0.0
    %1986 = vmatprep.subr.mxu0 0.0
    %1987 = vmatpush1.msra.mxu0 0.0
    %1988 = vmatprep.subr.mxu0 0.0
    %1989 = vmatpush1.msra.mxu0 0.0
    %1990 = vmatprep.subr.mxu0 0.0
    %1991 = vmatpush1.msra.mxu0 0.0
    %1992 = vmatprep.subr.mxu0 0.0
    %1993 = vmatpush1.msra.mxu0 0.0
    %1994 = vmatprep.subr.mxu0 0.0
    %1995 = vmatpush1.msra.mxu0 0.0
    %1996 = vmatprep.subr.mxu0 0.0
    %1997 = vmatpush1.msra.mxu0 0.0
    %1998 = vmatprep.subr.mxu0 0.0
    %1999 = vmatpush1.msra.mxu0 0.0
    %2000 = vmatprep.subr.mxu0 0.0
    %2001 = vmatpush1.msra.mxu0 0.0
    %2002 = vmatprep.subr.mxu0 0.0
    %2003 = vmatpush1.msra.mxu0 0.0
    %2004 = vmatprep.subr.mxu0 0.0
    %2005 = vmatpush1.msra.mxu0 0.0
    %2006 = vmatprep.subr.mxu0 0.0
    %2007 = vmatpush1.msra.mxu0 0.0
    %2008 = vmatprep.mubr.f32.mxu0 0.0
    %2009 = vmatmul.mubr.f32.gmra.mrb[0].mxu0 %v1870
    %v2010 = vpop.f32.mrb[0].mxu0
    %v2011 = vadd.f32 0.0, %v2010
    %v2012 = vpop.f32.mrb[0].mxu0
    %v2013 = vadd.f32 0.0, %v2012
    %2014 = vdwg.mxu0
    %2015 = vmatprep.subr.mxu0 %v1883
    %2016 = vmatpush1.msra.mxu0 %v1882
    %2017 = vmatprep.subr.mxu0 %v1887
    %2018 = vmatpush1.msra.mxu0 %v1886
    %2019 = vmatprep.subr.mxu0 %v1891
    %2020 = vmatpush1.msra.mxu0 %v1890
    %2021 = vmatprep.subr.mxu0 %v1895
    %2022 = vmatpush1.msra.mxu0 %v1894
    %2023 = vmatprep.subr.mxu0 %v1899
    %2024 = vmatpush1.msra.mxu0 %v1898
    %2025 = vmatprep.subr.mxu0 %v1903
    %2026 = vmatpush1.msra.mxu0 %v1902
    %2027 = vmatprep.subr.mxu0 %v1907
    %2028 = vmatpush1.msra.mxu0 %v1906
    %2029 = vmatprep.subr.mxu0 %v1911
    %2030 = vmatpush1.msra.mxu0 %v1910
    %2031 = vmatprep.subr.mxu0 %v1915
    %2032 = vmatpush1.msra.mxu0 %v1914
    %2033 = vmatprep.subr.mxu0 %v1919
    %2034 = vmatpush1.msra.mxu0 %v1918
    %2035 = vmatprep.subr.mxu0 %v1923
    %2036 = vmatpush1.msra.mxu0 %v1922
    %2037 = vmatprep.subr.mxu0 %v1927
    %2038 = vmatpush1.msra.mxu0 %v1926
    %2039 = vmatprep.subr.mxu0 %v1931
    %2040 = vmatpush1.msra.mxu0 %v1930
    %2041 = vmatprep.subr.mxu0 %v1935
    %2042 = vmatpush1.msra.mxu0 %v1934
    %2043 = vmatprep.subr.mxu0 %v1939
    %2044 = vmatpush1.msra.mxu0 %v1938
    %2045 = vmatprep.subr.mxu0 %v1943
    %2046 = vmatpush1.msra.mxu0 %v1942
    %2047 = vmatprep.subr.mxu0 0.0
    %2048 = vmatpush1.msra.mxu0 0.0
    %2049 = vmatprep.subr.mxu0 0.0
    %2050 = vmatpush1.msra.mxu0 0.0
    %2051 = vmatprep.subr.mxu0 0.0
    %2052 = vmatpush1.msra.mxu0 0.0
    %2053 = vmatprep.subr.mxu0 0.0
    %2054 = vmatpush1.msra.mxu0 0.0
    %2055 = vmatprep.subr.mxu0 0.0
    %2056 = vmatpush1.msra.mxu0 0.0
    %2057 = vmatprep.subr.mxu0 0.0
    %2058 = vmatpush1.msra.mxu0 0.0
    %2059 = vmatprep.subr.mxu0 0.0
    %2060 = vmatpush1.msra.mxu0 0.0
    %2061 = vmatprep.subr.mxu0 0.0
    %2062 = vmatpush1.msra.mxu0 0.0
    %2063 = vmatprep.subr.mxu0 0.0
    %2064 = vmatpush1.msra.mxu0 0.0
    %2065 = vmatprep.subr.mxu0 0.0
    %2066 = vmatpush1.msra.mxu0 0.0
    %2067 = vmatprep.subr.mxu0 0.0
    %2068 = vmatpush1.msra.mxu0 0.0
    %2069 = vmatprep.subr.mxu0 0.0
    %2070 = vmatpush1.msra.mxu0 0.0
    %2071 = vmatprep.subr.mxu0 0.0
    %2072 = vmatpush1.msra.mxu0 0.0
    %2073 = vmatprep.subr.mxu0 0.0
    %2074 = vmatpush1.msra.mxu0 0.0
    %2075 = vmatprep.subr.mxu0 0.0
    %2076 = vmatpush1.msra.mxu0 0.0
    %2077 = vmatprep.subr.mxu0 0.0
    %2078 = vmatpush1.msra.mxu0 0.0
    %2079 = vmatprep.mubr.f32.mxu0 0.0
    %2080 = vmatmul.mubr.f32.gmra.mrb[0].mxu0 %v1870
    %v2081 = vpop.f32.mrb[0].mxu0
    %v2082 = vadd.f32 0.0, %v2081
    %v2083 = vpop.f32.mrb[0].mxu0
    %v2084 = vadd.f32 0.0, %v2083
    %2085 = vdwg.mxu0
    %v2086 = vadd.f32 %v1876, %v2011
    %v2087 = vadd.f32 %v1877, %v2013
    %v2088 = vadd.f32 %v1878, %v2082
    %v2089 = vadd.f32 %v1879, %v2084
    %v2090 = vmul.f32 %v2086, 0.5
    %v2091 = vtanh.pop %v2090
    %v2092 = vmul.f32 %v2091, 0.5
    %v2093 = vadd.f32 %v2092, 0.5
    %v2094 = vmul.f32 %v2087, 0.5
    %v2095 = vtanh.pop %v2094
    %v2096 = vmul.f32 %v2095, 0.5
    %v2097 = vadd.f32 %v2096, 0.5
    %v2098 = vtanh.pop %v2088
    %v2099 = vmul.f32 %v2089, 0.5
    %v2100 = vtanh.pop %v2099
    %v2101 = vmul.f32 %v2100, 0.5
    %v2102 = vadd.f32 %v2101, 0.5
    %v2103 = vmul.f32 %v2097, %v1868
    %v2104 = vmul.f32 %v2093, %v2098
    %v2105 = vadd.f32 %v2103, %v2104
    %v2106 = vtanh.pop %v2105
    %v2107 = vmul.f32 %v2102, %v2106
    %s2108 = scalar_lea.vmem [#allocation3], 48
    %2109 = vst [vmem:[%s2108] sm:$0xff] %v2107
    %s2110 = smul.u32 7, 4
    %s2111 = smul.addr %s2110, 8
    %s2112 = scalar_lea.vmem [#allocation2], %s2111
    %v2113 = vld [vmem:[%s2112] sm:$0xff]
    %v2114 = vld [vmem:[%s2112 + $0x8] sm:$0xff]
    %v2115 = vld [vmem:[%s2112 + $0x10] sm:$0xff]
    %v2116 = vld [vmem:[%s2112 + $0x18] sm:$0xff]
    %v2117 = vld [vmem:[#allocation12] sm:$0xff]
    %v2118 = vld [vmem:[#allocation12 + $0x8] sm:$0xff]
    %v2119 = vld [vmem:[#allocation12 + $0x10] sm:$0xff]
    %v2120 = vld [vmem:[#allocation12 + $0x18] sm:$0xff]
    %v2121 = vld [vmem:[#allocation12 + $0x20] sm:$0xff]
    %v2122 = vld [vmem:[#allocation12 + $0x28] sm:$0xff]
    %v2123 = vld [vmem:[#allocation12 + $0x30] sm:$0xff]
    %v2124 = vld [vmem:[#allocation12 + $0x38] sm:$0xff]
    %v2125 = vld [vmem:[#allocation12 + $0x40] sm:$0xff]
    %v2126 = vld [vmem:[#allocation12 + $0x48] sm:$0xff]
    %v2127 = vld [vmem:[#allocation12 + $0x50] sm:$0xff]
    %v2128 = vld [vmem:[#allocation12 + $0x58] sm:$0xff]
    %v2129 = vld [vmem:[#allocation12 + $0x60] sm:$0xff]
    %v2130 = vld [vmem:[#allocation12 + $0x68] sm:$0xff]
    %v2131 = vld [vmem:[#allocation12 + $0x70] sm:$0xff]
    %v2132 = vld [vmem:[#allocation12 + $0x78] sm:$0xff]
    %v2133 = vld [vmem:[#allocation12 + $0x80] sm:$0xff]
    %v2134 = vld [vmem:[#allocation12 + $0x88] sm:$0xff]
    %v2135 = vld [vmem:[#allocation12 + $0x90] sm:$0xff]
    %v2136 = vld [vmem:[#allocation12 + $0x98] sm:$0xff]
    %v2137 = vld [vmem:[#allocation12 + $0xa0] sm:$0xff]
    %v2138 = vld [vmem:[#allocation12 + $0xa8] sm:$0xff]
    %v2139 = vld [vmem:[#allocation12 + $0xb0] sm:$0xff]
    %v2140 = vld [vmem:[#allocation12 + $0xb8] sm:$0xff]
    %v2141 = vld [vmem:[#allocation12 + $0xc0] sm:$0xff]
    %v2142 = vld [vmem:[#allocation12 + $0xc8] sm:$0xff]
    %v2143 = vld [vmem:[#allocation12 + $0xd0] sm:$0xff]
    %v2144 = vld [vmem:[#allocation12 + $0xd8] sm:$0xff]
    %v2145 = vld [vmem:[#allocation12 + $0xe0] sm:$0xff]
    %v2146 = vld [vmem:[#allocation12 + $0xe8] sm:$0xff]
    %v2147 = vld [vmem:[#allocation12 + $0xf0] sm:$0xff]
    %v2148 = vld [vmem:[#allocation12 + $0xf8] sm:$0xff]
    %v2149 = vld [vmem:[#allocation12 + $0x100] sm:$0xff]
    %v2150 = vld [vmem:[#allocation12 + $0x108] sm:$0xff]
    %v2151 = vld [vmem:[#allocation12 + $0x110] sm:$0xff]
    %v2152 = vld [vmem:[#allocation12 + $0x118] sm:$0xff]
    %v2153 = vld [vmem:[#allocation12 + $0x120] sm:$0xff]
    %v2154 = vld [vmem:[#allocation12 + $0x128] sm:$0xff]
    %v2155 = vld [vmem:[#allocation12 + $0x130] sm:$0xff]
    %v2156 = vld [vmem:[#allocation12 + $0x138] sm:$0xff]
    %v2157 = vld [vmem:[#allocation12 + $0x140] sm:$0xff]
    %v2158 = vld [vmem:[#allocation12 + $0x148] sm:$0xff]
    %v2159 = vld [vmem:[#allocation12 + $0x150] sm:$0xff]
    %v2160 = vld [vmem:[#allocation12 + $0x158] sm:$0xff]
    %v2161 = vld [vmem:[#allocation12 + $0x160] sm:$0xff]
    %v2162 = vld [vmem:[#allocation12 + $0x168] sm:$0xff]
    %v2163 = vld [vmem:[#allocation12 + $0x170] sm:$0xff]
    %v2164 = vld [vmem:[#allocation12 + $0x178] sm:$0xff]
    %v2165 = vld [vmem:[#allocation12 + $0x180] sm:$0xff]
    %v2166 = vld [vmem:[#allocation12 + $0x188] sm:$0xff]
    %v2167 = vld [vmem:[#allocation12 + $0x190] sm:$0xff]
    %v2168 = vld [vmem:[#allocation12 + $0x198] sm:$0xff]
    %v2169 = vld [vmem:[#allocation12 + $0x1a0] sm:$0xff]
    %v2170 = vld [vmem:[#allocation12 + $0x1a8] sm:$0xff]
    %v2171 = vld [vmem:[#allocation12 + $0x1b0] sm:$0xff]
    %v2172 = vld [vmem:[#allocation12 + $0x1b8] sm:$0xff]
    %v2173 = vld [vmem:[#allocation12 + $0x1c0] sm:$0xff]
    %v2174 = vld [vmem:[#allocation12 + $0x1c8] sm:$0xff]
    %v2175 = vld [vmem:[#allocation12 + $0x1d0] sm:$0xff]
    %v2176 = vld [vmem:[#allocation12 + $0x1d8] sm:$0xff]
    %v2177 = vld [vmem:[#allocation12 + $0x1e0] sm:$0xff]
    %v2178 = vld [vmem:[#allocation12 + $0x1e8] sm:$0xff]
    %v2179 = vld [vmem:[#allocation12 + $0x1f0] sm:$0xff]
    %v2180 = vld [vmem:[#allocation12 + $0x1f8] sm:$0xff]
    %2181 = vmatprep.subr.mxu0 %v2118
    %2182 = vmatpush1.msra.mxu0 %v2117
    %2183 = vmatprep.subr.mxu0 %v2122
    %2184 = vmatpush1.msra.mxu0 %v2121
    %2185 = vmatprep.subr.mxu0 %v2126
    %2186 = vmatpush1.msra.mxu0 %v2125
    %2187 = vmatprep.subr.mxu0 %v2130
    %2188 = vmatpush1.msra.mxu0 %v2129
    %2189 = vmatprep.subr.mxu0 %v2134
    %2190 = vmatpush1.msra.mxu0 %v2133
    %2191 = vmatprep.subr.mxu0 %v2138
    %2192 = vmatpush1.msra.mxu0 %v2137
    %2193 = vmatprep.subr.mxu0 %v2142
    %2194 = vmatpush1.msra.mxu0 %v2141
    %2195 = vmatprep.subr.mxu0 %v2146
    %2196 = vmatpush1.msra.mxu0 %v2145
    %2197 = vmatprep.subr.mxu0 %v2150
    %2198 = vmatpush1.msra.mxu0 %v2149
    %2199 = vmatprep.subr.mxu0 %v2154
    %2200 = vmatpush1.msra.mxu0 %v2153
    %2201 = vmatprep.subr.mxu0 %v2158
    %2202 = vmatpush1.msra.mxu0 %v2157
    %2203 = vmatprep.subr.mxu0 %v2162
    %2204 = vmatpush1.msra.mxu0 %v2161
    %2205 = vmatprep.subr.mxu0 %v2166
    %2206 = vmatpush1.msra.mxu0 %v2165
    %2207 = vmatprep.subr.mxu0 %v2170
    %2208 = vmatpush1.msra.mxu0 %v2169
    %2209 = vmatprep.subr.mxu0 %v2174
    %2210 = vmatpush1.msra.mxu0 %v2173
    %2211 = vmatprep.subr.mxu0 %v2178
    %2212 = vmatpush1.msra.mxu0 %v2177
    %2213 = vmatprep.subr.mxu0 0.0
    %2214 = vmatpush1.msra.mxu0 0.0
    %2215 = vmatprep.subr.mxu0 0.0
    %2216 = vmatpush1.msra.mxu0 0.0
    %2217 = vmatprep.subr.mxu0 0.0
    %2218 = vmatpush1.msra.mxu0 0.0
    %2219 = vmatprep.subr.mxu0 0.0
    %2220 = vmatpush1.msra.mxu0 0.0
    %2221 = vmatprep.subr.mxu0 0.0
    %2222 = vmatpush1.msra.mxu0 0.0
    %2223 = vmatprep.subr.mxu0 0.0
    %2224 = vmatpush1.msra.mxu0 0.0
    %2225 = vmatprep.subr.mxu0 0.0
    %2226 = vmatpush1.msra.mxu0 0.0
    %2227 = vmatprep.subr.mxu0 0.0
    %2228 = vmatpush1.msra.mxu0 0.0
    %2229 = vmatprep.subr.mxu0 0.0
    %2230 = vmatpush1.msra.mxu0 0.0
    %2231 = vmatprep.subr.mxu0 0.0
    %2232 = vmatpush1.msra.mxu0 0.0
    %2233 = vmatprep.subr.mxu0 0.0
    %2234 = vmatpush1.msra.mxu0 0.0
    %2235 = vmatprep.subr.mxu0 0.0
    %2236 = vmatpush1.msra.mxu0 0.0
    %2237 = vmatprep.subr.mxu0 0.0
    %2238 = vmatpush1.msra.mxu0 0.0
    %2239 = vmatprep.subr.mxu0 0.0
    %2240 = vmatpush1.msra.mxu0 0.0
    %2241 = vmatprep.subr.mxu0 0.0
    %2242 = vmatpush1.msra.mxu0 0.0
    %2243 = vmatprep.subr.mxu0 0.0
    %2244 = vmatpush1.msra.mxu0 0.0
    %2245 = vmatprep.mubr.f32.mxu0 0.0
    %2246 = vmatmul.mubr.f32.gmra.mrb[0].mxu0 %v2107
    %v2247 = vpop.f32.mrb[0].mxu0
    %v2248 = vadd.f32 0.0, %v2247
    %v2249 = vpop.f32.mrb[0].mxu0
    %v2250 = vadd.f32 0.0, %v2249
    %2251 = vdwg.mxu0
    %2252 = vmatprep.subr.mxu0 %v2120
    %2253 = vmatpush1.msra.mxu0 %v2119
    %2254 = vmatprep.subr.mxu0 %v2124
    %2255 = vmatpush1.msra.mxu0 %v2123
    %2256 = vmatprep.subr.mxu0 %v2128
    %2257 = vmatpush1.msra.mxu0 %v2127
    %2258 = vmatprep.subr.mxu0 %v2132
    %2259 = vmatpush1.msra.mxu0 %v2131
    %2260 = vmatprep.subr.mxu0 %v2136
    %2261 = vmatpush1.msra.mxu0 %v2135
    %2262 = vmatprep.subr.mxu0 %v2140
    %2263 = vmatpush1.msra.mxu0 %v2139
    %2264 = vmatprep.subr.mxu0 %v2144
    %2265 = vmatpush1.msra.mxu0 %v2143
    %2266 = vmatprep.subr.mxu0 %v2148
    %2267 = vmatpush1.msra.mxu0 %v2147
    %2268 = vmatprep.subr.mxu0 %v2152
    %2269 = vmatpush1.msra.mxu0 %v2151
    %2270 = vmatprep.subr.mxu0 %v2156
    %2271 = vmatpush1.msra.mxu0 %v2155
    %2272 = vmatprep.subr.mxu0 %v2160
    %2273 = vmatpush1.msra.mxu0 %v2159
    %2274 = vmatprep.subr.mxu0 %v2164
    %2275 = vmatpush1.msra.mxu0 %v2163
    %2276 = vmatprep.subr.mxu0 %v2168
    %2277 = vmatpush1.msra.mxu0 %v2167
    %2278 = vmatprep.subr.mxu0 %v2172
    %2279 = vmatpush1.msra.mxu0 %v2171
    %2280 = vmatprep.subr.mxu0 %v2176
    %2281 = vmatpush1.msra.mxu0 %v2175
    %2282 = vmatprep.subr.mxu0 %v2180
    %2283 = vmatpush1.msra.mxu0 %v2179
    %2284 = vmatprep.subr.mxu0 0.0
    %2285 = vmatpush1.msra.mxu0 0.0
    %2286 = vmatprep.subr.mxu0 0.0
    %2287 = vmatpush1.msra.mxu0 0.0
    %2288 = vmatprep.subr.mxu0 0.0
    %2289 = vmatpush1.msra.mxu0 0.0
    %2290 = vmatprep.subr.mxu0 0.0
    %2291 = vmatpush1.msra.mxu0 0.0
    %2292 = vmatprep.subr.mxu0 0.0
    %2293 = vmatpush1.msra.mxu0 0.0
    %2294 = vmatprep.subr.mxu0 0.0
    %2295 = vmatpush1.msra.mxu0 0.0
    %2296 = vmatprep.subr.mxu0 0.0
    %2297 = vmatpush1.msra.mxu0 0.0
    %2298 = vmatprep.subr.mxu0 0.0
    %2299 = vmatpush1.msra.mxu0 0.0
    %2300 = vmatprep.subr.mxu0 0.0
    %2301 = vmatpush1.msra.mxu0 0.0
    %2302 = vmatprep.subr.mxu0 0.0
    %2303 = vmatpush1.msra.mxu0 0.0
    %2304 = vmatprep.subr.mxu0 0.0
    %2305 = vmatpush1.msra.mxu0 0.0
    %2306 = vmatprep.subr.mxu0 0.0
    %2307 = vmatpush1.msra.mxu0 0.0
    %2308 = vmatprep.subr.mxu0 0.0
    %2309 = vmatpush1.msra.mxu0 0.0
    %2310 = vmatprep.subr.mxu0 0.0
    %2311 = vmatpush1.msra.mxu0 0.0
    %2312 = vmatprep.subr.mxu0 0.0
    %2313 = vmatpush1.msra.mxu0 0.0
    %2314 = vmatprep.subr.mxu0 0.0
    %2315 = vmatpush1.msra.mxu0 0.0
    %2316 = vmatprep.mubr.f32.mxu0 0.0
    %2317 = vmatmul.mubr.f32.gmra.mrb[0].mxu0 %v2107
    %v2318 = vpop.f32.mrb[0].mxu0
    %v2319 = vadd.f32 0.0, %v2318
    %v2320 = vpop.f32.mrb[0].mxu0
    %v2321 = vadd.f32 0.0, %v2320
    %2322 = vdwg.mxu0
    %v2323 = vadd.f32 %v2113, %v2248
    %v2324 = vadd.f32 %v2114, %v2250
    %v2325 = vadd.f32 %v2115, %v2319
    %v2326 = vadd.f32 %v2116, %v2321
    %v2327 = vmul.f32 %v2323, 0.5
    %v2328 = vtanh.pop %v2327
    %v2329 = vmul.f32 %v2328, 0.5
    %v2330 = vadd.f32 %v2329, 0.5
    %v2331 = vmul.f32 %v2324, 0.5
    %v2332 = vtanh.pop %v2331
    %v2333 = vmul.f32 %v2332, 0.5
    %v2334 = vadd.f32 %v2333, 0.5
    %v2335 = vtanh.pop %v2325
    %v2336 = vmul.f32 %v2326, 0.5
    %v2337 = vtanh.pop %v2336
    %v2338 = vmul.f32 %v2337, 0.5
    %v2339 = vadd.f32 %v2338, 0.5
    %v2340 = vmul.f32 %v2334, %v2105
    %v2341 = vmul.f32 %v2330, %v2335
    %v2342 = vadd.f32 %v2340, %v2341
    %v2343 = vtanh.pop %v2342
    %v2344 = vmul.f32 %v2339, %v2343
    %s2345 = scalar_lea.vmem [#allocation3], 56
    %2346 = vst [vmem:[%s2345] sm:$0xff] %v2344
    %2347 = vst [vmem:[#allocation19] sm:$0xff] %v2344
    %2348 = vst [vmem:[#allocation21] sm:$0xff] %v2342
    %v2349 = vld [vmem:[#allocation3] sm:$0xff]
    %v2350 = vld [vmem:[#allocation3 + $0x8] sm:$0xff]
    %v2351 = vld [vmem:[#allocation3 + $0x10] sm:$0xff]
    %v2352 = vld [vmem:[#allocation3 + $0x18] sm:$0xff]
    %v2353 = vld [vmem:[#allocation3 + $0x20] sm:$0xff]
    %v2354 = vld [vmem:[#allocation3 + $0x28] sm:$0xff]
    %v2355 = vld [vmem:[#allocation3 + $0x30] sm:$0xff]
    %v2356 = vld [vmem:[#allocation3 + $0x38] sm:$0xff]
    %v2357 = vld [vmem:[#allocation15] sm:$0xff]
    %v2358 = vld [vmem:[#allocation15 + $0x8] sm:$0xff]
    %v2359 = vld [vmem:[#allocation15 + $0x10] sm:$0xff]
    %v2360 = vld [vmem:[#allocation15 + $0x18] sm:$0xff]
    %v2361 = vld [vmem:[#allocation15 + $0x20] sm:$0xff]
    %v2362 = vld [vmem:[#allocation15 + $0x28] sm:$0xff]
    %v2363 = vld [vmem:[#allocation15 + $0x30] sm:$0xff]
    %v2364 = vld [vmem:[#allocation15 + $0x38] sm:$0xff]
    %v2365 = vld [vmem:[#allocation15 + $0x40] sm:$0xff]
    %v2366 = vld [vmem:[#allocation15 + $0x48] sm:$0xff]
    %v2367 = vld [vmem:[#allocation15 + $0x50] sm:$0xff]
    %v2368 = vld [vmem:[#allocation15 + $0x58] sm:$0xff]
    %v2369 = vld [vmem:[#allocation15 + $0x60] sm:$0xff]
    %v2370 = vld [vmem:[#allocation15 + $0x68] sm:$0xff]
    %v2371 = vld [vmem:[#allocation15 + $0x70] sm:$0xff]
    %v2372 = vld [vmem:[#allocation15 + $0x78] sm:$0xff]
    %v2373 = vld [vmem:[#allocation16] sm:$0x1]
    %v2375 = vlaneseq
    %v2376 = vshrl.u32 %v2375, 7
    %v2377 = vsub.s32 0, %v2376
    %v2378 = vrot.slane %v2373, %v2377
    %2380 = vmatprep.subr.mxu0 0.0
    %2381 = vmatpush1.msra.mxu0 %v2357
    %2382 = vmatprep.subr.mxu0 0.0
    %2383 = vmatpush1.msra.mxu0 %v2358
    %2384 = vmatprep.subr.mxu0 0.0
    %2385 = vmatpush1.msra.mxu0 %v2359
    %2386 = vmatprep.subr.mxu0 0.0
    %2387 = vmatpush1.msra.mxu0 %v2360
    %2388 = vmatprep.subr.mxu0 0.0
    %2389 = vmatpush1.msra.mxu0 %v2361
    %2390 = vmatprep.subr.mxu0 0.0
    %2391 = vmatpush1.msra.mxu0 %v2362
    %2392 = vmatprep.subr.mxu0 0.0
    %2393 = vmatpush1.msra.mxu0 %v2363
    %2394 = vmatprep.subr.mxu0 0.0
    %2395 = vmatpush1.msra.mxu0 %v2364
    %2396 = vmatprep.subr.mxu0 0.0
    %2397 = vmatpush1.msra.mxu0 %v2365
    %2398 = vmatprep.subr.mxu0 0.0
    %2399 = vmatpush1.msra.mxu0 %v2366
    %2400 = vmatprep.subr.mxu0 0.0
    %2401 = vmatpush1.msra.mxu0 %v2367
    %2402 = vmatprep.subr.mxu0 0.0
    %2403 = vmatpush1.msra.mxu0 %v2368
    %2404 = vmatprep.subr.mxu0 0.0
    %2405 = vmatpush1.msra.mxu0 %v2369
    %2406 = vmatprep.subr.mxu0 0.0
    %2407 = vmatpush1.msra.mxu0 %v2370
    %2408 = vmatprep.subr.mxu0 0.0
    %2409 = vmatpush1.msra.mxu0 %v2371
    %2410 = vmatprep.subr.mxu0 0.0
    %2411 = vmatpush1.msra.mxu0 %v2372
    %2412 = vmatprep.subr.mxu0 0.0
    %2413 = vmatpush1.msra.mxu0 0.0
    %2414 = vmatprep.subr.mxu0 0.0
    %2415 = vmatpush1.msra.mxu0 0.0
    %2416 = vmatprep.subr.mxu0 0.0
    %2417 = vmatpush1.msra.mxu0 0.0
    %2418 = vmatprep.subr.mxu0 0.0
    %2419 = vmatpush1.msra.mxu0 0.0
    %2420 = vmatprep.subr.mxu0 0.0
    %2421 = vmatpush1.msra.mxu0 0.0
    %2422 = vmatprep.subr.mxu0 0.0
    %2423 = vmatpush1.msra.mxu0 0.0
    %2424 = vmatprep.subr.mxu0 0.0
    %2425 = vmatpush1.msra.mxu0 0.0
    %2426 = vmatprep.subr.mxu0 0.0
    %2427 = vmatpush1.msra.mxu0 0.0
    %2428 = vmatprep.subr.mxu0 0.0
    %2429 = vmatpush1.msra.mxu0 0.0
    %2430 = vmatprep.subr.mxu0 0.0
    %2431 = vmatpush1.msra.mxu0 0.0
    %2432 = vmatprep.subr.mxu0 0.0
    %2433 = vmatpush1.msra.mxu0 0.0
    %2434 = vmatprep.subr.mxu0 0.0
    %2435 = vmatpush1.msra.mxu0 0.0
    %2436 = vmatprep.subr.mxu0 0.0
    %2437 = vmatpush1.msra.mxu0 0.0
    %2438 = vmatprep.subr.mxu0 0.0
    %2439 = vmatpush1.msra.mxu0 0.0
    %2440 = vmatprep.subr.mxu0 0.0
    %2441 = vmatpush1.msra.mxu0 0.0
    %2442 = vmatprep.subr.mxu0 0.0
    %2443 = vmatpush1.msra.mxu0 0.0
    %2444 = vmatprep.mubr.f32.mxu0 0.0
    %2445 = vmatmul.mubr.f32.gmra.mrb[0].mxu0 %v2349
    %v2446 = vpop.f32.mrb[0].mxu0
    %v2447 = vadd.f32 %v2378, %v2446
    %v2448 = vpop.f32.mrb[0].mxu0
    %2449 = vmatprep.mubr.f32.mxu0 0.0
    %2450 = vmatmul.mubr.f32.gmra.mrb[0].mxu0 %v2350
    %v2451 = vpop.f32.mrb[0].mxu0
    %v2452 = vadd.f32 %v2378, %v2451
    %v2453 = vpop.f32.mrb[0].mxu0
    %2454 = vmatprep.mubr.f32.mxu0 0.0
    %2455 = vmatmul.mubr.f32.gmra.mrb[0].mxu0 %v2351
    %v2456 = vpop.f32.mrb[0].mxu0
    %v2457 = vadd.f32 %v2378, %v2456
    %v2458 = vpop.f32.mrb[0].mxu0
    %2459 = vmatprep.mubr.f32.mxu0 0.0
    %2460 = vmatmul.mubr.f32.gmra.mrb[0].mxu0 %v2352
    %v2461 = vpop.f32.mrb[0].mxu0
    %v2462 = vadd.f32 %v2378, %v2461
    %v2463 = vpop.f32.mrb[0].mxu0
    %2464 = vmatprep.mubr.f32.mxu0 0.0
    %2465 = vmatmul.mubr.f32.gmra.mrb[0].mxu0 %v2353
    %v2466 = vpop.f32.mrb[0].mxu0
    %v2467 = vadd.f32 %v2378, %v2466
    %v2468 = vpop.f32.mrb[0].mxu0
    %2469 = vmatprep.mubr.f32.mxu0 0.0
    %2470 = vmatmul.mubr.f32.gmra.mrb[0].mxu0 %v2354
    %v2471 = vpop.f32.mrb[0].mxu0
    %v2472 = vadd.f32 %v2378, %v2471
    %v2473 = vpop.f32.mrb[0].mxu0
    %2474 = vmatprep.mubr.f32.mxu0 0.0
    %2475 = vmatmul.mubr.f32.gmra.mrb[0].mxu0 %v2355
    %v2476 = vpop.f32.mrb[0].mxu0
    %v2477 = vadd.f32 %v2378, %v2476
    %v2478 = vpop.f32.mrb[0].mxu0
    %2479 = vmatprep.mubr.f32.mxu0 0.0
    %2480 = vmatmul.mubr.f32.gmra.mrb[0].mxu0 %v2356
    %v2481 = vpop.f32.mrb[0].mxu0
    %v2482 = vadd.f32 %v2378, %v2481
    %v2483 = vpop.f32.mrb[0].mxu0
    %2484 = vdwg.mxu0
    %vm2485 = vcmask 23552
    %2486 = vst.msk [vmem:[#allocation18] sm:$0xff] %vm2485, %v2447
    %2487 = vst.msk [vmem:[#allocation18 + $0x8] sm:$0xff] %vm2485, %v2452
    %2488 = vst.msk [vmem:[#allocation18 + $0x10] sm:$0xff] %vm2485, %v2457
    %2489 = vst.msk [vmem:[#allocation18 + $0x18] sm:$0xff] %vm2485, %v2462
    %2490 = vst.msk [vmem:[#allocation18 + $0x20] sm:$0xff] %vm2485, %v2467
    %2491 = vst.msk [vmem:[#allocation18 + $0x28] sm:$0xff] %vm2485, %v2472
    %2492 = vst.msk [vmem:[#allocation18 + $0x30] sm:$0xff] %vm2485, %v2477
    %2493 = vst.msk [vmem:[#allocation18 + $0x38] sm:$0xff] %vm2485, %v2482
    // Predicated region
    $region66: #{smiles_generator_forward.1} parent=1 // pred_check
      _
    $region67: #{smiles_generator_forward.1} parent=1 // pred_check_branch
      %2495 = sbr.rel (0) target = $region69
    $region68: #{smiles_generator_forward.1} parent=1 // pred_region
      %s2497 = ssub.s32 1024, 1024
      %2498 = vsyncadd [#allocation6], %s2497
      %s2499 = sshll.u32 [#allocation18], 4
      %s2500 = int_to_ptr.vmem [resolvable:$true] %s2499
      %2505 = dma.vmem_to_hbm [thread:$0]  %s2500, 1024, %s8, [#allocation6], 128, 128, 8
    $region69: #{smiles_generator_forward.1} parent=1 // pred_fallthru
      _
    // Predicated region
    $region70: #{smiles_generator_forward.1} parent=1 // pred_check
      _
    $region71: #{smiles_generator_forward.1} parent=1 // pred_check_branch
      %2507 = sbr.rel (0) target = $region73
    $region72: #{smiles_generator_forward.1} parent=1 // pred_region
      %s2509 = ssub.s32 128, 128
      %2510 = vsyncadd [#allocation20], %s2509
      %s2512 = sshll.u32 [#allocation19], 4
      %s2513 = int_to_ptr.vmem [resolvable:$true] %s2512
      %2515 = dma.vmem_to_hbm [thread:$0]  %s2513, 128, %s9, [#allocation20]
    $region73: #{smiles_generator_forward.1} parent=1 // pred_fallthru
      _
    // Predicated region
    $region74: #{smiles_generator_forward.1} parent=1 // pred_check
      _
    $region75: #{smiles_generator_forward.1} parent=1 // pred_check_branch
      %2517 = sbr.rel (0) target = $region77
    $region76: #{smiles_generator_forward.1} parent=1 // pred_region
      %s2519 = ssub.s32 128, 128
      %2520 = vsyncadd [#allocation20], %s2519
      %s2522 = sshll.u32 [#allocation21], 4
      %s2523 = int_to_ptr.vmem [resolvable:$true] %s2522
      %2525 = dma.vmem_to_hbm [thread:$0]  %s2523, 128, %s10, [#allocation20]
    $region77: #{smiles_generator_forward.1} parent=1 // pred_fallthru
      _
    // Predicated region
    $region78: #{smiles_generator_forward.1} parent=1 // pred_check
      _
    $region79: #{smiles_generator_forward.1} parent=1 // pred_check_branch
      %2527 = sbr.rel (0) target = $region81
    $region80: #{smiles_generator_forward.1} parent=1 // pred_region
      %2528 = dma.done [#allocation6], 1024
    $region81: #{smiles_generator_forward.1} parent=1 // pred_fallthru
      _
    // Predicated region
    $region82: #{smiles_generator_forward.1} parent=1 // pred_check
      _
    $region83: #{smiles_generator_forward.1} parent=1 // pred_check_branch
      %2530 = sbr.rel (0) target = $region85
    $region84: #{smiles_generator_forward.1} parent=1 // pred_region
      %2531 = dma.done [#allocation20], 128
    $region85: #{smiles_generator_forward.1} parent=1 // pred_fallthru
      _
    // Predicated region
    $region86: #{smiles_generator_forward.1} parent=1 // pred_check
      _
    $region87: #{smiles_generator_forward.1} parent=1 // pred_check_branch
      %2533 = sbr.rel (0) target = $region89
    $region88: #{smiles_generator_forward.1} parent=1 // pred_region
      %2534 = dma.done [#allocation20], 128
    $region89: #{smiles_generator_forward.1} parent=1 // pred_fallthru
      _
    %2535 = vsyncpa [#allocation5], 1
    %2536 = vsyncpa [#allocation8], 1
    %2537 = vsyncpa [#allocation11], 1
    %2538 = vsyncpa [#allocation14], 1
    %2539 = vsyncpa [#allocation17], 1
    %2540 = vsyncpa [#allocation6], 1
    %2541 = vsyncpa [#allocation20], 1

</llo_original>
